<compile_context>
chip_gen: v5e
topology: v5e:2x2
jax: 0.10.0
libtpu: 0.0.40
codegen_flags: <defaults>
</compile_context>

<pallas_src>
import functools

import numpy as np

import jax
import jax.numpy as jnp
from jax import lax
from jax.experimental import pallas as pl
from jax.experimental.pallas import tpu as pltpu


PRELU_ALPHA = 0.25  # nn.PReLU() default init (single shared parameter).
# TODO(synk): a learnable PReLU weight would be passed as an extra input
# instead of being baked in as a trace-time constant.


# ----------------------------------------------------------------------------
# Fused ResUp kernel (one grid step = one batch element)
# ----------------------------------------------------------------------------
def _resup_kernel(x_ref, shift_ref,
                  rc1_w, rc1_b, rc2_w, rc2_b,
                  rct_w, rct_b, rc3_w, rc3_b,
                  uc1_w, uc1_b, uct_w, uct_b,
                  o_ref, *, alpha):
    x = x_ref[0]                      # (H, W*C) lane-dense slab
    r_dn = shift_ref[0]               # (H, H): (r_dn @ Z)[h] = Z[h-1] (row 0 -> 0)
    r_up = shift_ref[1]               # (H, H): (r_up @ Z)[h] = Z[h+1] (last -> 0)

    def mm(a, b):
        return jnp.dot(a, b, preferred_element_type=jnp.float32)

    def prelu(v):
        return jnp.where(v > 0, v, alpha * v)

    def conv3x3(slab, w3, b):
        # 3x3 / stride 1 / pad 1 conv on a lane-dense slab: one column-banded
        # matmul per kernel row + shift-matrix row mixing (borders -> zeros).
        z0 = mm(slab, w3[0])
        z1 = mm(slab, w3[1])
        z2 = mm(slab, w3[2])
        return mm(r_dn, z0) + z1 + mm(r_up, z2) + b[...]

    def convt3x3_s2(slab, w3, b):
        # ConvTranspose2d(k=3, s=2, p=1, output_padding=1), polyphase on the
        # undilated input.  Returns (even_rows, odd_rows), each (H, 2W*Cout).
        e = mm(slab, w3[1]) + b[...]
        o = mm(slab, w3[2]) + mm(r_up, mm(slab, w3[0])) + b[...]
        return e, o

    def conv3x3_pair(e, o, w3, b):
        # 3x3 conv applied to the 2H x 2W image given as (even, odd) row slabs.
        ze0, ze1, ze2 = mm(e, w3[0]), mm(e, w3[1]), mm(e, w3[2])
        zo0, zo1, zo2 = mm(o, w3[0]), mm(o, w3[1]), mm(o, w3[2])
        oe = mm(r_dn, zo0) + ze1 + zo2 + b[...]
        oo = ze0 + zo1 + mm(r_up, ze2) + b[...]
        return oe, oo

    # res branch
    r = prelu(conv3x3(x, rc1_w, rc1_b))
    r = prelu(conv3x3(r, rc2_w, rc2_b))
    re, ro = convt3x3_s2(r, rct_w, rct_b)
    re, ro = conv3x3_pair(re, ro, rc3_w, rc3_b)

    # up branch
    u = conv3x3(x, uc1_w, uc1_b)
    ue, uo = convt3x3_s2(u, uct_w, uct_b)
    ue, uo = prelu(ue), prelu(uo)

    o_ref[0, 0] = (re + ue).astype(o_ref.dtype)   # even output rows
    o_ref[0, 1] = (ro + uo).astype(o_ref.dtype)   # odd output rows


# ----------------------------------------------------------------------------
# Wrapper-side weight transforms (plain JAX, done once per call)
# ----------------------------------------------------------------------------
def _conv_col_weights(w_oihw, width):
    """Conv2d weight (Cout, Cin, 3, 3) -> (3, width*Cin, width*Cout).

    Entry [kh, u*Cin+ci, w*Cout+co] = weight[co, ci, kh, u-w+1] when
    u-w+1 in {0,1,2} (zero otherwise): one column-banded matrix per kernel
    row, so a whole conv row is a single lane-dense matmul; width zero-padding
    is encoded by the band structure.
    """
    cout, cin = w_oihw.shape[0], w_oihw.shape[1]
    w_hwio = jnp.transpose(w_oihw, (2, 3, 1, 0))              # (kh, kw, ci, co)
    sel = np.zeros((3, width, width), np.float32)             # (kw, u, w)
    for w in range(width):
        for kw in range(3):
            u = w + kw - 1
            if 0 <= u < width:
                sel[kw, u, w] = 1.0
    m = jnp.einsum('kuw,hkio->huiwo', jnp.asarray(sel), w_hwio,
                   precision=lax.Precision.HIGHEST)
    return m.reshape(3, width * cin, width * cout)


def _convt_col_weights(w_iohw, width):
    """ConvTranspose2d weight (Cin, Cout, 3, 3) for stride 2, pad 1, out_pad 1
    -> (3, width*Cin, 2*width*Cout), one column-banded matrix per kernel row
    (the 2x column polyphase is folded into the band structure)."""
    cin, cout = w_iohw.shape[0], w_iohw.shape[1]
    sel = np.zeros((3, width, 2 * width), np.float32)         # (kw, u, n2)
    for u in range(width):
        sel[1, u, 2 * u] = 1.0                                # even cols, kw=1
        sel[2, u, 2 * u + 1] = 1.0                            # odd cols,  kw=2
        if 2 * u - 1 >= 0:
            sel[0, u, 2 * u - 1] = 1.0                        # odd cols,  kw=0
    m = jnp.einsum('kun,iohk->huino', jnp.asarray(sel), w_iohw,
                   precision=lax.Precision.HIGHEST)
    return m.reshape(3, width * cin, 2 * width * cout)


def _tiled_bias(b, width):
    return jnp.tile(b, width).reshape(1, width * b.shape[0])


def _shift_mats(h):
    r_dn = np.eye(h, k=-1, dtype=np.float32)   # picks row h-1 (row 0 -> 0)
    r_up = np.eye(h, k=1, dtype=np.float32)    # picks row h+1 (last row -> 0)
    return jnp.asarray(np.stack([r_dn, r_up], axis=0))        # (2, h, h)


# ----------------------------------------------------------------------------
# ResUp forward (Pallas)
# ----------------------------------------------------------------------------
def resup_forward(x_nchw, p):
    B, C, H, W = x_nchw.shape
    Cout = p["res_c3_w"].shape[0]
    W2 = 2 * W

    # lane-dense input slabs: (B, H, W*C)  (W*C = 128 here).
    x = jnp.transpose(x_nchw, (0, 2, 3, 1)).reshape(B, H, W * C)

    inputs = [
        x,
        _shift_mats(H),
        _conv_col_weights(p["res_c1_w"], W),   _tiled_bias(p["res_c1_b"], W),
        _conv_col_weights(p["res_c2_w"], W),   _tiled_bias(p["res_c2_b"], W),
        _convt_col_weights(p["res_ct_w"], W),  _tiled_bias(p["res_ct_b"], W2),
        _conv_col_weights(p["res_c3_w"], W2),  _tiled_bias(p["res_c3_b"], W2),
        _conv_col_weights(p["up_c1_w"], W),    _tiled_bias(p["up_c1_b"], W),
        _convt_col_weights(p["up_ct_w"], W),   _tiled_bias(p["up_ct_b"], W2),
    ]

    in_specs = [pl.BlockSpec((1, H, W * C), lambda b: (b, 0, 0))]
    for a in inputs[1:]:
        in_specs.append(pl.BlockSpec(a.shape, lambda b, n=a.ndim: (0,) * n))

    out = pl.pallas_call(
        functools.partial(_resup_kernel, alpha=PRELU_ALPHA),
        out_shape=jax.ShapeDtypeStruct((B, 2, H, W2 * Cout), jnp.float32),
        grid=(B,),
        in_specs=in_specs,
        out_specs=pl.BlockSpec((1, 2, H, W2 * Cout), lambda b: (b, 0, 0, 0)),
        compiler_params=pltpu.CompilerParams(
            dimension_semantics=("parallel",),
            vmem_limit_bytes=32 * 1024 * 1024),
    )(*inputs)

    # (B, 2, H, 2W*Cout): [b, ph, m, n*Cout+c] = y[b, 2m+ph, n, c]  ->  NCHW
    out = out.reshape(B, 2, H, W2, Cout)
    out = jnp.transpose(out, (0, 4, 2, 1, 3)).reshape(B, Cout, 2 * H, W2)
    return out


# ----------------------------------------------------------------------------
# Pure-JAX reference (correctness check)
# ----------------------------------------------------------------------------
def _ref_conv(x, w_oihw, b):
    w = jnp.transpose(w_oihw, (2, 3, 1, 0))
    y = lax.conv_general_dilated(x, w, (1, 1), ((1, 1), (1, 1)),
                                 dimension_numbers=("NHWC", "HWIO", "NHWC"),
                                 precision=lax.Precision.HIGHEST)
    return y + b


def _ref_convT(x, w_iohw, b):
    w = jnp.transpose(w_iohw[:, :, ::-1, ::-1], (2, 3, 0, 1))
    y = lax.conv_general_dilated(x, w, (1, 1), ((1, 2), (1, 2)),
                                 lhs_dilation=(2, 2),
                                 dimension_numbers=("NHWC", "HWIO", "NHWC"),
                                 precision=lax.Precision.HIGHEST)
    return y + b


def _ref_prelu(x):
    return jnp.where(x > 0, x, PRELU_ALPHA * x)


def resup_reference(x_nchw, p):
    x = jnp.transpose(x_nchw, (0, 2, 3, 1))
    r = _ref_prelu(_ref_conv(x, p["res_c1_w"], p["res_c1_b"]))
    r = _ref_prelu(_ref_conv(r, p["res_c2_w"], p["res_c2_b"]))
    r = _ref_convT(r, p["res_ct_w"], p["res_ct_b"])
    r = _ref_conv(r, p["res_c3_w"], p["res_c3_b"])
    u = _ref_conv(x, p["up_c1_w"], p["up_c1_b"])
    u = _ref_prelu(_ref_convT(u, p["up_ct_w"], p["up_ct_b"]))
    return jnp.transpose(r + u, (0, 3, 1, 2))


# ----------------------------------------------------------------------------
if __name__ == "__main__":
    C = 8          # args.feature_num
    C_OUT = 8      # out_channel
    B, H, W = 2, 16, 16

    key = jax.random.PRNGKey(0)
    keys = jax.random.split(key, 13)

    def w_(k, shape):
        return 0.1 * jax.random.normal(k, shape, jnp.float32)

    params = {
        # res branch
        "res_c1_w": w_(keys[0], (C, C, 3, 3)),      "res_c1_b": w_(keys[1], (C,)),
        "res_c2_w": w_(keys[2], (C, C, 3, 3)),      "res_c2_b": w_(keys[3], (C,)),
        "res_ct_w": w_(keys[4], (C, C, 3, 3)),      "res_ct_b": w_(keys[5], (C,)),
        "res_c3_w": w_(keys[6], (C_OUT, C, 3, 3)),  "res_c3_b": w_(keys[7], (C_OUT,)),
        # up branch
        "up_c1_w": w_(keys[8], (C, C, 3, 3)),       "up_c1_b": w_(keys[9], (C,)),
        "up_ct_w": w_(keys[10], (C, C_OUT, 3, 3)),  "up_ct_b": w_(keys[11], (C_OUT,)),
    }

    x = jax.random.normal(keys[12], (B, C, H, W), jnp.float32)

    fwd = jax.jit(resup_forward)
    out = jax.block_until_ready(fwd(x, params))
    assert out.shape == (B, C_OUT, 2 * H, 2 * W), out.shape

    ref = jax.block_until_ready(resup_reference(x, params))
    assert jnp.allclose(out, ref, rtol=1e-3, atol=2e-3), float(
        jnp.max(jnp.abs(out - ref)))

    print("KERNEL_OK")
</pallas_src>

<mosaic_0001>
module attributes {stable_mosaic.version = 11 : i64} {
  func.func @_resup_kernel(%arg0: i32, %arg1: memref<1x16x128xf32, #tpu.memory_space<vmem>>, %arg2: memref<2x16x16xf32, #tpu.memory_space<vmem>>, %arg3: memref<3x128x128xf32, #tpu.memory_space<vmem>>, %arg4: memref<1x128xf32, #tpu.memory_space<vmem>>, %arg5: memref<3x128x128xf32, #tpu.memory_space<vmem>>, %arg6: memref<1x128xf32, #tpu.memory_space<vmem>>, %arg7: memref<3x128x256xf32, #tpu.memory_space<vmem>>, %arg8: memref<1x256xf32, #tpu.memory_space<vmem>>, %arg9: memref<3x256x256xf32, #tpu.memory_space<vmem>>, %arg10: memref<1x256xf32, #tpu.memory_space<vmem>>, %arg11: memref<3x128x128xf32, #tpu.memory_space<vmem>>, %arg12: memref<1x128xf32, #tpu.memory_space<vmem>>, %arg13: memref<3x128x256xf32, #tpu.memory_space<vmem>>, %arg14: memref<1x256xf32, #tpu.memory_space<vmem>>, %arg15: memref<1x2x16x256xf32, #tpu.memory_space<vmem>>) attributes {dimension_semantics = [#tpu.dimension_semantics<parallel>], iteration_bounds = array<i64: 2>, scalar_prefetch = 0 : i64, scratch_operands = 0 : i64, tpu.core_type = #tpu.core_type<tc>, window_params = [{transform_indices = @transform_0, window_bounds = array<i64: 1, 16, 128>}, {pipeline_mode = #tpu.pipeline_mode<synchronous>, transform_indices = @transform_1, window_bounds = array<i64: 2, 16, 16>}, {pipeline_mode = #tpu.pipeline_mode<synchronous>, transform_indices = @transform_2, window_bounds = array<i64: 3, 128, 128>}, {pipeline_mode = #tpu.pipeline_mode<synchronous>, transform_indices = @transform_3, window_bounds = array<i64: 1, 128>}, {pipeline_mode = #tpu.pipeline_mode<synchronous>, transform_indices = @transform_4, window_bounds = array<i64: 3, 128, 128>}, {pipeline_mode = #tpu.pipeline_mode<synchronous>, transform_indices = @transform_5, window_bounds = array<i64: 1, 128>}, {pipeline_mode = #tpu.pipeline_mode<synchronous>, transform_indices = @transform_6, window_bounds = array<i64: 3, 128, 256>}, {pipeline_mode = #tpu.pipeline_mode<synchronous>, transform_indices = @transform_7, window_bounds = array<i64: 1, 256>}, {pipeline_mode = #tpu.pipeline_mode<synchronous>, transform_indices = @transform_8, window_bounds = array<i64: 3, 256, 256>}, {pipeline_mode = #tpu.pipeline_mode<synchronous>, transform_indices = @transform_9, window_bounds = array<i64: 1, 256>}, {pipeline_mode = #tpu.pipeline_mode<synchronous>, transform_indices = @transform_10, window_bounds = array<i64: 3, 128, 128>}, {pipeline_mode = #tpu.pipeline_mode<synchronous>, transform_indices = @transform_11, window_bounds = array<i64: 1, 128>}, {pipeline_mode = #tpu.pipeline_mode<synchronous>, transform_indices = @transform_12, window_bounds = array<i64: 3, 128, 256>}, {pipeline_mode = #tpu.pipeline_mode<synchronous>, transform_indices = @transform_13, window_bounds = array<i64: 1, 256>}, {transform_indices = @transform_14, window_bounds = array<i64: 1, 2, 16, 256>}]} {
    %c0 = arith.constant 0 : index
    %c0_0 = arith.constant 0 : index
    %c0_1 = arith.constant 0 : index
    %0 = vector.load %arg1[%c0, %c0_0, %c0_1] : memref<1x16x128xf32, #tpu.memory_space<vmem>>, vector<1x16x128xf32>
    %1 = vector.shape_cast %0 : vector<1x16x128xf32> to vector<16x128xf32>
    %c0_2 = arith.constant 0 : index
    %c0_3 = arith.constant 0 : index
    %c0_4 = arith.constant 0 : index
    %2 = vector.load %arg2[%c0_2, %c0_3, %c0_4] : memref<2x16x16xf32, #tpu.memory_space<vmem>>, vector<1x16x16xf32>
    %3 = vector.shape_cast %2 : vector<1x16x16xf32> to vector<16x16xf32>
    %c1 = arith.constant 1 : index
    %c0_5 = arith.constant 0 : index
    %c0_6 = arith.constant 0 : index
    %4 = vector.load %arg2[%c1, %c0_5, %c0_6] : memref<2x16x16xf32, #tpu.memory_space<vmem>>, vector<1x16x16xf32>
    %5 = vector.shape_cast %4 : vector<1x16x16xf32> to vector<16x16xf32>
    %c0_7 = arith.constant 0 : index
    %c0_8 = arith.constant 0 : index
    %c0_9 = arith.constant 0 : index
    %6 = vector.load %arg3[%c0_7, %c0_8, %c0_9] : memref<3x128x128xf32, #tpu.memory_space<vmem>>, vector<1x128x128xf32>
    %7 = vector.shape_cast %6 : vector<1x128x128xf32> to vector<128x128xf32>
    %cst = arith.constant dense<0.000000e+00> : vector<16x128xf32>
    %8 = tpu.matmul %1, %7, %cst {dimension_numbers = #tpu.dot_dimension_numbers<[1], [0], [0], [1], [0, 0, 1, 1], [], []>} : vector<16x128xf32>, vector<128x128xf32>, vector<16x128xf32> -> vector<16x128xf32>
    %c1_10 = arith.constant 1 : index
    %c0_11 = arith.constant 0 : index
    %c0_12 = arith.constant 0 : index
    %9 = vector.load %arg3[%c1_10, %c0_11, %c0_12] : memref<3x128x128xf32, #tpu.memory_space<vmem>>, vector<1x128x128xf32>
    %10 = vector.shape_cast %9 : vector<1x128x128xf32> to vector<128x128xf32>
    %cst_13 = arith.constant dense<0.000000e+00> : vector<16x128xf32>
    %11 = tpu.matmul %1, %10, %cst_13 {dimension_numbers = #tpu.dot_dimension_numbers<[1], [0], [0], [1], [0, 0, 1, 1], [], []>} : vector<16x128xf32>, vector<128x128xf32>, vector<16x128xf32> -> vector<16x128xf32>
    %c2 = arith.constant 2 : index
    %c0_14 = arith.constant 0 : index
    %c0_15 = arith.constant 0 : index
    %12 = vector.load %arg3[%c2, %c0_14, %c0_15] : memref<3x128x128xf32, #tpu.memory_space<vmem>>, vector<1x128x128xf32>
    %13 = vector.shape_cast %12 : vector<1x128x128xf32> to vector<128x128xf32>
    %cst_16 = arith.constant dense<0.000000e+00> : vector<16x128xf32>
    %14 = tpu.matmul %1, %13, %cst_16 {dimension_numbers = #tpu.dot_dimension_numbers<[1], [0], [0], [1], [0, 0, 1, 1], [], []>} : vector<16x128xf32>, vector<128x128xf32>, vector<16x128xf32> -> vector<16x128xf32>
    %cst_17 = arith.constant dense<0.000000e+00> : vector<16x128xf32>
    %15 = tpu.matmul %3, %8, %cst_17 {dimension_numbers = #tpu.dot_dimension_numbers<[1], [0], [0], [1], [0, 0, 1, 1], [], []>} : vector<16x16xf32>, vector<16x128xf32>, vector<16x128xf32> -> vector<16x128xf32>
    %16 = arith.addf %15, %11 : vector<16x128xf32>
    %cst_18 = arith.constant dense<0.000000e+00> : vector<16x128xf32>
    %17 = tpu.matmul %5, %14, %cst_18 {dimension_numbers = #tpu.dot_dimension_numbers<[1], [0], [0], [1], [0, 0, 1, 1], [], []>} : vector<16x16xf32>, vector<16x128xf32>, vector<16x128xf32> -> vector<16x128xf32>
    %18 = arith.addf %16, %17 : vector<16x128xf32>
    %c0_19 = arith.constant 0 : index
    %c0_20 = arith.constant 0 : index
    %19 = vector.load %arg4[%c0_19, %c0_20] : memref<1x128xf32, #tpu.memory_space<vmem>>, vector<1x128xf32>
    %20 = vector.broadcast %19 : vector<1x128xf32> to vector<16x128xf32>
    %21 = arith.addf %18, %20 : vector<16x128xf32>
    %cst_21 = arith.constant 0.000000e+00 : f32
    %22 = vector.broadcast %cst_21 : f32 to vector<16x128xf32>
    %23 = arith.cmpf ogt, %21, %22 : vector<16x128xf32>
    %cst_22 = arith.constant 2.500000e-01 : f32
    %24 = vector.broadcast %cst_22 : f32 to vector<16x128xf32>
    %25 = arith.mulf %24, %21 : vector<16x128xf32>
    %26 = arith.select %23, %21, %25 : vector<16x128xi1>, vector<16x128xf32>
    %c0_23 = arith.constant 0 : index
    %c0_24 = arith.constant 0 : index
    %c0_25 = arith.constant 0 : index
    %27 = vector.load %arg5[%c0_23, %c0_24, %c0_25] : memref<3x128x128xf32, #tpu.memory_space<vmem>>, vector<1x128x128xf32>
    %28 = vector.shape_cast %27 : vector<1x128x128xf32> to vector<128x128xf32>
    %cst_26 = arith.constant dense<0.000000e+00> : vector<16x128xf32>
    %29 = tpu.matmul %26, %28, %cst_26 {dimension_numbers = #tpu.dot_dimension_numbers<[1], [0], [0], [1], [0, 0, 1, 1], [], []>} : vector<16x128xf32>, vector<128x128xf32>, vector<16x128xf32> -> vector<16x128xf32>
    %c1_27 = arith.constant 1 : index
    %c0_28 = arith.constant 0 : index
    %c0_29 = arith.constant 0 : index
    %30 = vector.load %arg5[%c1_27, %c0_28, %c0_29] : memref<3x128x128xf32, #tpu.memory_space<vmem>>, vector<1x128x128xf32>
    %31 = vector.shape_cast %30 : vector<1x128x128xf32> to vector<128x128xf32>
    %cst_30 = arith.constant dense<0.000000e+00> : vector<16x128xf32>
    %32 = tpu.matmul %26, %31, %cst_30 {dimension_numbers = #tpu.dot_dimension_numbers<[1], [0], [0], [1], [0, 0, 1, 1], [], []>} : vector<16x128xf32>, vector<128x128xf32>, vector<16x128xf32> -> vector<16x128xf32>
    %c2_31 = arith.constant 2 : index
    %c0_32 = arith.constant 0 : index
    %c0_33 = arith.constant 0 : index
    %33 = vector.load %arg5[%c2_31, %c0_32, %c0_33] : memref<3x128x128xf32, #tpu.memory_space<vmem>>, vector<1x128x128xf32>
    %34 = vector.shape_cast %33 : vector<1x128x128xf32> to vector<128x128xf32>
    %cst_34 = arith.constant dense<0.000000e+00> : vector<16x128xf32>
    %35 = tpu.matmul %26, %34, %cst_34 {dimension_numbers = #tpu.dot_dimension_numbers<[1], [0], [0], [1], [0, 0, 1, 1], [], []>} : vector<16x128xf32>, vector<128x128xf32>, vector<16x128xf32> -> vector<16x128xf32>
    %cst_35 = arith.constant dense<0.000000e+00> : vector<16x128xf32>
    %36 = tpu.matmul %3, %29, %cst_35 {dimension_numbers = #tpu.dot_dimension_numbers<[1], [0], [0], [1], [0, 0, 1, 1], [], []>} : vector<16x16xf32>, vector<16x128xf32>, vector<16x128xf32> -> vector<16x128xf32>
    %37 = arith.addf %36, %32 : vector<16x128xf32>
    %cst_36 = arith.constant dense<0.000000e+00> : vector<16x128xf32>
    %38 = tpu.matmul %5, %35, %cst_36 {dimension_numbers = #tpu.dot_dimension_numbers<[1], [0], [0], [1], [0, 0, 1, 1], [], []>} : vector<16x16xf32>, vector<16x128xf32>, vector<16x128xf32> -> vector<16x128xf32>
    %39 = arith.addf %37, %38 : vector<16x128xf32>
    %c0_37 = arith.constant 0 : index
    %c0_38 = arith.constant 0 : index
    %40 = vector.load %arg6[%c0_37, %c0_38] : memref<1x128xf32, #tpu.memory_space<vmem>>, vector<1x128xf32>
    %41 = vector.broadcast %40 : vector<1x128xf32> to vector<16x128xf32>
    %42 = arith.addf %39, %41 : vector<16x128xf32>
    %cst_39 = arith.constant 0.000000e+00 : f32
    %43 = vector.broadcast %cst_39 : f32 to vector<16x128xf32>
    %44 = arith.cmpf ogt, %42, %43 : vector<16x128xf32>
    %cst_40 = arith.constant 2.500000e-01 : f32
    %45 = vector.broadcast %cst_40 : f32 to vector<16x128xf32>
    %46 = arith.mulf %45, %42 : vector<16x128xf32>
    %47 = arith.select %44, %42, %46 : vector<16x128xi1>, vector<16x128xf32>
    %c1_41 = arith.constant 1 : index
    %c0_42 = arith.constant 0 : index
    %c0_43 = arith.constant 0 : index
    %48 = vector.load %arg7[%c1_41, %c0_42, %c0_43] : memref<3x128x256xf32, #tpu.memory_space<vmem>>, vector<1x128x256xf32>
    %49 = vector.shape_cast %48 : vector<1x128x256xf32> to vector<128x256xf32>
    %cst_44 = arith.constant dense<0.000000e+00> : vector<16x256xf32>
    %50 = tpu.matmul %47, %49, %cst_44 {dimension_numbers = #tpu.dot_dimension_numbers<[1], [0], [0], [1], [0, 0, 1, 1], [], []>} : vector<16x128xf32>, vector<128x256xf32>, vector<16x256xf32> -> vector<16x256xf32>
    %c0_45 = arith.constant 0 : index
    %c0_46 = arith.constant 0 : index
    %51 = vector.load %arg8[%c0_45, %c0_46] : memref<1x256xf32, #tpu.memory_space<vmem>>, vector<1x256xf32>
    %52 = vector.broadcast %51 : vector<1x256xf32> to vector<16x256xf32>
    %53 = arith.addf %50, %52 : vector<16x256xf32>
    %c2_47 = arith.constant 2 : index
    %c0_48 = arith.constant 0 : index
    %c0_49 = arith.constant 0 : index
    %54 = vector.load %arg7[%c2_47, %c0_48, %c0_49] : memref<3x128x256xf32, #tpu.memory_space<vmem>>, vector<1x128x256xf32>
    %55 = vector.shape_cast %54 : vector<1x128x256xf32> to vector<128x256xf32>
    %cst_50 = arith.constant dense<0.000000e+00> : vector<16x256xf32>
    %56 = tpu.matmul %47, %55, %cst_50 {dimension_numbers = #tpu.dot_dimension_numbers<[1], [0], [0], [1], [0, 0, 1, 1], [], []>} : vector<16x128xf32>, vector<128x256xf32>, vector<16x256xf32> -> vector<16x256xf32>
    %c0_51 = arith.constant 0 : index
    %c0_52 = arith.constant 0 : index
    %c0_53 = arith.constant 0 : index
    %57 = vector.load %arg7[%c0_51, %c0_52, %c0_53] : memref<3x128x256xf32, #tpu.memory_space<vmem>>, vector<1x128x256xf32>
    %58 = vector.shape_cast %57 : vector<1x128x256xf32> to vector<128x256xf32>
    %cst_54 = arith.constant dense<0.000000e+00> : vector<16x256xf32>
    %59 = tpu.matmul %47, %58, %cst_54 {dimension_numbers = #tpu.dot_dimension_numbers<[1], [0], [0], [1], [0, 0, 1, 1], [], []>} : vector<16x128xf32>, vector<128x256xf32>, vector<16x256xf32> -> vector<16x256xf32>
    %cst_55 = arith.constant dense<0.000000e+00> : vector<16x256xf32>
    %60 = tpu.matmul %5, %59, %cst_55 {dimension_numbers = #tpu.dot_dimension_numbers<[1], [0], [0], [1], [0, 0, 1, 1], [], []>} : vector<16x16xf32>, vector<16x256xf32>, vector<16x256xf32> -> vector<16x256xf32>
    %61 = arith.addf %56, %60 : vector<16x256xf32>
    %c0_56 = arith.constant 0 : index
    %c0_57 = arith.constant 0 : index
    %62 = vector.load %arg8[%c0_56, %c0_57] : memref<1x256xf32, #tpu.memory_space<vmem>>, vector<1x256xf32>
    %63 = vector.broadcast %62 : vector<1x256xf32> to vector<16x256xf32>
    %64 = arith.addf %61, %63 : vector<16x256xf32>
    %c0_58 = arith.constant 0 : index
    %c0_59 = arith.constant 0 : index
    %c0_60 = arith.constant 0 : index
    %65 = vector.load %arg9[%c0_58, %c0_59, %c0_60] : memref<3x256x256xf32, #tpu.memory_space<vmem>>, vector<1x256x256xf32>
    %66 = vector.shape_cast %65 : vector<1x256x256xf32> to vector<256x256xf32>
    %cst_61 = arith.constant dense<0.000000e+00> : vector<16x256xf32>
    %67 = tpu.matmul %53, %66, %cst_61 {dimension_numbers = #tpu.dot_dimension_numbers<[1], [0], [0], [1], [0, 0, 1, 1], [], []>} : vector<16x256xf32>, vector<256x256xf32>, vector<16x256xf32> -> vector<16x256xf32>
    %c1_62 = arith.constant 1 : index
    %c0_63 = arith.constant 0 : index
    %c0_64 = arith.constant 0 : index
    %68 = vector.load %arg9[%c1_62, %c0_63, %c0_64] : memref<3x256x256xf32, #tpu.memory_space<vmem>>, vector<1x256x256xf32>
    %69 = vector.shape_cast %68 : vector<1x256x256xf32> to vector<256x256xf32>
    %cst_65 = arith.constant dense<0.000000e+00> : vector<16x256xf32>
    %70 = tpu.matmul %53, %69, %cst_65 {dimension_numbers = #tpu.dot_dimension_numbers<[1], [0], [0], [1], [0, 0, 1, 1], [], []>} : vector<16x256xf32>, vector<256x256xf32>, vector<16x256xf32> -> vector<16x256xf32>
    %c2_66 = arith.constant 2 : index
    %c0_67 = arith.constant 0 : index
    %c0_68 = arith.constant 0 : index
    %71 = vector.load %arg9[%c2_66, %c0_67, %c0_68] : memref<3x256x256xf32, #tpu.memory_space<vmem>>, vector<1x256x256xf32>
    %72 = vector.shape_cast %71 : vector<1x256x256xf32> to vector<256x256xf32>
    %cst_69 = arith.constant dense<0.000000e+00> : vector<16x256xf32>
    %73 = tpu.matmul %53, %72, %cst_69 {dimension_numbers = #tpu.dot_dimension_numbers<[1], [0], [0], [1], [0, 0, 1, 1], [], []>} : vector<16x256xf32>, vector<256x256xf32>, vector<16x256xf32> -> vector<16x256xf32>
    %c0_70 = arith.constant 0 : index
    %c0_71 = arith.constant 0 : index
    %c0_72 = arith.constant 0 : index
    %74 = vector.load %arg9[%c0_70, %c0_71, %c0_72] : memref<3x256x256xf32, #tpu.memory_space<vmem>>, vector<1x256x256xf32>
    %75 = vector.shape_cast %74 : vector<1x256x256xf32> to vector<256x256xf32>
    %cst_73 = arith.constant dense<0.000000e+00> : vector<16x256xf32>
    %76 = tpu.matmul %64, %75, %cst_73 {dimension_numbers = #tpu.dot_dimension_numbers<[1], [0], [0], [1], [0, 0, 1, 1], [], []>} : vector<16x256xf32>, vector<256x256xf32>, vector<16x256xf32> -> vector<16x256xf32>
    %c1_74 = arith.constant 1 : index
    %c0_75 = arith.constant 0 : index
    %c0_76 = arith.constant 0 : index
    %77 = vector.load %arg9[%c1_74, %c0_75, %c0_76] : memref<3x256x256xf32, #tpu.memory_space<vmem>>, vector<1x256x256xf32>
    %78 = vector.shape_cast %77 : vector<1x256x256xf32> to vector<256x256xf32>
    %cst_77 = arith.constant dense<0.000000e+00> : vector<16x256xf32>
    %79 = tpu.matmul %64, %78, %cst_77 {dimension_numbers = #tpu.dot_dimension_numbers<[1], [0], [0], [1], [0, 0, 1, 1], [], []>} : vector<16x256xf32>, vector<256x256xf32>, vector<16x256xf32> -> vector<16x256xf32>
    %c2_78 = arith.constant 2 : index
    %c0_79 = arith.constant 0 : index
    %c0_80 = arith.constant 0 : index
    %80 = vector.load %arg9[%c2_78, %c0_79, %c0_80] : memref<3x256x256xf32, #tpu.memory_space<vmem>>, vector<1x256x256xf32>
    %81 = vector.shape_cast %80 : vector<1x256x256xf32> to vector<256x256xf32>
    %cst_81 = arith.constant dense<0.000000e+00> : vector<16x256xf32>
    %82 = tpu.matmul %64, %81, %cst_81 {dimension_numbers = #tpu.dot_dimension_numbers<[1], [0], [0], [1], [0, 0, 1, 1], [], []>} : vector<16x256xf32>, vector<256x256xf32>, vector<16x256xf32> -> vector<16x256xf32>
    %cst_82 = arith.constant dense<0.000000e+00> : vector<16x256xf32>
    %83 = tpu.matmul %3, %76, %cst_82 {dimension_numbers = #tpu.dot_dimension_numbers<[1], [0], [0], [1], [0, 0, 1, 1], [], []>} : vector<16x16xf32>, vector<16x256xf32>, vector<16x256xf32> -> vector<16x256xf32>
    %84 = arith.addf %83, %70 : vector<16x256xf32>
    %85 = arith.addf %84, %82 : vector<16x256xf32>
    %c0_83 = arith.constant 0 : index
    %c0_84 = arith.constant 0 : index
    %86 = vector.load %arg10[%c0_83, %c0_84] : memref<1x256xf32, #tpu.memory_space<vmem>>, vector<1x256xf32>
    %87 = vector.broadcast %86 : vector<1x256xf32> to vector<16x256xf32>
    %88 = arith.addf %85, %87 : vector<16x256xf32>
    %89 = arith.addf %67, %79 : vector<16x256xf32>
    %cst_85 = arith.constant dense<0.000000e+00> : vector<16x256xf32>
    %90 = tpu.matmul %5, %73, %cst_85 {dimension_numbers = #tpu.dot_dimension_numbers<[1], [0], [0], [1], [0, 0, 1, 1], [], []>} : vector<16x16xf32>, vector<16x256xf32>, vector<16x256xf32> -> vector<16x256xf32>
    %91 = arith.addf %89, %90 : vector<16x256xf32>
    %c0_86 = arith.constant 0 : index
    %c0_87 = arith.constant 0 : index
    %92 = vector.load %arg10[%c0_86, %c0_87] : memref<1x256xf32, #tpu.memory_space<vmem>>, vector<1x256xf32>
    %93 = vector.broadcast %92 : vector<1x256xf32> to vector<16x256xf32>
    %94 = arith.addf %91, %93 : vector<16x256xf32>
    %c0_88 = arith.constant 0 : index
    %c0_89 = arith.constant 0 : index
    %c0_90 = arith.constant 0 : index
    %95 = vector.load %arg11[%c0_88, %c0_89, %c0_90] : memref<3x128x128xf32, #tpu.memory_space<vmem>>, vector<1x128x128xf32>
    %96 = vector.shape_cast %95 : vector<1x128x128xf32> to vector<128x128xf32>
    %cst_91 = arith.constant dense<0.000000e+00> : vector<16x128xf32>
    %97 = tpu.matmul %1, %96, %cst_91 {dimension_numbers = #tpu.dot_dimension_numbers<[1], [0], [0], [1], [0, 0, 1, 1], [], []>} : vector<16x128xf32>, vector<128x128xf32>, vector<16x128xf32> -> vector<16x128xf32>
    %c1_92 = arith.constant 1 : index
    %c0_93 = arith.constant 0 : index
    %c0_94 = arith.constant 0 : index
    %98 = vector.load %arg11[%c1_92, %c0_93, %c0_94] : memref<3x128x128xf32, #tpu.memory_space<vmem>>, vector<1x128x128xf32>
    %99 = vector.shape_cast %98 : vector<1x128x128xf32> to vector<128x128xf32>
    %cst_95 = arith.constant dense<0.000000e+00> : vector<16x128xf32>
    %100 = tpu.matmul %1, %99, %cst_95 {dimension_numbers = #tpu.dot_dimension_numbers<[1], [0], [0], [1], [0, 0, 1, 1], [], []>} : vector<16x128xf32>, vector<128x128xf32>, vector<16x128xf32> -> vector<16x128xf32>
    %c2_96 = arith.constant 2 : index
    %c0_97 = arith.constant 0 : index
    %c0_98 = arith.constant 0 : index
    %101 = vector.load %arg11[%c2_96, %c0_97, %c0_98] : memref<3x128x128xf32, #tpu.memory_space<vmem>>, vector<1x128x128xf32>
    %102 = vector.shape_cast %101 : vector<1x128x128xf32> to vector<128x128xf32>
    %cst_99 = arith.constant dense<0.000000e+00> : vector<16x128xf32>
    %103 = tpu.matmul %1, %102, %cst_99 {dimension_numbers = #tpu.dot_dimension_numbers<[1], [0], [0], [1], [0, 0, 1, 1], [], []>} : vector<16x128xf32>, vector<128x128xf32>, vector<16x128xf32> -> vector<16x128xf32>
    %cst_100 = arith.constant dense<0.000000e+00> : vector<16x128xf32>
    %104 = tpu.matmul %3, %97, %cst_100 {dimension_numbers = #tpu.dot_dimension_numbers<[1], [0], [0], [1], [0, 0, 1, 1], [], []>} : vector<16x16xf32>, vector<16x128xf32>, vector<16x128xf32> -> vector<16x128xf32>
    %105 = arith.addf %104, %100 : vector<16x128xf32>
    %cst_101 = arith.constant dense<0.000000e+00> : vector<16x128xf32>
    %106 = tpu.matmul %5, %103, %cst_101 {dimension_numbers = #tpu.dot_dimension_numbers<[1], [0], [0], [1], [0, 0, 1, 1], [], []>} : vector<16x16xf32>, vector<16x128xf32>, vector<16x128xf32> -> vector<16x128xf32>
    %107 = arith.addf %105, %106 : vector<16x128xf32>
    %c0_102 = arith.constant 0 : index
    %c0_103 = arith.constant 0 : index
    %108 = vector.load %arg12[%c0_102, %c0_103] : memref<1x128xf32, #tpu.memory_space<vmem>>, vector<1x128xf32>
    %109 = vector.broadcast %108 : vector<1x128xf32> to vector<16x128xf32>
    %110 = arith.addf %107, %109 : vector<16x128xf32>
    %c1_104 = arith.constant 1 : index
    %c0_105 = arith.constant 0 : index
    %c0_106 = arith.constant 0 : index
    %111 = vector.load %arg13[%c1_104, %c0_105, %c0_106] : memref<3x128x256xf32, #tpu.memory_space<vmem>>, vector<1x128x256xf32>
    %112 = vector.shape_cast %111 : vector<1x128x256xf32> to vector<128x256xf32>
    %cst_107 = arith.constant dense<0.000000e+00> : vector<16x256xf32>
    %113 = tpu.matmul %110, %112, %cst_107 {dimension_numbers = #tpu.dot_dimension_numbers<[1], [0], [0], [1], [0, 0, 1, 1], [], []>} : vector<16x128xf32>, vector<128x256xf32>, vector<16x256xf32> -> vector<16x256xf32>
    %c0_108 = arith.constant 0 : index
    %c0_109 = arith.constant 0 : index
    %114 = vector.load %arg14[%c0_108, %c0_109] : memref<1x256xf32, #tpu.memory_space<vmem>>, vector<1x256xf32>
    %115 = vector.broadcast %114 : vector<1x256xf32> to vector<16x256xf32>
    %116 = arith.addf %113, %115 : vector<16x256xf32>
    %c2_110 = arith.constant 2 : index
    %c0_111 = arith.constant 0 : index
    %c0_112 = arith.constant 0 : index
    %117 = vector.load %arg13[%c2_110, %c0_111, %c0_112] : memref<3x128x256xf32, #tpu.memory_space<vmem>>, vector<1x128x256xf32>
    %118 = vector.shape_cast %117 : vector<1x128x256xf32> to vector<128x256xf32>
    %cst_113 = arith.constant dense<0.000000e+00> : vector<16x256xf32>
    %119 = tpu.matmul %110, %118, %cst_113 {dimension_numbers = #tpu.dot_dimension_numbers<[1], [0], [0], [1], [0, 0, 1, 1], [], []>} : vector<16x128xf32>, vector<128x256xf32>, vector<16x256xf32> -> vector<16x256xf32>
    %c0_114 = arith.constant 0 : index
    %c0_115 = arith.constant 0 : index
    %c0_116 = arith.constant 0 : index
    %120 = vector.load %arg13[%c0_114, %c0_115, %c0_116] : memref<3x128x256xf32, #tpu.memory_space<vmem>>, vector<1x128x256xf32>
    %121 = vector.shape_cast %120 : vector<1x128x256xf32> to vector<128x256xf32>
    %cst_117 = arith.constant dense<0.000000e+00> : vector<16x256xf32>
    %122 = tpu.matmul %110, %121, %cst_117 {dimension_numbers = #tpu.dot_dimension_numbers<[1], [0], [0], [1], [0, 0, 1, 1], [], []>} : vector<16x128xf32>, vector<128x256xf32>, vector<16x256xf32> -> vector<16x256xf32>
    %cst_118 = arith.constant dense<0.000000e+00> : vector<16x256xf32>
    %123 = tpu.matmul %5, %122, %cst_118 {dimension_numbers = #tpu.dot_dimension_numbers<[1], [0], [0], [1], [0, 0, 1, 1], [], []>} : vector<16x16xf32>, vector<16x256xf32>, vector<16x256xf32> -> vector<16x256xf32>
    %124 = arith.addf %119, %123 : vector<16x256xf32>
    %c0_119 = arith.constant 0 : index
    %c0_120 = arith.constant 0 : index
    %125 = vector.load %arg14[%c0_119, %c0_120] : memref<1x256xf32, #tpu.memory_space<vmem>>, vector<1x256xf32>
    %126 = vector.broadcast %125 : vector<1x256xf32> to vector<16x256xf32>
    %127 = arith.addf %124, %126 : vector<16x256xf32>
    %cst_121 = arith.constant 0.000000e+00 : f32
    %128 = vector.broadcast %cst_121 : f32 to vector<16x256xf32>
    %129 = arith.cmpf ogt, %116, %128 : vector<16x256xf32>
    %cst_122 = arith.constant 2.500000e-01 : f32
    %130 = vector.broadcast %cst_122 : f32 to vector<16x256xf32>
    %131 = arith.mulf %130, %116 : vector<16x256xf32>
    %132 = arith.select %129, %116, %131 : vector<16x256xi1>, vector<16x256xf32>
    %cst_123 = arith.constant 0.000000e+00 : f32
    %133 = vector.broadcast %cst_123 : f32 to vector<16x256xf32>
    %134 = arith.cmpf ogt, %127, %133 : vector<16x256xf32>
    %cst_124 = arith.constant 2.500000e-01 : f32
    %135 = vector.broadcast %cst_124 : f32 to vector<16x256xf32>
    %136 = arith.mulf %135, %127 : vector<16x256xf32>
    %137 = arith.select %134, %127, %136 : vector<16x256xi1>, vector<16x256xf32>
    %138 = arith.addf %88, %132 : vector<16x256xf32>
    %c0_125 = arith.constant 0 : index
    %c0_126 = arith.constant 0 : index
    %c0_127 = arith.constant 0 : index
    %c0_128 = arith.constant 0 : index
    %139 = vector.load %arg15[%c0_125, %c0_126, %c0_127, %c0_128] : memref<1x2x16x256xf32, #tpu.memory_space<vmem>>, vector<1x1x16x256xf32>
    %140 = vector.shape_cast %139 : vector<1x1x16x256xf32> to vector<16x256xf32>
    %141 = vector.shape_cast %138 : vector<16x256xf32> to vector<1x1x16x256xf32>
    tpu.vector_store %arg15[%c0_125, %c0_126, %c0_127, %c0_128], %141 {strides = array<i32>} : memref<1x2x16x256xf32, #tpu.memory_space<vmem>>, vector<1x1x16x256xf32>,
    %142 = arith.addf %94, %137 : vector<16x256xf32>
    %c0_129 = arith.constant 0 : index
    %c1_130 = arith.constant 1 : index
    %c0_131 = arith.constant 0 : index
    %c0_132 = arith.constant 0 : index
    %143 = vector.load %arg15[%c0_129, %c1_130, %c0_131, %c0_132] : memref<1x2x16x256xf32, #tpu.memory_space<vmem>>, vector<1x1x16x256xf32>
    %144 = vector.shape_cast %143 : vector<1x1x16x256xf32> to vector<16x256xf32>
    %145 = vector.shape_cast %142 : vector<16x256xf32> to vector<1x1x16x256xf32>
    tpu.vector_store %arg15[%c0_129, %c1_130, %c0_131, %c0_132], %145 {strides = array<i32>} : memref<1x2x16x256xf32, #tpu.memory_space<vmem>>, vector<1x1x16x256xf32>,
    return
  }
  func.func @transform_0(%arg0: i32) -> (i32, i32, i32) {
    %c0_i32 = arith.constant 0 : i32
    %c0_i32_0 = arith.constant 0 : i32
    %c0_i32_1 = arith.constant 0 : i32
    return %arg0, %c0_i32, %c0_i32_0 : i32, i32, i32
  }
  func.func @transform_1(%arg0: i32) -> (i32, i32, i32) {
    %c0_i32 = arith.constant 0 : i32
    %c0_i32_0 = arith.constant 0 : i32
    %c0_i32_1 = arith.constant 0 : i32
    %c0_i32_2 = arith.constant 0 : i32
    return %c0_i32, %c0_i32_0, %c0_i32_1 : i32, i32, i32
  }
  func.func @transform_2(%arg0: i32) -> (i32, i32, i32) {
    %c0_i32 = arith.constant 0 : i32
    %c0_i32_0 = arith.constant 0 : i32
    %c0_i32_1 = arith.constant 0 : i32
    %c0_i32_2 = arith.constant 0 : i32
    return %c0_i32, %c0_i32_0, %c0_i32_1 : i32, i32, i32
  }
  func.func @transform_3(%arg0: i32) -> (i32, i32) {
    %c0_i32 = arith.constant 0 : i32
    %c0_i32_0 = arith.constant 0 : i32
    %c0_i32_1 = arith.constant 0 : i32
    return %c0_i32, %c0_i32_0 : i32, i32
  }
  func.func @transform_4(%arg0: i32) -> (i32, i32, i32) {
    %c0_i32 = arith.constant 0 : i32
    %c0_i32_0 = arith.constant 0 : i32
    %c0_i32_1 = arith.constant 0 : i32
    %c0_i32_2 = arith.constant 0 : i32
    return %c0_i32, %c0_i32_0, %c0_i32_1 : i32, i32, i32
  }
  func.func @transform_5(%arg0: i32) -> (i32, i32) {
    %c0_i32 = arith.constant 0 : i32
    %c0_i32_0 = arith.constant 0 : i32
    %c0_i32_1 = arith.constant 0 : i32
    return %c0_i32, %c0_i32_0 : i32, i32
  }
  func.func @transform_6(%arg0: i32) -> (i32, i32, i32) {
    %c0_i32 = arith.constant 0 : i32
    %c0_i32_0 = arith.constant 0 : i32
    %c0_i32_1 = arith.constant 0 : i32
    %c0_i32_2 = arith.constant 0 : i32
    return %c0_i32, %c0_i32_0, %c0_i32_1 : i32, i32, i32
  }
  func.func @transform_7(%arg0: i32) -> (i32, i32) {
    %c0_i32 = arith.constant 0 : i32
    %c0_i32_0 = arith.constant 0 : i32
    %c0_i32_1 = arith.constant 0 : i32
    return %c0_i32, %c0_i32_0 : i32, i32
  }
  func.func @transform_8(%arg0: i32) -> (i32, i32, i32) {
    %c0_i32 = arith.constant 0 : i32
    %c0_i32_0 = arith.constant 0 : i32
    %c0_i32_1 = arith.constant 0 : i32
    %c0_i32_2 = arith.constant 0 : i32
    return %c0_i32, %c0_i32_0, %c0_i32_1 : i32, i32, i32
  }
  func.func @transform_9(%arg0: i32) -> (i32, i32) {
    %c0_i32 = arith.constant 0 : i32
    %c0_i32_0 = arith.constant 0 : i32
    %c0_i32_1 = arith.constant 0 : i32
    return %c0_i32, %c0_i32_0 : i32, i32
  }
  func.func @transform_10(%arg0: i32) -> (i32, i32, i32) {
    %c0_i32 = arith.constant 0 : i32
    %c0_i32_0 = arith.constant 0 : i32
    %c0_i32_1 = arith.constant 0 : i32
    %c0_i32_2 = arith.constant 0 : i32
    return %c0_i32, %c0_i32_0, %c0_i32_1 : i32, i32, i32
  }
  func.func @transform_11(%arg0: i32) -> (i32, i32) {
    %c0_i32 = arith.constant 0 : i32
    %c0_i32_0 = arith.constant 0 : i32
    %c0_i32_1 = arith.constant 0 : i32
    return %c0_i32, %c0_i32_0 : i32, i32
  }
  func.func @transform_12(%arg0: i32) -> (i32, i32, i32) {
    %c0_i32 = arith.constant 0 : i32
    %c0_i32_0 = arith.constant 0 : i32
    %c0_i32_1 = arith.constant 0 : i32
    %c0_i32_2 = arith.constant 0 : i32
    return %c0_i32, %c0_i32_0, %c0_i32_1 : i32, i32, i32
  }
  func.func @transform_13(%arg0: i32) -> (i32, i32) {
    %c0_i32 = arith.constant 0 : i32
    %c0_i32_0 = arith.constant 0 : i32
    %c0_i32_1 = arith.constant 0 : i32
    return %c0_i32, %c0_i32_0 : i32, i32
  }
  func.func @transform_14(%arg0: i32) -> (i32, i32, i32, i32) {
    %c0_i32 = arith.constant 0 : i32
    %c0_i32_0 = arith.constant 0 : i32
    %c0_i32_1 = arith.constant 0 : i32
    %c0_i32_2 = arith.constant 0 : i32
    return %arg0, %c0_i32, %c0_i32_0, %c0_i32_1 : i32, i32, i32, i32
  }
}

</mosaic_0001>

<llo_original>
// kernel: tile.43
$region0: #{tile.43}
  #allocation0 [shape = 's32[1]{0}', space=sflag, size = 0x4, scoped, tag = 'scoped memory for tile.43']
  %s0 = inlined_call_operand.vmem [shape: f32[8], index: 0, kind: input, shape index: {}]
  %s1 = inlined_call_operand.vmem [shape: f32[32,8], index: 1, kind: output, shape index: {}]
  // Predicated region
  $region2: #{tile.43} parent=0 // pred_check
    _
  $region3: #{tile.43} parent=0 // pred_check_branch
    %3 = sbr.rel (0) target = $region5
  $region4: #{tile.43} parent=0 // pred_region
    _
  $region5: #{tile.43} parent=0 // pred_fallthru
    _
  %v4 = vld [vmem:[%s0] ss:$0 sm:$0xff]
  %5 = vst [vmem:[%s1] sm:$0xff] %v4
  %s6 = scalar_lea.vmem %s1, 8
  %7 = vst [vmem:[%s6] sm:$0xff] %v4
  %s8 = scalar_lea.vmem %s1, 16
  %9 = vst [vmem:[%s8] sm:$0xff] %v4
  %s10 = scalar_lea.vmem %s1, 24
  %11 = vst [vmem:[%s10] sm:$0xff] %v4

// kernel: tile.44
$region0: #{tile.44}
  %s0 = inlined_call_operand.vmem [shape: f32[32,8], index: 0, kind: input, shape index: {}]
  %s1 = inlined_call_operand.vmem [shape: f32[1,256], index: 1, kind: output, shape index: {}]
  $region1: #{tile.44} parent=0
    #allocation0 [shape = 'u8[8192]{0}', space=vmem, size = 0x2000, scoped, tag = 'scoped mem for output reshape']
    %s2 = smov 3
    %v3 = vld [vmem:[%s0] ss:$16 sm:%s2]
    %vm4 = vcmask 64512
    %5 = vst.msk [vmem:[#allocation0] ss:$8 sm:$0x3] %vm4, %v3
    %s6 = scalar_lea.vmem %s0, 15
    %s7 = smov 3
    %v8 = vld [vmem:[%s6] ss:$16 sm:%s7]
    %9 = vrot.lane.b32.xlu0 %v8, 120
    %v10 = vpop.permute.xlu0 %9
    %vm11 = vcmask 1048512
    %12 = vst.msk [vmem:[#allocation0] ss:$8 sm:$0x3] %vm11, %v10
    %s13 = scalar_lea.vmem %s0, 14
    %s14 = smov 3
    %v15 = vld [vmem:[%s13] ss:$16 sm:%s14]
    %16 = vrot.lane.b32.xlu0 %v15, 112
    %v17 = vpop.permute.xlu0 %16
    %vm18 = vcmask 982912
    %19 = vst.msk [vmem:[#allocation0] ss:$8 sm:$0x3] %vm18, %v17
    %s20 = scalar_lea.vmem %s0, 13
    %s21 = smov 3
    %v22 = vld [vmem:[%s20] ss:$16 sm:%s21]
    %23 = vrot.lane.b32.xlu0 %v22, 104
    %v24 = vpop.permute.xlu0 %23
    %vm25 = vcmask 917312
    %26 = vst.msk [vmem:[#allocation0] ss:$8 sm:$0x3] %vm25, %v24
    %s27 = scalar_lea.vmem %s0, 12
    %s28 = smov 3
    %v29 = vld [vmem:[%s27] ss:$16 sm:%s28]
    %30 = vrot.lane.b32.xlu0 %v29, 96
    %v31 = vpop.permute.xlu0 %30
    %vm32 = vcmask 851712
    %33 = vst.msk [vmem:[#allocation0] ss:$8 sm:$0x3] %vm32, %v31
    %s34 = scalar_lea.vmem %s0, 11
    %s35 = smov 3
    %v36 = vld [vmem:[%s34] ss:$16 sm:%s35]
    %37 = vrot.lane.b32.xlu0 %v36, 88
    %v38 = vpop.permute.xlu0 %37
    %vm39 = vcmask 786112
    %40 = vst.msk [vmem:[#allocation0] ss:$8 sm:$0x3] %vm39, %v38
    %s41 = scalar_lea.vmem %s0, 10
    %s42 = smov 3
    %v43 = vld [vmem:[%s41] ss:$16 sm:%s42]
    %44 = vrot.lane.b32.xlu0 %v43, 80
    %v45 = vpop.permute.xlu0 %44
    %vm46 = vcmask 720512
    %47 = vst.msk [vmem:[#allocation0] ss:$8 sm:$0x3] %vm46, %v45
    %s48 = scalar_lea.vmem %s0, 9
    %s49 = smov 3
    %v50 = vld [vmem:[%s48] ss:$16 sm:%s49]
    %51 = vrot.lane.b32.xlu0 %v50, 72
    %v52 = vpop.permute.xlu0 %51
    %vm53 = vcmask 654912
    %54 = vst.msk [vmem:[#allocation0] ss:$8 sm:$0x3] %vm53, %v52
    %s55 = scalar_lea.vmem %s0, 8
    %s56 = smov 3
    %v57 = vld [vmem:[%s55] ss:$16 sm:%s56]
    %58 = vrot.lane.b32.xlu0 %v57, 64
    %v59 = vpop.permute.xlu0 %58
    %vm60 = vcmask 589312
    %61 = vst.msk [vmem:[#allocation0] ss:$8 sm:$0x3] %vm60, %v59
    %s62 = scalar_lea.vmem %s0, 7
    %s63 = smov 3
    %v64 = vld [vmem:[%s62] ss:$16 sm:%s63]
    %65 = vrot.lane.b32.xlu0 %v64, 56
    %v66 = vpop.permute.xlu0 %65
    %vm67 = vcmask 523712
    %68 = vst.msk [vmem:[#allocation0] ss:$8 sm:$0x3] %vm67, %v66
    %s69 = scalar_lea.vmem %s0, 6
    %s70 = smov 3
    %v71 = vld [vmem:[%s69] ss:$16 sm:%s70]
    %72 = vrot.lane.b32.xlu0 %v71, 48
    %v73 = vpop.permute.xlu0 %72
    %vm74 = vcmask 458112
    %75 = vst.msk [vmem:[#allocation0] ss:$8 sm:$0x3] %vm74, %v73
    %s76 = scalar_lea.vmem %s0, 5
    %s77 = smov 3
    %v78 = vld [vmem:[%s76] ss:$16 sm:%s77]
    %79 = vrot.lane.b32.xlu0 %v78, 40
    %v80 = vpop.permute.xlu0 %79
    %vm81 = vcmask 392512
    %82 = vst.msk [vmem:[#allocation0] ss:$8 sm:$0x3] %vm81, %v80
    %s83 = scalar_lea.vmem %s0, 4
    %s84 = smov 3
    %v85 = vld [vmem:[%s83] ss:$16 sm:%s84]
    %86 = vrot.lane.b32.xlu0 %v85, 32
    %v87 = vpop.permute.xlu0 %86
    %vm88 = vcmask 326912
    %89 = vst.msk [vmem:[#allocation0] ss:$8 sm:$0x3] %vm88, %v87
    %s90 = scalar_lea.vmem %s0, 3
    %s91 = smov 3
    %v92 = vld [vmem:[%s90] ss:$16 sm:%s91]
    %93 = vrot.lane.b32.xlu0 %v92, 24
    %v94 = vpop.permute.xlu0 %93
    %vm95 = vcmask 261312
    %96 = vst.msk [vmem:[#allocation0] ss:$8 sm:$0x3] %vm95, %v94
    %s97 = scalar_lea.vmem %s0, 2
    %s98 = smov 3
    %v99 = vld [vmem:[%s97] ss:$16 sm:%s98]
    %100 = vrot.lane.b32.xlu0 %v99, 16
    %v101 = vpop.permute.xlu0 %100
    %vm102 = vcmask 195712
    %103 = vst.msk [vmem:[#allocation0] ss:$8 sm:$0x3] %vm102, %v101
    %s104 = scalar_lea.vmem %s0, 1
    %s105 = smov 3
    %v106 = vld [vmem:[%s104] ss:$16 sm:%s105]
    %107 = vrot.lane.b32.xlu0 %v106, 8
    %v108 = vpop.permute.xlu0 %107
    %vm109 = vcmask 130112
    %110 = vst.msk [vmem:[#allocation0] ss:$8 sm:$0x3] %vm109, %v108
    %s112 = ssub.s32 2, 1
    %v113 = vld [vmem:[#allocation0] sm:%s112]
    %s115 = ssub.s32 2, 1
    %116 = vst [vmem:[%s1] sm:%s115] %v113
    %s117 = scalar_lea.vmem [#allocation0], 8
    %v118 = vld [vmem:[%s117] sm:%s112]
    %s120 = ssub.s32 2, 1
    %s121 = scalar_lea.vmem %s1, 1
    %122 = vst [vmem:[%s121] sm:%s120] %v118

// kernel: tile.33
$region0: #{tile.33}
  #allocation0 [shape = 's32[1]{0}', space=sflag, size = 0x4, scoped, tag = 'scoped memory for tile.33']
  %s0 = inlined_call_operand.vmem [shape: f32[8], index: 0, kind: input, shape index: {}]
  %s1 = inlined_call_operand.vmem [shape: f32[16,8], index: 1, kind: output, shape index: {}]
  // Predicated region
  $region2: #{tile.33} parent=0 // pred_check
    _
  $region3: #{tile.33} parent=0 // pred_check_branch
    %3 = sbr.rel (0) target = $region5
  $region4: #{tile.33} parent=0 // pred_region
    _
  $region5: #{tile.33} parent=0 // pred_fallthru
    _
  %v4 = vld [vmem:[%s0] ss:$0 sm:$0xff]
  %5 = vst [vmem:[%s1] sm:$0xff] %v4
  %s6 = scalar_lea.vmem %s1, 8
  %7 = vst [vmem:[%s6] sm:$0xff] %v4

// kernel: tile.34
$region0: #{tile.34}
  %s0 = inlined_call_operand.vmem [shape: f32[16,8], index: 0, kind: input, shape index: {}]
  %s1 = inlined_call_operand.vmem [shape: f32[1,128], index: 1, kind: output, shape index: {}]
  $region1: #{tile.34} parent=0
    #allocation0 [shape = 'u8[4096]{0}', space=vmem, size = 0x1000, scoped, tag = 'scoped mem for output reshape']
    %v2 = vld [vmem:[%s0] sm:$0x1]
    %vm3 = vcmask 64512
    %4 = vst.msk [vmem:[#allocation0] sm:$0x1] %vm3, %v2
    %s5 = scalar_lea.vmem %s0, 15
    %v6 = vld [vmem:[%s5] sm:$0x1]
    %7 = vrot.lane.b32.xlu0 %v6, 120
    %v8 = vpop.permute.xlu0 %7
    %vm9 = vcmask 1048512
    %10 = vst.msk [vmem:[#allocation0] sm:$0x1] %vm9, %v8
    %s11 = scalar_lea.vmem %s0, 14
    %v12 = vld [vmem:[%s11] sm:$0x1]
    %13 = vrot.lane.b32.xlu0 %v12, 112
    %v14 = vpop.permute.xlu0 %13
    %vm15 = vcmask 982912
    %16 = vst.msk [vmem:[#allocation0] sm:$0x1] %vm15, %v14
    %s17 = scalar_lea.vmem %s0, 13
    %v18 = vld [vmem:[%s17] sm:$0x1]
    %19 = vrot.lane.b32.xlu0 %v18, 104
    %v20 = vpop.permute.xlu0 %19
    %vm21 = vcmask 917312
    %22 = vst.msk [vmem:[#allocation0] sm:$0x1] %vm21, %v20
    %s23 = scalar_lea.vmem %s0, 12
    %v24 = vld [vmem:[%s23] sm:$0x1]
    %25 = vrot.lane.b32.xlu0 %v24, 96
    %v26 = vpop.permute.xlu0 %25
    %vm27 = vcmask 851712
    %28 = vst.msk [vmem:[#allocation0] sm:$0x1] %vm27, %v26
    %s29 = scalar_lea.vmem %s0, 11
    %v30 = vld [vmem:[%s29] sm:$0x1]
    %31 = vrot.lane.b32.xlu0 %v30, 88
    %v32 = vpop.permute.xlu0 %31
    %vm33 = vcmask 786112
    %34 = vst.msk [vmem:[#allocation0] sm:$0x1] %vm33, %v32
    %s35 = scalar_lea.vmem %s0, 10
    %v36 = vld [vmem:[%s35] sm:$0x1]
    %37 = vrot.lane.b32.xlu0 %v36, 80
    %v38 = vpop.permute.xlu0 %37
    %vm39 = vcmask 720512
    %40 = vst.msk [vmem:[#allocation0] sm:$0x1] %vm39, %v38
    %s41 = scalar_lea.vmem %s0, 9
    %v42 = vld [vmem:[%s41] sm:$0x1]
    %43 = vrot.lane.b32.xlu0 %v42, 72
    %v44 = vpop.permute.xlu0 %43
    %vm45 = vcmask 654912
    %46 = vst.msk [vmem:[#allocation0] sm:$0x1] %vm45, %v44
    %s47 = scalar_lea.vmem %s0, 8
    %v48 = vld [vmem:[%s47] sm:$0x1]
    %49 = vrot.lane.b32.xlu0 %v48, 64
    %v50 = vpop.permute.xlu0 %49
    %vm51 = vcmask 589312
    %52 = vst.msk [vmem:[#allocation0] sm:$0x1] %vm51, %v50
    %s53 = scalar_lea.vmem %s0, 7
    %v54 = vld [vmem:[%s53] sm:$0x1]
    %55 = vrot.lane.b32.xlu0 %v54, 56
    %v56 = vpop.permute.xlu0 %55
    %vm57 = vcmask 523712
    %58 = vst.msk [vmem:[#allocation0] sm:$0x1] %vm57, %v56
    %s59 = scalar_lea.vmem %s0, 6
    %v60 = vld [vmem:[%s59] sm:$0x1]
    %61 = vrot.lane.b32.xlu0 %v60, 48
    %v62 = vpop.permute.xlu0 %61
    %vm63 = vcmask 458112
    %64 = vst.msk [vmem:[#allocation0] sm:$0x1] %vm63, %v62
    %s65 = scalar_lea.vmem %s0, 5
    %v66 = vld [vmem:[%s65] sm:$0x1]
    %67 = vrot.lane.b32.xlu0 %v66, 40
    %v68 = vpop.permute.xlu0 %67
    %vm69 = vcmask 392512
    %70 = vst.msk [vmem:[#allocation0] sm:$0x1] %vm69, %v68
    %s71 = scalar_lea.vmem %s0, 4
    %v72 = vld [vmem:[%s71] sm:$0x1]
    %73 = vrot.lane.b32.xlu0 %v72, 32
    %v74 = vpop.permute.xlu0 %73
    %vm75 = vcmask 326912
    %76 = vst.msk [vmem:[#allocation0] sm:$0x1] %vm75, %v74
    %s77 = scalar_lea.vmem %s0, 3
    %v78 = vld [vmem:[%s77] sm:$0x1]
    %79 = vrot.lane.b32.xlu0 %v78, 24
    %v80 = vpop.permute.xlu0 %79
    %vm81 = vcmask 261312
    %82 = vst.msk [vmem:[#allocation0] sm:$0x1] %vm81, %v80
    %s83 = scalar_lea.vmem %s0, 2
    %v84 = vld [vmem:[%s83] sm:$0x1]
    %85 = vrot.lane.b32.xlu0 %v84, 16
    %v86 = vpop.permute.xlu0 %85
    %vm87 = vcmask 195712
    %88 = vst.msk [vmem:[#allocation0] sm:$0x1] %vm87, %v86
    %s89 = scalar_lea.vmem %s0, 1
    %v90 = vld [vmem:[%s89] sm:$0x1]
    %91 = vrot.lane.b32.xlu0 %v90, 8
    %v92 = vpop.permute.xlu0 %91
    %vm93 = vcmask 130112
    %94 = vst.msk [vmem:[#allocation0] sm:$0x1] %vm93, %v92
    %s96 = ssub.s32 2, 1
    %v97 = vld [vmem:[#allocation0] sm:%s96]
    %s99 = ssub.s32 2, 1
    %100 = vst [vmem:[%s1] sm:%s99] %v97

// kernel: resup_forward.1
$region0: #{resup_forward.1}
  #allocation0 [shape = 'u32[]', space=smem, size = 0x4, offset = 0x4, fixed_abs, tag = 'smem constant byte address 0x4 - core index']
  #allocation1 [shape = 'u32[72,128]{1,0:T(1,128)}', space=vmem, size = 0x9000, scoped, tag = 'internal scratch']
  %s0 = inlined_call_operand.vmem [shape: f32[2,16,128], index: 0, kind: input, shape index: {}]
  %s1 = inlined_call_operand.vmem [shape: f32[2,16,16], index: 1, kind: input, shape index: {}]
  %s2 = inlined_call_operand.vmem [shape: f32[3,128,128], index: 2, kind: input, shape index: {}]
  %s3 = inlined_call_operand.vmem [shape: f32[1,128], index: 3, kind: input, shape index: {}]
  %s4 = inlined_call_operand.vmem [shape: f32[3,128,128], index: 4, kind: input, shape index: {}]
  %s5 = inlined_call_operand.vmem [shape: f32[1,128], index: 5, kind: input, shape index: {}]
  %s6 = inlined_call_operand.vmem [shape: f32[3,128,256], index: 6, kind: input, shape index: {}]
  %s7 = inlined_call_operand.vmem [shape: f32[1,256], index: 7, kind: input, shape index: {}]
  %s8 = inlined_call_operand.vmem [shape: f32[3,256,256], index: 8, kind: input, shape index: {}]
  %s9 = inlined_call_operand.vmem [shape: f32[1,256], index: 9, kind: input, shape index: {}]
  %s10 = inlined_call_operand.vmem [shape: f32[3,128,128], index: 10, kind: input, shape index: {}]
  %s11 = inlined_call_operand.vmem [shape: f32[1,128], index: 11, kind: input, shape index: {}]
  %s12 = inlined_call_operand.vmem [shape: f32[3,128,256], index: 12, kind: input, shape index: {}]
  %s13 = inlined_call_operand.vmem [shape: f32[1,256], index: 13, kind: input, shape index: {}]
  %s14 = inlined_call_operand.vmem [shape: f32[2,2,16,256], index: 14, kind: output, shape index: {}]
  %s15 = sld [smem:[#allocation0]]
  $region89: #{resup_forward.1} parent=0
    _
  %s17 = ssub.s32 1, %s15
  %s18 = scalar_select 0, %s17, %s15
  loop: start=0, step=1, limit=4
  $region2: #{resup_forward.1} parent=0 // loop_pre_header
    _
  $region3: #{resup_forward.1} parent=0 // loop_header
    %s20 = sphi 0, %s24
    %p21 = scmp.ge.s32.totalorder %s20, 4
    %s30 = sphi 0, %s32
    %s33 = sphi 0, %s30
    %s34 = sphi 0, %s33
    %s50 = sphi 0, %s34
    %s54 = sphi 0, %s54
    %s56 = sphi 0, %s54
    %s57 = sphi 0, %s56
    %s71 = sphi 0, %s57
    %s75 = sphi 0, %s75
    %s77 = sphi 0, %s75
    %s78 = sphi 0, %s77
    %s92 = sphi 0, %s78
    %s96 = sphi 0, %s96
    %s98 = sphi 0, %s96
    %s99 = sphi 0, %s98
    %s113 = sphi 0, %s99
    %s117 = sphi 0, %s117
    %s119 = sphi 0, %s117
    %s120 = sphi 0, %s119
    %s134 = sphi 0, %s120
    %s138 = sphi 0, %s138
    %s140 = sphi 0, %s138
    %s141 = sphi 0, %s140
    %s155 = sphi 0, %s141
    %s159 = sphi 0, %s159
    %s161 = sphi 0, %s159
    %s162 = sphi 0, %s161
    %s176 = sphi 0, %s162
    %s180 = sphi 0, %s180
    %s182 = sphi 0, %s180
    %s183 = sphi 0, %s182
    %s197 = sphi 0, %s183
    %s201 = sphi 0, %s201
    %s203 = sphi 0, %s201
    %s204 = sphi 0, %s203
    %s218 = sphi 0, %s204
    %s222 = sphi 0, %s222
    %s224 = sphi 0, %s222
    %s225 = sphi 0, %s224
    %s239 = sphi 0, %s225
    %s243 = sphi 0, %s243
    %s245 = sphi 0, %s243
    %s246 = sphi 0, %s245
    %s260 = sphi 0, %s246
    %s264 = sphi 0, %s264
    %s266 = sphi 0, %s264
    %s267 = sphi 0, %s266
    %s281 = sphi 0, %s267
    %s285 = sphi 0, %s285
    %s287 = sphi 0, %s285
    %s288 = sphi 0, %s287
    %s302 = sphi 0, %s288
    %s306 = sphi 0, %s306
    %s308 = sphi 0, %s306
    %s309 = sphi 0, %s308
    %s323 = sphi 0, %s309
    %s329 = sphi 0, %s331
    %s332 = sphi 0, %s329
    %s333 = sphi 0, %s332
    %s349 = sphi 0, %s333
  $region4: #{resup_forward.1} parent=0 // loop_header_branch
    %23 = sbr.rel (%p21) target = $region8
  $region5: #{resup_forward.1} parent=0 // loop_body
    %s25 = ssub.s32 %s20, 1
    %s26 = ssub.s32 %s20, 2
    %s27 = sadd.s32 %s20, 1
    %s28 = ssub.s32 %s20, %s27
    %p29 = scmp.eq.s32.totalorder %s28, 0
    %s31 = sadd.s32 %s30, 1
    %s32 = scalar_select %p29, %s30, %s31
    %p35 = pneg %p29
    %p36 = scmp.eq.s32.totalorder %s20, 1
    %p37 = por %p35, %p36
    %p38 = scmp.ne.s32.totalorder %s30, %s33
    %p39 = scmp.eq.s32.totalorder %s20, 0
    %p40 = por %p38, %p39
    %p41 = scmp.ne.s32.totalorder %s30, %s33
    %p42 = scmp.eq.s32.totalorder %s25, 1
    %p43 = por %p41, %p42
    %p44 = scmp.ne.s32.totalorder %s33, %s34
    %p45 = scmp.eq.s32.totalorder %s25, 0
    %p46 = por %p44, %p45
    %p47 = scmp.ne.s32.totalorder %s33, %s34
    %p48 = scmp.eq.s32.totalorder %s26, 1
    %p49 = por %p47, %p48
    %p51 = scmp.ne.s32.totalorder %s34, %s50
    %p52 = scmp.eq.s32.totalorder %s26, 0
    %p53 = por %p51, %p52
    %s55 = sadd.s32 %s54, 1
    %p58 = scmp.eq.s32.totalorder %s20, 1
    %p59 = scmp.ne.s32.totalorder %s54, %s56
    %p60 = scmp.eq.s32.totalorder %s20, 0
    %p61 = por %p59, %p60
    %p62 = scmp.ne.s32.totalorder %s54, %s56
    %p63 = scmp.eq.s32.totalorder %s25, 1
    %p64 = por %p62, %p63
    %p65 = scmp.ne.s32.totalorder %s56, %s57
    %p66 = scmp.eq.s32.totalorder %s25, 0
    %p67 = por %p65, %p66
    %p68 = scmp.ne.s32.totalorder %s56, %s57
    %p69 = scmp.eq.s32.totalorder %s26, 1
    %p70 = por %p68, %p69
    %p72 = scmp.ne.s32.totalorder %s57, %s71
    %p73 = scmp.eq.s32.totalorder %s26, 0
    %p74 = por %p72, %p73
    %s76 = sadd.s32 %s75, 1
    %p79 = scmp.eq.s32.totalorder %s20, 1
    %p80 = scmp.ne.s32.totalorder %s75, %s77
    %p81 = scmp.eq.s32.totalorder %s20, 0
    %p82 = por %p80, %p81
    %p83 = scmp.ne.s32.totalorder %s75, %s77
    %p84 = scmp.eq.s32.totalorder %s25, 1
    %p85 = por %p83, %p84
    %p86 = scmp.ne.s32.totalorder %s77, %s78
    %p87 = scmp.eq.s32.totalorder %s25, 0
    %p88 = por %p86, %p87
    %p89 = scmp.ne.s32.totalorder %s77, %s78
    %p90 = scmp.eq.s32.totalorder %s26, 1
    %p91 = por %p89, %p90
    %p93 = scmp.ne.s32.totalorder %s78, %s92
    %p94 = scmp.eq.s32.totalorder %s26, 0
    %p95 = por %p93, %p94
    %s97 = sadd.s32 %s96, 1
    %p100 = scmp.eq.s32.totalorder %s20, 1
    %p101 = scmp.ne.s32.totalorder %s96, %s98
    %p102 = scmp.eq.s32.totalorder %s20, 0
    %p103 = por %p101, %p102
    %p104 = scmp.ne.s32.totalorder %s96, %s98
    %p105 = scmp.eq.s32.totalorder %s25, 1
    %p106 = por %p104, %p105
    %p107 = scmp.ne.s32.totalorder %s98, %s99
    %p108 = scmp.eq.s32.totalorder %s25, 0
    %p109 = por %p107, %p108
    %p110 = scmp.ne.s32.totalorder %s98, %s99
    %p111 = scmp.eq.s32.totalorder %s26, 1
    %p112 = por %p110, %p111
    %p114 = scmp.ne.s32.totalorder %s99, %s113
    %p115 = scmp.eq.s32.totalorder %s26, 0
    %p116 = por %p114, %p115
    %s118 = sadd.s32 %s117, 1
    %p121 = scmp.eq.s32.totalorder %s20, 1
    %p122 = scmp.ne.s32.totalorder %s117, %s119
    %p123 = scmp.eq.s32.totalorder %s20, 0
    %p124 = por %p122, %p123
    %p125 = scmp.ne.s32.totalorder %s117, %s119
    %p126 = scmp.eq.s32.totalorder %s25, 1
    %p127 = por %p125, %p126
    %p128 = scmp.ne.s32.totalorder %s119, %s120
    %p129 = scmp.eq.s32.totalorder %s25, 0
    %p130 = por %p128, %p129
    %p131 = scmp.ne.s32.totalorder %s119, %s120
    %p132 = scmp.eq.s32.totalorder %s26, 1
    %p133 = por %p131, %p132
    %p135 = scmp.ne.s32.totalorder %s120, %s134
    %p136 = scmp.eq.s32.totalorder %s26, 0
    %p137 = por %p135, %p136
    %s139 = sadd.s32 %s138, 1
    %p142 = scmp.eq.s32.totalorder %s20, 1
    %p143 = scmp.ne.s32.totalorder %s138, %s140
    %p144 = scmp.eq.s32.totalorder %s20, 0
    %p145 = por %p143, %p144
    %p146 = scmp.ne.s32.totalorder %s138, %s140
    %p147 = scmp.eq.s32.totalorder %s25, 1
    %p148 = por %p146, %p147
    %p149 = scmp.ne.s32.totalorder %s140, %s141
    %p150 = scmp.eq.s32.totalorder %s25, 0
    %p151 = por %p149, %p150
    %p152 = scmp.ne.s32.totalorder %s140, %s141
    %p153 = scmp.eq.s32.totalorder %s26, 1
    %p154 = por %p152, %p153
    %p156 = scmp.ne.s32.totalorder %s141, %s155
    %p157 = scmp.eq.s32.totalorder %s26, 0
    %p158 = por %p156, %p157
    %s160 = sadd.s32 %s159, 1
    %p163 = scmp.eq.s32.totalorder %s20, 1
    %p164 = scmp.ne.s32.totalorder %s159, %s161
    %p165 = scmp.eq.s32.totalorder %s20, 0
    %p166 = por %p164, %p165
    %p167 = scmp.ne.s32.totalorder %s159, %s161
    %p168 = scmp.eq.s32.totalorder %s25, 1
    %p169 = por %p167, %p168
    %p170 = scmp.ne.s32.totalorder %s161, %s162
    %p171 = scmp.eq.s32.totalorder %s25, 0
    %p172 = por %p170, %p171
    %p173 = scmp.ne.s32.totalorder %s161, %s162
    %p174 = scmp.eq.s32.totalorder %s26, 1
    %p175 = por %p173, %p174
    %p177 = scmp.ne.s32.totalorder %s162, %s176
    %p178 = scmp.eq.s32.totalorder %s26, 0
    %p179 = por %p177, %p178
    %s181 = sadd.s32 %s180, 1
    %p184 = scmp.eq.s32.totalorder %s20, 1
    %p185 = scmp.ne.s32.totalorder %s180, %s182
    %p186 = scmp.eq.s32.totalorder %s20, 0
    %p187 = por %p185, %p186
    %p188 = scmp.ne.s32.totalorder %s180, %s182
    %p189 = scmp.eq.s32.totalorder %s25, 1
    %p190 = por %p188, %p189
    %p191 = scmp.ne.s32.totalorder %s182, %s183
    %p192 = scmp.eq.s32.totalorder %s25, 0
    %p193 = por %p191, %p192
    %p194 = scmp.ne.s32.totalorder %s182, %s183
    %p195 = scmp.eq.s32.totalorder %s26, 1
    %p196 = por %p194, %p195
    %p198 = scmp.ne.s32.totalorder %s183, %s197
    %p199 = scmp.eq.s32.totalorder %s26, 0
    %p200 = por %p198, %p199
    %s202 = sadd.s32 %s201, 1
    %p205 = scmp.eq.s32.totalorder %s20, 1
    %p206 = scmp.ne.s32.totalorder %s201, %s203
    %p207 = scmp.eq.s32.totalorder %s20, 0
    %p208 = por %p206, %p207
    %p209 = scmp.ne.s32.totalorder %s201, %s203
    %p210 = scmp.eq.s32.totalorder %s25, 1
    %p211 = por %p209, %p210
    %p212 = scmp.ne.s32.totalorder %s203, %s204
    %p213 = scmp.eq.s32.totalorder %s25, 0
    %p214 = por %p212, %p213
    %p215 = scmp.ne.s32.totalorder %s203, %s204
    %p216 = scmp.eq.s32.totalorder %s26, 1
    %p217 = por %p215, %p216
    %p219 = scmp.ne.s32.totalorder %s204, %s218
    %p220 = scmp.eq.s32.totalorder %s26, 0
    %p221 = por %p219, %p220
    %s223 = sadd.s32 %s222, 1
    %p226 = scmp.eq.s32.totalorder %s20, 1
    %p227 = scmp.ne.s32.totalorder %s222, %s224
    %p228 = scmp.eq.s32.totalorder %s20, 0
    %p229 = por %p227, %p228
    %p230 = scmp.ne.s32.totalorder %s222, %s224
    %p231 = scmp.eq.s32.totalorder %s25, 1
    %p232 = por %p230, %p231
    %p233 = scmp.ne.s32.totalorder %s224, %s225
    %p234 = scmp.eq.s32.totalorder %s25, 0
    %p235 = por %p233, %p234
    %p236 = scmp.ne.s32.totalorder %s224, %s225
    %p237 = scmp.eq.s32.totalorder %s26, 1
    %p238 = por %p236, %p237
    %p240 = scmp.ne.s32.totalorder %s225, %s239
    %p241 = scmp.eq.s32.totalorder %s26, 0
    %p242 = por %p240, %p241
    %s244 = sadd.s32 %s243, 1
    %p247 = scmp.eq.s32.totalorder %s20, 1
    %p248 = scmp.ne.s32.totalorder %s243, %s245
    %p249 = scmp.eq.s32.totalorder %s20, 0
    %p250 = por %p248, %p249
    %p251 = scmp.ne.s32.totalorder %s243, %s245
    %p252 = scmp.eq.s32.totalorder %s25, 1
    %p253 = por %p251, %p252
    %p254 = scmp.ne.s32.totalorder %s245, %s246
    %p255 = scmp.eq.s32.totalorder %s25, 0
    %p256 = por %p254, %p255
    %p257 = scmp.ne.s32.totalorder %s245, %s246
    %p258 = scmp.eq.s32.totalorder %s26, 1
    %p259 = por %p257, %p258
    %p261 = scmp.ne.s32.totalorder %s246, %s260
    %p262 = scmp.eq.s32.totalorder %s26, 0
    %p263 = por %p261, %p262
    %s265 = sadd.s32 %s264, 1
    %p268 = scmp.eq.s32.totalorder %s20, 1
    %p269 = scmp.ne.s32.totalorder %s264, %s266
    %p270 = scmp.eq.s32.totalorder %s20, 0
    %p271 = por %p269, %p270
    %p272 = scmp.ne.s32.totalorder %s264, %s266
    %p273 = scmp.eq.s32.totalorder %s25, 1
    %p274 = por %p272, %p273
    %p275 = scmp.ne.s32.totalorder %s266, %s267
    %p276 = scmp.eq.s32.totalorder %s25, 0
    %p277 = por %p275, %p276
    %p278 = scmp.ne.s32.totalorder %s266, %s267
    %p279 = scmp.eq.s32.totalorder %s26, 1
    %p280 = por %p278, %p279
    %p282 = scmp.ne.s32.totalorder %s267, %s281
    %p283 = scmp.eq.s32.totalorder %s26, 0
    %p284 = por %p282, %p283
    %s286 = sadd.s32 %s285, 1
    %p289 = scmp.eq.s32.totalorder %s20, 1
    %p290 = scmp.ne.s32.totalorder %s285, %s287
    %p291 = scmp.eq.s32.totalorder %s20, 0
    %p292 = por %p290, %p291
    %p293 = scmp.ne.s32.totalorder %s285, %s287
    %p294 = scmp.eq.s32.totalorder %s25, 1
    %p295 = por %p293, %p294
    %p296 = scmp.ne.s32.totalorder %s287, %s288
    %p297 = scmp.eq.s32.totalorder %s25, 0
    %p298 = por %p296, %p297
    %p299 = scmp.ne.s32.totalorder %s287, %s288
    %p300 = scmp.eq.s32.totalorder %s26, 1
    %p301 = por %p299, %p300
    %p303 = scmp.ne.s32.totalorder %s288, %s302
    %p304 = scmp.eq.s32.totalorder %s26, 0
    %p305 = por %p303, %p304
    %s307 = sadd.s32 %s306, 1
    %p310 = scmp.eq.s32.totalorder %s20, 1
    %p311 = scmp.ne.s32.totalorder %s306, %s308
    %p312 = scmp.eq.s32.totalorder %s20, 0
    %p313 = por %p311, %p312
    %p314 = scmp.ne.s32.totalorder %s306, %s308
    %p315 = scmp.eq.s32.totalorder %s25, 1
    %p316 = por %p314, %p315
    %p317 = scmp.ne.s32.totalorder %s308, %s309
    %p318 = scmp.eq.s32.totalorder %s25, 0
    %p319 = por %p317, %p318
    %p320 = scmp.ne.s32.totalorder %s308, %s309
    %p321 = scmp.eq.s32.totalorder %s26, 1
    %p322 = por %p320, %p321
    %p324 = scmp.ne.s32.totalorder %s309, %s323
    %p325 = scmp.eq.s32.totalorder %s26, 0
    %p326 = por %p324, %p325
    %s327 = ssub.s32 %s20, %s27
    %p328 = scmp.eq.s32.totalorder %s327, 0
    %s330 = sadd.s32 %s329, 1
    %s331 = scalar_select %p328, %s329, %s330
    %p334 = pneg %p328
    %p335 = scmp.eq.s32.totalorder %s20, 1
    %p336 = por %p334, %p335
    %p337 = scmp.ne.s32.totalorder %s329, %s332
    %p338 = scmp.eq.s32.totalorder %s20, 0
    %p339 = por %p337, %p338
    %p340 = scmp.ne.s32.totalorder %s329, %s332
    %p341 = scmp.eq.s32.totalorder %s25, 1
    %p342 = por %p340, %p341
    %p343 = scmp.ne.s32.totalorder %s332, %s333
    %p344 = scmp.eq.s32.totalorder %s25, 0
    %p345 = por %p343, %p344
    %p346 = scmp.ne.s32.totalorder %s332, %s333
    %p347 = scmp.eq.s32.totalorder %s26, 1
    %p348 = por %p346, %p347
    %p350 = scmp.ne.s32.totalorder %s333, %s349
    %p351 = scmp.eq.s32.totalorder %s26, 0
    %p352 = por %p350, %p351
    %p353 = scmp.le.s32.totalorder 1, %s20
    %p354 = scmp.lt.s32.totalorder %s20, 3
    %p355 = pnand %p353, %p354
    %p356 = pneg %p355
    // Predicated region
    $region9: #{resup_forward.1} parent=5 // pred_check
      _
    $region10: #{resup_forward.1} parent=5 // pred_check_branch
      %358 = sbr.rel (%p355) target = $region12
    $region11: #{resup_forward.1} parent=5 // pred_region
      %s359 = ssub.s32 %s20, 1
      // Predicated region
      $region13: #{resup_forward.1} parent=11 // pred_check
        %p360 = pneg %p67
      $region14: #{resup_forward.1} parent=11 // pred_check_branch
        %362 = sbr.rel (%p360) target = $region16
      $region15: #{resup_forward.1} parent=11 // pred_region
        _
      $region16: #{resup_forward.1} parent=11 // pred_fallthru
        _
      // Predicated region
      $region17: #{resup_forward.1} parent=11 // pred_check
        %p363 = pneg %p88
      $region18: #{resup_forward.1} parent=11 // pred_check_branch
        %365 = sbr.rel (%p363) target = $region20
      $region19: #{resup_forward.1} parent=11 // pred_region
        _
      $region20: #{resup_forward.1} parent=11 // pred_fallthru
        _
      // Predicated region
      $region21: #{resup_forward.1} parent=11 // pred_check
        %p366 = pneg %p109
      $region22: #{resup_forward.1} parent=11 // pred_check_branch
        %368 = sbr.rel (%p366) target = $region24
      $region23: #{resup_forward.1} parent=11 // pred_region
        _
      $region24: #{resup_forward.1} parent=11 // pred_fallthru
        _
      // Predicated region
      $region25: #{resup_forward.1} parent=11 // pred_check
        %p369 = pneg %p130
      $region26: #{resup_forward.1} parent=11 // pred_check_branch
        %371 = sbr.rel (%p369) target = $region28
      $region27: #{resup_forward.1} parent=11 // pred_region
        _
      $region28: #{resup_forward.1} parent=11 // pred_fallthru
        _
      // Predicated region
      $region29: #{resup_forward.1} parent=11 // pred_check
        %p372 = pneg %p151
      $region30: #{resup_forward.1} parent=11 // pred_check_branch
        %374 = sbr.rel (%p372) target = $region32
      $region31: #{resup_forward.1} parent=11 // pred_region
        _
      $region32: #{resup_forward.1} parent=11 // pred_fallthru
        _
      // Predicated region
      $region33: #{resup_forward.1} parent=11 // pred_check
        %p375 = pneg %p172
      $region34: #{resup_forward.1} parent=11 // pred_check_branch
        %377 = sbr.rel (%p375) target = $region36
      $region35: #{resup_forward.1} parent=11 // pred_region
        _
      $region36: #{resup_forward.1} parent=11 // pred_fallthru
        _
      // Predicated region
      $region37: #{resup_forward.1} parent=11 // pred_check
        %p378 = pneg %p193
      $region38: #{resup_forward.1} parent=11 // pred_check_branch
        %380 = sbr.rel (%p378) target = $region40
      $region39: #{resup_forward.1} parent=11 // pred_region
        _
      $region40: #{resup_forward.1} parent=11 // pred_fallthru
        _
      // Predicated region
      $region41: #{resup_forward.1} parent=11 // pred_check
        %p381 = pneg %p214
      $region42: #{resup_forward.1} parent=11 // pred_check_branch
        %383 = sbr.rel (%p381) target = $region44
      $region43: #{resup_forward.1} parent=11 // pred_region
        _
      $region44: #{resup_forward.1} parent=11 // pred_fallthru
        _
      // Predicated region
      $region45: #{resup_forward.1} parent=11 // pred_check
        %p384 = pneg %p235
      $region46: #{resup_forward.1} parent=11 // pred_check_branch
        %386 = sbr.rel (%p384) target = $region48
      $region47: #{resup_forward.1} parent=11 // pred_region
        _
      $region48: #{resup_forward.1} parent=11 // pred_fallthru
        _
      // Predicated region
      $region49: #{resup_forward.1} parent=11 // pred_check
        %p387 = pneg %p256
      $region50: #{resup_forward.1} parent=11 // pred_check_branch
        %389 = sbr.rel (%p387) target = $region52
      $region51: #{resup_forward.1} parent=11 // pred_region
        _
      $region52: #{resup_forward.1} parent=11 // pred_fallthru
        _
      // Predicated region
      $region53: #{resup_forward.1} parent=11 // pred_check
        %p390 = pneg %p277
      $region54: #{resup_forward.1} parent=11 // pred_check_branch
        %392 = sbr.rel (%p390) target = $region56
      $region55: #{resup_forward.1} parent=11 // pred_region
        _
      $region56: #{resup_forward.1} parent=11 // pred_fallthru
        _
      // Predicated region
      $region57: #{resup_forward.1} parent=11 // pred_check
        %p393 = pneg %p298
      $region58: #{resup_forward.1} parent=11 // pred_check_branch
        %395 = sbr.rel (%p393) target = $region60
      $region59: #{resup_forward.1} parent=11 // pred_region
        _
      $region60: #{resup_forward.1} parent=11 // pred_fallthru
        _
      // Predicated region
      $region61: #{resup_forward.1} parent=11 // pred_check
        %p396 = pneg %p319
      $region62: #{resup_forward.1} parent=11 // pred_check_branch
        %398 = sbr.rel (%p396) target = $region64
      $region63: #{resup_forward.1} parent=11 // pred_region
        _
      $region64: #{resup_forward.1} parent=11 // pred_fallthru
        _
    $region12: #{resup_forward.1} parent=5 // pred_fallthru
      _
    %p399 = scmp.lt.s32.totalorder %s20, 2
    // Predicated region
    $region65: #{resup_forward.1} parent=5 // pred_check
      %p400 = pneg %p399
    $region66: #{resup_forward.1} parent=5 // pred_check_branch
      %402 = sbr.rel (%p400) target = $region68
    $region67: #{resup_forward.1} parent=5 // pred_region
      // Predicated region
      $region69: #{resup_forward.1} parent=67 // pred_check
        %p403 = pneg %p40
      $region70: #{resup_forward.1} parent=67 // pred_check_branch
        %405 = sbr.rel (%p403) target = $region72
      $region71: #{resup_forward.1} parent=67 // pred_region
        %p406 = scmp.lt.s32.totalorder %s20, 1
        %s407 = scalar_select %p406, %s20, 1
        %s408 = smul.addr %s407, 2
        %s409 = smul.addr %s408, 8
        %s410 = scalar_lea.vmem %s0, %s409
      $region72: #{resup_forward.1} parent=67 // pred_fallthru
        _
    $region68: #{resup_forward.1} parent=5 // pred_fallthru
      _
    %p411 = scmp.le.s32.totalorder 1, %s20
    %p412 = scmp.lt.s32.totalorder %s20, 3
    %p413 = pnand %p411, %p412
    %p414 = pneg %p413
    // Predicated region
    $region73: #{resup_forward.1} parent=5 // pred_check
      _
    $region74: #{resup_forward.1} parent=5 // pred_check_branch
      %416 = sbr.rel (%p413) target = $region76
    $region75: #{resup_forward.1} parent=5 // pred_region
      %s417 = ssub.s32 %s20, 1
      %p418 = scmp.lt.s32.totalorder %s25, 1
      %s419 = scalar_select %p418, %s25, 1
      %s420 = smul.addr %s419, 2
      %s421 = smul.addr %s420, 8
      %s422 = scalar_lea.vmem %s0, %s421
      %p423 = pneg %p46
      %p424 = pneg %p43
      %p425 = pneg %p67
      %p426 = pneg %p64
      %p427 = pneg %p88
      %p428 = pneg %p85
      %p429 = pneg %p109
      %p430 = pneg %p106
      %p431 = pneg %p130
      %p432 = pneg %p127
      %p433 = pneg %p151
      %p434 = pneg %p148
      %p435 = pneg %p172
      %p436 = pneg %p169
      %p437 = pneg %p193
      %p438 = pneg %p190
      %p439 = pneg %p214
      %p440 = pneg %p211
      %p441 = pneg %p235
      %p442 = pneg %p232
      %p443 = pneg %p256
      %p444 = pneg %p253
      %p445 = pneg %p277
      %p446 = pneg %p274
      %p447 = pneg %p298
      %p448 = pneg %p295
      %p449 = pneg %p319
      %p450 = pneg %p316
      %p451 = pneg %p345
      %p452 = pneg %p342
      %p453 = scmp.lt.s32.totalorder %s25, 1
      %s454 = scalar_select %p453, %s25, 1
      %s455 = smul.addr %s454, 8
      %s456 = smul.addr %s455, 8
      %s457 = scalar_lea.vmem %s14, %s456
      %p458 = scmp.lt.s32.totalorder %s25, 1
      %s459 = scalar_select %p458, %s25, 1
      %s460 = smul.addr %s459, 2
      %s461 = smul.addr %s460, 8
      %s462 = scalar_lea.vmem %s0, %s461
      %p463 = scmp.lt.s32.totalorder %s25, 1
      %s464 = scalar_select %p463, %s25, 1
      %s465 = smul.addr %s464, 8
      %s466 = smul.addr %s465, 8
      %s467 = scalar_lea.vmem %s14, %s466
      %v468 = vld [vmem:[%s462] sm:$0xff]
      %v469 = vld [vmem:[%s462 + $0x8] sm:$0xff]
      %v470 = vld [vmem:[%s1] sm:$0xff]
      %v471 = vld [vmem:[%s1 + $0x8] sm:$0xff]
      %s472 = scalar_lea.vmem %s1, 16
      %v473 = vld [vmem:[%s472] sm:$0xff]
      %v474 = vld [vmem:[%s472 + $0x8] sm:$0xff]
      %v475 = vld [vmem:[%s2] sm:$0xff]
      %v476 = vld [vmem:[%s2 + $0x8] sm:$0xff]
      %v477 = vld [vmem:[%s2 + $0x10] sm:$0xff]
      %v478 = vld [vmem:[%s2 + $0x18] sm:$0xff]
      %v479 = vld [vmem:[%s2 + $0x20] sm:$0xff]
      %v480 = vld [vmem:[%s2 + $0x28] sm:$0xff]
      %v481 = vld [vmem:[%s2 + $0x30] sm:$0xff]
      %v482 = vld [vmem:[%s2 + $0x38] sm:$0xff]
      %v483 = vld [vmem:[%s2 + $0x40] sm:$0xff]
      %v484 = vld [vmem:[%s2 + $0x48] sm:$0xff]
      %v485 = vld [vmem:[%s2 + $0x50] sm:$0xff]
      %v486 = vld [vmem:[%s2 + $0x58] sm:$0xff]
      %v487 = vld [vmem:[%s2 + $0x60] sm:$0xff]
      %v488 = vld [vmem:[%s2 + $0x68] sm:$0xff]
      %v489 = vld [vmem:[%s2 + $0x70] sm:$0xff]
      %v490 = vld [vmem:[%s2 + $0x78] sm:$0xff]
      %491 = vmatpush.msra.mxu0 %v490
      %492 = vmatpush.msra.mxu0 %v489
      %493 = vmatpush.msra.mxu0 %v488
      %494 = vmatpush.msra.mxu0 %v487
      %495 = vmatpush.msra.mxu0 %v486
      %496 = vmatpush.msra.mxu0 %v485
      %497 = vmatpush.msra.mxu0 %v484
      %498 = vmatpush.msra.mxu0 %v483
      %499 = vmatpush.msra.mxu0 %v482
      %500 = vmatpush.msra.mxu0 %v481
      %501 = vmatpush.msra.mxu0 %v480
      %502 = vmatpush.msra.mxu0 %v479
      %503 = vmatpush.msra.mxu0 %v478
      %504 = vmatpush.msra.mxu0 %v477
      %505 = vmatpush.msra.mxu0 %v476
      %506 = vmatpush.msra.mxu0 %v475
      %507 = vmatmul.f32.gmra.mxu0 %v468
      %v508 = vpop.f32.mrf.mxu0
      %v509 = vadd.f32 0.0, %v508
      %510 = vmatmul.f32.gmra.mxu0 %v469
      %v511 = vpop.f32.mrf.mxu0
      %v512 = vadd.f32 0.0, %v511
      %513 = vdwg.mxu0
      %s514 = scalar_lea.vmem %s2, 128
      %v515 = vld [vmem:[%s514] sm:$0xff]
      %v516 = vld [vmem:[%s514 + $0x8] sm:$0xff]
      %v517 = vld [vmem:[%s514 + $0x10] sm:$0xff]
      %v518 = vld [vmem:[%s514 + $0x18] sm:$0xff]
      %v519 = vld [vmem:[%s514 + $0x20] sm:$0xff]
      %v520 = vld [vmem:[%s514 + $0x28] sm:$0xff]
      %v521 = vld [vmem:[%s514 + $0x30] sm:$0xff]
      %v522 = vld [vmem:[%s514 + $0x38] sm:$0xff]
      %v523 = vld [vmem:[%s514 + $0x40] sm:$0xff]
      %v524 = vld [vmem:[%s514 + $0x48] sm:$0xff]
      %v525 = vld [vmem:[%s514 + $0x50] sm:$0xff]
      %v526 = vld [vmem:[%s514 + $0x58] sm:$0xff]
      %v527 = vld [vmem:[%s514 + $0x60] sm:$0xff]
      %v528 = vld [vmem:[%s514 + $0x68] sm:$0xff]
      %v529 = vld [vmem:[%s514 + $0x70] sm:$0xff]
      %v530 = vld [vmem:[%s514 + $0x78] sm:$0xff]
      %531 = vmatpush.msra.mxu0 %v530
      %532 = vmatpush.msra.mxu0 %v529
      %533 = vmatpush.msra.mxu0 %v528
      %534 = vmatpush.msra.mxu0 %v527
      %535 = vmatpush.msra.mxu0 %v526
      %536 = vmatpush.msra.mxu0 %v525
      %537 = vmatpush.msra.mxu0 %v524
      %538 = vmatpush.msra.mxu0 %v523
      %539 = vmatpush.msra.mxu0 %v522
      %540 = vmatpush.msra.mxu0 %v521
      %541 = vmatpush.msra.mxu0 %v520
      %542 = vmatpush.msra.mxu0 %v519
      %543 = vmatpush.msra.mxu0 %v518
      %544 = vmatpush.msra.mxu0 %v517
      %545 = vmatpush.msra.mxu0 %v516
      %546 = vmatpush.msra.mxu0 %v515
      %547 = vmatmul.f32.gmra.mxu0 %v468
      %v548 = vpop.f32.mrf.mxu0
      %v549 = vadd.f32 0.0, %v548
      %550 = vmatmul.f32.gmra.mxu0 %v469
      %v551 = vpop.f32.mrf.mxu0
      %v552 = vadd.f32 0.0, %v551
      %553 = vdwg.mxu0
      %s554 = scalar_lea.vmem %s2, 256
      %v555 = vld [vmem:[%s554] sm:$0xff]
      %v556 = vld [vmem:[%s554 + $0x8] sm:$0xff]
      %v557 = vld [vmem:[%s554 + $0x10] sm:$0xff]
      %v558 = vld [vmem:[%s554 + $0x18] sm:$0xff]
      %v559 = vld [vmem:[%s554 + $0x20] sm:$0xff]
      %v560 = vld [vmem:[%s554 + $0x28] sm:$0xff]
      %v561 = vld [vmem:[%s554 + $0x30] sm:$0xff]
      %v562 = vld [vmem:[%s554 + $0x38] sm:$0xff]
      %v563 = vld [vmem:[%s554 + $0x40] sm:$0xff]
      %v564 = vld [vmem:[%s554 + $0x48] sm:$0xff]
      %v565 = vld [vmem:[%s554 + $0x50] sm:$0xff]
      %v566 = vld [vmem:[%s554 + $0x58] sm:$0xff]
      %v567 = vld [vmem:[%s554 + $0x60] sm:$0xff]
      %v568 = vld [vmem:[%s554 + $0x68] sm:$0xff]
      %v569 = vld [vmem:[%s554 + $0x70] sm:$0xff]
      %v570 = vld [vmem:[%s554 + $0x78] sm:$0xff]
      %571 = vmatpush.msra.mxu0 %v570
      %572 = vmatpush.msra.mxu0 %v569
      %573 = vmatpush.msra.mxu0 %v568
      %574 = vmatpush.msra.mxu0 %v567
      %575 = vmatpush.msra.mxu0 %v566
      %576 = vmatpush.msra.mxu0 %v565
      %577 = vmatpush.msra.mxu0 %v564
      %578 = vmatpush.msra.mxu0 %v563
      %579 = vmatpush.msra.mxu0 %v562
      %580 = vmatpush.msra.mxu0 %v561
      %581 = vmatpush.msra.mxu0 %v560
      %582 = vmatpush.msra.mxu0 %v559
      %583 = vmatpush.msra.mxu0 %v558
      %584 = vmatpush.msra.mxu0 %v557
      %585 = vmatpush.msra.mxu0 %v556
      %586 = vmatpush.msra.mxu0 %v555
      %587 = vmatmul.f32.gmra.mxu0 %v468
      %v588 = vpop.f32.mrf.mxu0
      %v589 = vadd.f32 0.0, %v588
      %590 = vmatmul.f32.gmra.mxu0 %v469
      %v591 = vpop.f32.mrf.mxu0
      %v592 = vadd.f32 0.0, %v591
      %593 = vdwg.mxu0
      %vm594 = vcmask 130048
      %v596 = vsel %vm594, %v470, 0
      %v599 = vsel %vm594, %v471, 0
      %601 = vmatpush.msra.mxu0 0.0
      %602 = vmatpush.msra.mxu0 0.0
      %603 = vmatpush.msra.mxu0 0.0
      %604 = vmatpush.msra.mxu0 0.0
      %605 = vmatpush.msra.mxu0 0.0
      %606 = vmatpush.msra.mxu0 0.0
      %607 = vmatpush.msra.mxu0 0.0
      %608 = vmatpush.msra.mxu0 0.0
      %609 = vmatpush.msra.mxu0 0.0
      %610 = vmatpush.msra.mxu0 0.0
      %611 = vmatpush.msra.mxu0 0.0
      %612 = vmatpush.msra.mxu0 0.0
      %613 = vmatpush.msra.mxu0 0.0
      %614 = vmatpush.msra.mxu0 0.0
      %615 = vmatpush.msra.mxu0 %v512
      %616 = vmatpush.msra.mxu0 %v509
      %617 = vmatmul.f32.gmra.mxu0 %v596
      %v618 = vpop.f32.mrf.mxu0
      %v619 = vadd.f32 %v549, %v618
      %620 = vmatmul.f32.gmra.mxu0 %v599
      %v621 = vpop.f32.mrf.mxu0
      %v622 = vadd.f32 %v552, %v621
      %623 = vdwg.mxu0
      %v625 = vsel %vm594, %v473, 0
      %v628 = vsel %vm594, %v474, 0
      %630 = vmatpush.msra.mxu0 0.0
      %631 = vmatpush.msra.mxu0 0.0
      %632 = vmatpush.msra.mxu0 0.0
      %633 = vmatpush.msra.mxu0 0.0
      %634 = vmatpush.msra.mxu0 0.0
      %635 = vmatpush.msra.mxu0 0.0
      %636 = vmatpush.msra.mxu0 0.0
      %637 = vmatpush.msra.mxu0 0.0
      %638 = vmatpush.msra.mxu0 0.0
      %639 = vmatpush.msra.mxu0 0.0
      %640 = vmatpush.msra.mxu0 0.0
      %641 = vmatpush.msra.mxu0 0.0
      %642 = vmatpush.msra.mxu0 0.0
      %643 = vmatpush.msra.mxu0 0.0
      %644 = vmatpush.msra.mxu0 %v592
      %645 = vmatpush.msra.mxu0 %v589
      %646 = vmatmul.f32.gmra.mxu0 %v625
      %v647 = vpop.f32.mrf.mxu0
      %v648 = vadd.f32 0.0, %v647
      %649 = vmatmul.f32.gmra.mxu0 %v628
      %v650 = vpop.f32.mrf.mxu0
      %v651 = vadd.f32 0.0, %v650
      %652 = vdwg.mxu0
      %v653 = vadd.f32 %v619, %v648
      %v654 = vadd.f32 %v622, %v651
      %v655 = vld [vmem:[%s3] sm:$0x1]
      %v657 = vperm.slane %v655, 0
      %v659 = vadd.f32 %v653, %v657
      %v660 = vadd.f32 %v654, %v657
      %vm661 = vcmp.gt.f32.partialorder %v659, 0.0
      %vm662 = vcmp.gt.f32.partialorder %v660, 0.0
      %v663 = vmul.f32 %v659, 0.25
      %v664 = vmul.f32 %v660, 0.25
      %v665 = vsel %vm661, %v659, %v663
      %v666 = vsel %vm662, %v660, %v664
      %v667 = vld [vmem:[%s4] sm:$0xff]
      %v668 = vld [vmem:[%s4 + $0x8] sm:$0xff]
      %v669 = vld [vmem:[%s4 + $0x10] sm:$0xff]
      %v670 = vld [vmem:[%s4 + $0x18] sm:$0xff]
      %v671 = vld [vmem:[%s4 + $0x20] sm:$0xff]
      %v672 = vld [vmem:[%s4 + $0x28] sm:$0xff]
      %v673 = vld [vmem:[%s4 + $0x30] sm:$0xff]
      %v674 = vld [vmem:[%s4 + $0x38] sm:$0xff]
      %v675 = vld [vmem:[%s4 + $0x40] sm:$0xff]
      %v676 = vld [vmem:[%s4 + $0x48] sm:$0xff]
      %v677 = vld [vmem:[%s4 + $0x50] sm:$0xff]
      %v678 = vld [vmem:[%s4 + $0x58] sm:$0xff]
      %v679 = vld [vmem:[%s4 + $0x60] sm:$0xff]
      %v680 = vld [vmem:[%s4 + $0x68] sm:$0xff]
      %v681 = vld [vmem:[%s4 + $0x70] sm:$0xff]
      %v682 = vld [vmem:[%s4 + $0x78] sm:$0xff]
      %683 = vmatpush.msra.mxu0 %v682
      %684 = vmatpush.msra.mxu0 %v681
      %685 = vmatpush.msra.mxu0 %v680
      %686 = vmatpush.msra.mxu0 %v679
      %687 = vmatpush.msra.mxu0 %v678
      %688 = vmatpush.msra.mxu0 %v677
      %689 = vmatpush.msra.mxu0 %v676
      %690 = vmatpush.msra.mxu0 %v675
      %691 = vmatpush.msra.mxu0 %v674
      %692 = vmatpush.msra.mxu0 %v673
      %693 = vmatpush.msra.mxu0 %v672
      %694 = vmatpush.msra.mxu0 %v671
      %695 = vmatpush.msra.mxu0 %v670
      %696 = vmatpush.msra.mxu0 %v669
      %697 = vmatpush.msra.mxu0 %v668
      %698 = vmatpush.msra.mxu0 %v667
      %699 = vmatmul.f32.gmra.mxu0 %v665
      %v700 = vpop.f32.mrf.mxu0
      %v701 = vadd.f32 0.0, %v700
      %702 = vmatmul.f32.gmra.mxu0 %v666
      %v703 = vpop.f32.mrf.mxu0
      %v704 = vadd.f32 0.0, %v703
      %705 = vdwg.mxu0
      %s706 = scalar_lea.vmem %s4, 128
      %v707 = vld [vmem:[%s706] sm:$0xff]
      %v708 = vld [vmem:[%s706 + $0x8] sm:$0xff]
      %v709 = vld [vmem:[%s706 + $0x10] sm:$0xff]
      %v710 = vld [vmem:[%s706 + $0x18] sm:$0xff]
      %v711 = vld [vmem:[%s706 + $0x20] sm:$0xff]
      %v712 = vld [vmem:[%s706 + $0x28] sm:$0xff]
      %v713 = vld [vmem:[%s706 + $0x30] sm:$0xff]
      %v714 = vld [vmem:[%s706 + $0x38] sm:$0xff]
      %v715 = vld [vmem:[%s706 + $0x40] sm:$0xff]
      %v716 = vld [vmem:[%s706 + $0x48] sm:$0xff]
      %v717 = vld [vmem:[%s706 + $0x50] sm:$0xff]
      %v718 = vld [vmem:[%s706 + $0x58] sm:$0xff]
      %v719 = vld [vmem:[%s706 + $0x60] sm:$0xff]
      %v720 = vld [vmem:[%s706 + $0x68] sm:$0xff]
      %v721 = vld [vmem:[%s706 + $0x70] sm:$0xff]
      %v722 = vld [vmem:[%s706 + $0x78] sm:$0xff]
      %723 = vmatpush.msra.mxu0 %v722
      %724 = vmatpush.msra.mxu0 %v721
      %725 = vmatpush.msra.mxu0 %v720
      %726 = vmatpush.msra.mxu0 %v719
      %727 = vmatpush.msra.mxu0 %v718
      %728 = vmatpush.msra.mxu0 %v717
      %729 = vmatpush.msra.mxu0 %v716
      %730 = vmatpush.msra.mxu0 %v715
      %731 = vmatpush.msra.mxu0 %v714
      %732 = vmatpush.msra.mxu0 %v713
      %733 = vmatpush.msra.mxu0 %v712
      %734 = vmatpush.msra.mxu0 %v711
      %735 = vmatpush.msra.mxu0 %v710
      %736 = vmatpush.msra.mxu0 %v709
      %737 = vmatpush.msra.mxu0 %v708
      %738 = vmatpush.msra.mxu0 %v707
      %739 = vmatmul.f32.gmra.mxu0 %v665
      %v740 = vpop.f32.mrf.mxu0
      %v741 = vadd.f32 0.0, %v740
      %742 = vmatmul.f32.gmra.mxu0 %v666
      %v743 = vpop.f32.mrf.mxu0
      %v744 = vadd.f32 0.0, %v743
      %745 = vdwg.mxu0
      %s746 = scalar_lea.vmem %s4, 256
      %v747 = vld [vmem:[%s746] sm:$0xff]
      %v748 = vld [vmem:[%s746 + $0x8] sm:$0xff]
      %v749 = vld [vmem:[%s746 + $0x10] sm:$0xff]
      %v750 = vld [vmem:[%s746 + $0x18] sm:$0xff]
      %v751 = vld [vmem:[%s746 + $0x20] sm:$0xff]
      %v752 = vld [vmem:[%s746 + $0x28] sm:$0xff]
      %v753 = vld [vmem:[%s746 + $0x30] sm:$0xff]
      %v754 = vld [vmem:[%s746 + $0x38] sm:$0xff]
      %v755 = vld [vmem:[%s746 + $0x40] sm:$0xff]
      %v756 = vld [vmem:[%s746 + $0x48] sm:$0xff]
      %v757 = vld [vmem:[%s746 + $0x50] sm:$0xff]
      %v758 = vld [vmem:[%s746 + $0x58] sm:$0xff]
      %v759 = vld [vmem:[%s746 + $0x60] sm:$0xff]
      %v760 = vld [vmem:[%s746 + $0x68] sm:$0xff]
      %v761 = vld [vmem:[%s746 + $0x70] sm:$0xff]
      %v762 = vld [vmem:[%s746 + $0x78] sm:$0xff]
      %763 = vmatpush.msra.mxu0 %v762
      %764 = vmatpush.msra.mxu0 %v761
      %765 = vmatpush.msra.mxu0 %v760
      %766 = vmatpush.msra.mxu0 %v759
      %767 = vmatpush.msra.mxu0 %v758
      %768 = vmatpush.msra.mxu0 %v757
      %769 = vmatpush.msra.mxu0 %v756
      %770 = vmatpush.msra.mxu0 %v755
      %771 = vmatpush.msra.mxu0 %v754
      %772 = vmatpush.msra.mxu0 %v753
      %773 = vmatpush.msra.mxu0 %v752
      %774 = vmatpush.msra.mxu0 %v751
      %775 = vmatpush.msra.mxu0 %v750
      %776 = vmatpush.msra.mxu0 %v749
      %777 = vmatpush.msra.mxu0 %v748
      %778 = vmatpush.msra.mxu0 %v747
      %779 = vmatmul.f32.gmra.mxu0 %v665
      %v780 = vpop.f32.mrf.mxu0
      %v781 = vadd.f32 0.0, %v780
      %782 = vmatmul.f32.gmra.mxu0 %v666
      %v783 = vpop.f32.mrf.mxu0
      %v784 = vadd.f32 0.0, %v783
      %785 = vdwg.mxu0
      %786 = vmatpush.msra.mxu0 0.0
      %787 = vmatpush.msra.mxu0 0.0
      %788 = vmatpush.msra.mxu0 0.0
      %789 = vmatpush.msra.mxu0 0.0
      %790 = vmatpush.msra.mxu0 0.0
      %791 = vmatpush.msra.mxu0 0.0
      %792 = vmatpush.msra.mxu0 0.0
      %793 = vmatpush.msra.mxu0 0.0
      %794 = vmatpush.msra.mxu0 0.0
      %795 = vmatpush.msra.mxu0 0.0
      %796 = vmatpush.msra.mxu0 0.0
      %797 = vmatpush.msra.mxu0 0.0
      %798 = vmatpush.msra.mxu0 0.0
      %799 = vmatpush.msra.mxu0 0.0
      %800 = vmatpush.msra.mxu0 %v704
      %801 = vmatpush.msra.mxu0 %v701
      %802 = vmatmul.f32.gmra.mxu0 %v596
      %v803 = vpop.f32.mrf.mxu0
      %v804 = vadd.f32 %v741, %v803
      %805 = vmatmul.f32.gmra.mxu0 %v599
      %v806 = vpop.f32.mrf.mxu0
      %v807 = vadd.f32 %v744, %v806
      %808 = vdwg.mxu0
      %809 = vmatpush.msra.mxu0 0.0
      %810 = vmatpush.msra.mxu0 0.0
      %811 = vmatpush.msra.mxu0 0.0
      %812 = vmatpush.msra.mxu0 0.0
      %813 = vmatpush.msra.mxu0 0.0
      %814 = vmatpush.msra.mxu0 0.0
      %815 = vmatpush.msra.mxu0 0.0
      %816 = vmatpush.msra.mxu0 0.0
      %817 = vmatpush.msra.mxu0 0.0
      %818 = vmatpush.msra.mxu0 0.0
      %819 = vmatpush.msra.mxu0 0.0
      %820 = vmatpush.msra.mxu0 0.0
      %821 = vmatpush.msra.mxu0 0.0
      %822 = vmatpush.msra.mxu0 0.0
      %823 = vmatpush.msra.mxu0 %v784
      %824 = vmatpush.msra.mxu0 %v781
      %825 = vmatmul.f32.gmra.mxu0 %v625
      %v826 = vpop.f32.mrf.mxu0
      %v827 = vadd.f32 0.0, %v826
      %828 = vmatmul.f32.gmra.mxu0 %v628
      %v829 = vpop.f32.mrf.mxu0
      %v830 = vadd.f32 0.0, %v829
      %831 = vdwg.mxu0
      %v832 = vadd.f32 %v804, %v827
      %v833 = vadd.f32 %v807, %v830
      %v834 = vld [vmem:[%s5] sm:$0x1]
      %v836 = vperm.slane %v834, 0
      %v838 = vadd.f32 %v832, %v836
      %v839 = vadd.f32 %v833, %v836
      %vm840 = vcmp.gt.f32.partialorder %v838, 0.0
      %vm841 = vcmp.gt.f32.partialorder %v839, 0.0
      %v842 = vmul.f32 %v838, 0.25
      %v843 = vmul.f32 %v839, 0.25
      %v844 = vsel %vm840, %v838, %v842
      %v845 = vsel %vm841, %v839, %v843
      %s846 = scalar_lea.vmem %s6, 256
      %v847 = vld [vmem:[%s846] sm:$0xff]
      %v848 = vld [vmem:[%s846 + $0x8] sm:$0xff]
      %v849 = vld [vmem:[%s846 + $0x10] sm:$0xff]
      %v850 = vld [vmem:[%s846 + $0x18] sm:$0xff]
      %v851 = vld [vmem:[%s846 + $0x20] sm:$0xff]
      %v852 = vld [vmem:[%s846 + $0x28] sm:$0xff]
      %v853 = vld [vmem:[%s846 + $0x30] sm:$0xff]
      %v854 = vld [vmem:[%s846 + $0x38] sm:$0xff]
      %v855 = vld [vmem:[%s846 + $0x40] sm:$0xff]
      %v856 = vld [vmem:[%s846 + $0x48] sm:$0xff]
      %v857 = vld [vmem:[%s846 + $0x50] sm:$0xff]
      %v858 = vld [vmem:[%s846 + $0x58] sm:$0xff]
      %v859 = vld [vmem:[%s846 + $0x60] sm:$0xff]
      %v860 = vld [vmem:[%s846 + $0x68] sm:$0xff]
      %v861 = vld [vmem:[%s846 + $0x70] sm:$0xff]
      %v862 = vld [vmem:[%s846 + $0x78] sm:$0xff]
      %v863 = vld [vmem:[%s846 + $0x80] sm:$0xff]
      %v864 = vld [vmem:[%s846 + $0x88] sm:$0xff]
      %v865 = vld [vmem:[%s846 + $0x90] sm:$0xff]
      %v866 = vld [vmem:[%s846 + $0x98] sm:$0xff]
      %v867 = vld [vmem:[%s846 + $0xa0] sm:$0xff]
      %v868 = vld [vmem:[%s846 + $0xa8] sm:$0xff]
      %v869 = vld [vmem:[%s846 + $0xb0] sm:$0xff]
      %v870 = vld [vmem:[%s846 + $0xb8] sm:$0xff]
      %v871 = vld [vmem:[%s846 + $0xc0] sm:$0xff]
      %v872 = vld [vmem:[%s846 + $0xc8] sm:$0xff]
      %v873 = vld [vmem:[%s846 + $0xd0] sm:$0xff]
      %v874 = vld [vmem:[%s846 + $0xd8] sm:$0xff]
      %v875 = vld [vmem:[%s846 + $0xe0] sm:$0xff]
      %v876 = vld [vmem:[%s846 + $0xe8] sm:$0xff]
      %v877 = vld [vmem:[%s846 + $0xf0] sm:$0xff]
      %v878 = vld [vmem:[%s846 + $0xf8] sm:$0xff]
      %v879 = vld [vmem:[%s7] sm:$0x3]
      %v881 = vperm.slane %v879, 0
      %v882 = vperm.slane %v879, 1
      %885 = vmatpush.msra.mxu0 %v877
      %886 = vmatpush.msra.mxu0 %v875
      %887 = vmatpush.msra.mxu0 %v873
      %888 = vmatpush.msra.mxu0 %v871
      %889 = vmatpush.msra.mxu0 %v869
      %890 = vmatpush.msra.mxu0 %v867
      %891 = vmatpush.msra.mxu0 %v865
      %892 = vmatpush.msra.mxu0 %v863
      %893 = vmatpush.msra.mxu0 %v861
      %894 = vmatpush.msra.mxu0 %v859
      %895 = vmatpush.msra.mxu0 %v857
      %896 = vmatpush.msra.mxu0 %v855
      %897 = vmatpush.msra.mxu0 %v853
      %898 = vmatpush.msra.mxu0 %v851
      %899 = vmatpush.msra.mxu0 %v849
      %900 = vmatpush.msra.mxu0 %v847
      %901 = vmatmul.f32.gmra.mxu0 %v844
      %v902 = vpop.f32.mrf.mxu0
      %v903 = vadd.f32 %v881, %v902
      %904 = vmatmul.f32.gmra.mxu0 %v845
      %v905 = vpop.f32.mrf.mxu0
      %v906 = vadd.f32 %v881, %v905
      %907 = vdwg.mxu0
      %908 = vmatpush.msra.mxu0 %v878
      %909 = vmatpush.msra.mxu0 %v876
      %910 = vmatpush.msra.mxu0 %v874
      %911 = vmatpush.msra.mxu0 %v872
      %912 = vmatpush.msra.mxu0 %v870
      %913 = vmatpush.msra.mxu0 %v868
      %914 = vmatpush.msra.mxu0 %v866
      %915 = vmatpush.msra.mxu0 %v864
      %916 = vmatpush.msra.mxu0 %v862
      %917 = vmatpush.msra.mxu0 %v860
      %918 = vmatpush.msra.mxu0 %v858
      %919 = vmatpush.msra.mxu0 %v856
      %920 = vmatpush.msra.mxu0 %v854
      %921 = vmatpush.msra.mxu0 %v852
      %922 = vmatpush.msra.mxu0 %v850
      %923 = vmatpush.msra.mxu0 %v848
      %924 = vmatmul.f32.gmra.mxu0 %v844
      %v925 = vpop.f32.mrf.mxu0
      %v926 = vadd.f32 %v882, %v925
      %927 = vmatmul.f32.gmra.mxu0 %v845
      %v928 = vpop.f32.mrf.mxu0
      %v929 = vadd.f32 %v882, %v928
      %930 = vdwg.mxu0
      %s931 = scalar_lea.vmem %s6, 512
      %v932 = vld [vmem:[%s931] sm:$0xff]
      %v933 = vld [vmem:[%s931 + $0x8] sm:$0xff]
      %v934 = vld [vmem:[%s931 + $0x10] sm:$0xff]
      %v935 = vld [vmem:[%s931 + $0x18] sm:$0xff]
      %v936 = vld [vmem:[%s931 + $0x20] sm:$0xff]
      %v937 = vld [vmem:[%s931 + $0x28] sm:$0xff]
      %v938 = vld [vmem:[%s931 + $0x30] sm:$0xff]
      %v939 = vld [vmem:[%s931 + $0x38] sm:$0xff]
      %v940 = vld [vmem:[%s931 + $0x40] sm:$0xff]
      %v941 = vld [vmem:[%s931 + $0x48] sm:$0xff]
      %v942 = vld [vmem:[%s931 + $0x50] sm:$0xff]
      %v943 = vld [vmem:[%s931 + $0x58] sm:$0xff]
      %v944 = vld [vmem:[%s931 + $0x60] sm:$0xff]
      %v945 = vld [vmem:[%s931 + $0x68] sm:$0xff]
      %v946 = vld [vmem:[%s931 + $0x70] sm:$0xff]
      %v947 = vld [vmem:[%s931 + $0x78] sm:$0xff]
      %v948 = vld [vmem:[%s931 + $0x80] sm:$0xff]
      %v949 = vld [vmem:[%s931 + $0x88] sm:$0xff]
      %v950 = vld [vmem:[%s931 + $0x90] sm:$0xff]
      %v951 = vld [vmem:[%s931 + $0x98] sm:$0xff]
      %v952 = vld [vmem:[%s931 + $0xa0] sm:$0xff]
      %v953 = vld [vmem:[%s931 + $0xa8] sm:$0xff]
      %v954 = vld [vmem:[%s931 + $0xb0] sm:$0xff]
      %v955 = vld [vmem:[%s931 + $0xb8] sm:$0xff]
      %v956 = vld [vmem:[%s931 + $0xc0] sm:$0xff]
      %v957 = vld [vmem:[%s931 + $0xc8] sm:$0xff]
      %v958 = vld [vmem:[%s931 + $0xd0] sm:$0xff]
      %v959 = vld [vmem:[%s931 + $0xd8] sm:$0xff]
      %v960 = vld [vmem:[%s931 + $0xe0] sm:$0xff]
      %v961 = vld [vmem:[%s931 + $0xe8] sm:$0xff]
      %v962 = vld [vmem:[%s931 + $0xf0] sm:$0xff]
      %v963 = vld [vmem:[%s931 + $0xf8] sm:$0xff]
      %v964 = vld [vmem:[%s6] sm:$0xff]
      %v965 = vld [vmem:[%s6 + $0x8] sm:$0xff]
      %v966 = vld [vmem:[%s6 + $0x10] sm:$0xff]
      %v967 = vld [vmem:[%s6 + $0x18] sm:$0xff]
      %v968 = vld [vmem:[%s6 + $0x20] sm:$0xff]
      %v969 = vld [vmem:[%s6 + $0x28] sm:$0xff]
      %v970 = vld [vmem:[%s6 + $0x30] sm:$0xff]
      %v971 = vld [vmem:[%s6 + $0x38] sm:$0xff]
      %v972 = vld [vmem:[%s6 + $0x40] sm:$0xff]
      %v973 = vld [vmem:[%s6 + $0x48] sm:$0xff]
      %v974 = vld [vmem:[%s6 + $0x50] sm:$0xff]
      %v975 = vld [vmem:[%s6 + $0x58] sm:$0xff]
      %v976 = vld [vmem:[%s6 + $0x60] sm:$0xff]
      %v977 = vld [vmem:[%s6 + $0x68] sm:$0xff]
      %v978 = vld [vmem:[%s6 + $0x70] sm:$0xff]
      %v979 = vld [vmem:[%s6 + $0x78] sm:$0xff]
      %v980 = vld [vmem:[%s6 + $0x80] sm:$0xff]
      %v981 = vld [vmem:[%s6 + $0x88] sm:$0xff]
      %v982 = vld [vmem:[%s6 + $0x90] sm:$0xff]
      %v983 = vld [vmem:[%s6 + $0x98] sm:$0xff]
      %v984 = vld [vmem:[%s6 + $0xa0] sm:$0xff]
      %v985 = vld [vmem:[%s6 + $0xa8] sm:$0xff]
      %v986 = vld [vmem:[%s6 + $0xb0] sm:$0xff]
      %v987 = vld [vmem:[%s6 + $0xb8] sm:$0xff]
      %v988 = vld [vmem:[%s6 + $0xc0] sm:$0xff]
      %v989 = vld [vmem:[%s6 + $0xc8] sm:$0xff]
      %v990 = vld [vmem:[%s6 + $0xd0] sm:$0xff]
      %v991 = vld [vmem:[%s6 + $0xd8] sm:$0xff]
      %v992 = vld [vmem:[%s6 + $0xe0] sm:$0xff]
      %v993 = vld [vmem:[%s6 + $0xe8] sm:$0xff]
      %v994 = vld [vmem:[%s6 + $0xf0] sm:$0xff]
      %v995 = vld [vmem:[%s6 + $0xf8] sm:$0xff]
      %996 = vmatpush.msra.mxu0 %v994
      %997 = vmatpush.msra.mxu0 %v992
      %998 = vmatpush.msra.mxu0 %v990
      %999 = vmatpush.msra.mxu0 %v988
      %1000 = vmatpush.msra.mxu0 %v986
      %1001 = vmatpush.msra.mxu0 %v984
      %1002 = vmatpush.msra.mxu0 %v982
      %1003 = vmatpush.msra.mxu0 %v980
      %1004 = vmatpush.msra.mxu0 %v978
      %1005 = vmatpush.msra.mxu0 %v976
      %1006 = vmatpush.msra.mxu0 %v974
      %1007 = vmatpush.msra.mxu0 %v972
      %1008 = vmatpush.msra.mxu0 %v970
      %1009 = vmatpush.msra.mxu0 %v968
      %1010 = vmatpush.msra.mxu0 %v966
      %1011 = vmatpush.msra.mxu0 %v964
      %1012 = vmatmul.f32.gmra.mxu0 %v844
      %v1013 = vpop.f32.mrf.mxu0
      %v1014 = vadd.f32 0.0, %v1013
      %1015 = vmatmul.f32.gmra.mxu0 %v845
      %v1016 = vpop.f32.mrf.mxu0
      %v1017 = vadd.f32 0.0, %v1016
      %1018 = vdwg.mxu0
      %1019 = vmatpush.msra.mxu0 %v995
      %1020 = vmatpush.msra.mxu0 %v993
      %1021 = vmatpush.msra.mxu0 %v991
      %1022 = vmatpush.msra.mxu0 %v989
      %1023 = vmatpush.msra.mxu0 %v987
      %1024 = vmatpush.msra.mxu0 %v985
      %1025 = vmatpush.msra.mxu0 %v983
      %1026 = vmatpush.msra.mxu0 %v981
      %1027 = vmatpush.msra.mxu0 %v979
      %1028 = vmatpush.msra.mxu0 %v977
      %1029 = vmatpush.msra.mxu0 %v975
      %1030 = vmatpush.msra.mxu0 %v973
      %1031 = vmatpush.msra.mxu0 %v971
      %1032 = vmatpush.msra.mxu0 %v969
      %1033 = vmatpush.msra.mxu0 %v967
      %1034 = vmatpush.msra.mxu0 %v965
      %1035 = vmatmul.f32.gmra.mxu0 %v844
      %v1036 = vpop.f32.mrf.mxu0
      %v1037 = vadd.f32 0.0, %v1036
      %1038 = vmatmul.f32.gmra.mxu0 %v845
      %v1039 = vpop.f32.mrf.mxu0
      %v1040 = vadd.f32 0.0, %v1039
      %1041 = vdwg.mxu0
      %1042 = vmatpush.msra.mxu0 0.0
      %1043 = vmatpush.msra.mxu0 0.0
      %1044 = vmatpush.msra.mxu0 0.0
      %1045 = vmatpush.msra.mxu0 0.0
      %1046 = vmatpush.msra.mxu0 0.0
      %1047 = vmatpush.msra.mxu0 0.0
      %1048 = vmatpush.msra.mxu0 0.0
      %1049 = vmatpush.msra.mxu0 0.0
      %1050 = vmatpush.msra.mxu0 0.0
      %1051 = vmatpush.msra.mxu0 0.0
      %1052 = vmatpush.msra.mxu0 0.0
      %1053 = vmatpush.msra.mxu0 0.0
      %1054 = vmatpush.msra.mxu0 0.0
      %1055 = vmatpush.msra.mxu0 0.0
      %1056 = vmatpush.msra.mxu0 %v1017
      %1057 = vmatpush.msra.mxu0 %v1014
      %1058 = vmatmul.f32.gmra.mxu0 %v625
      %v1059 = vpop.f32.mrf.mxu0
      %v1060 = vadd.f32 0.0, %v1059
      %1061 = vmatmul.f32.gmra.mxu0 %v628
      %v1062 = vpop.f32.mrf.mxu0
      %v1063 = vadd.f32 0.0, %v1062
      %1064 = vdwg.mxu0
      %1065 = vmatpush.msra.mxu0 0.0
      %1066 = vmatpush.msra.mxu0 0.0
      %1067 = vmatpush.msra.mxu0 0.0
      %1068 = vmatpush.msra.mxu0 0.0
      %1069 = vmatpush.msra.mxu0 0.0
      %1070 = vmatpush.msra.mxu0 0.0
      %1071 = vmatpush.msra.mxu0 0.0
      %1072 = vmatpush.msra.mxu0 0.0
      %1073 = vmatpush.msra.mxu0 0.0
      %1074 = vmatpush.msra.mxu0 0.0
      %1075 = vmatpush.msra.mxu0 0.0
      %1076 = vmatpush.msra.mxu0 0.0
      %1077 = vmatpush.msra.mxu0 0.0
      %1078 = vmatpush.msra.mxu0 0.0
      %1079 = vmatpush.msra.mxu0 %v1040
      %1080 = vmatpush.msra.mxu0 %v1037
      %1081 = vmatmul.f32.gmra.mxu0 %v625
      %v1082 = vpop.f32.mrf.mxu0
      %v1083 = vadd.f32 0.0, %v1082
      %1084 = vmatmul.f32.gmra.mxu0 %v628
      %v1085 = vpop.f32.mrf.mxu0
      %v1086 = vadd.f32 0.0, %v1085
      %1087 = vdwg.mxu0
      %1088 = vmatpush.msra.mxu0 %v962
      %1089 = vmatpush.msra.mxu0 %v960
      %1090 = vmatpush.msra.mxu0 %v958
      %1091 = vmatpush.msra.mxu0 %v956
      %1092 = vmatpush.msra.mxu0 %v954
      %1093 = vmatpush.msra.mxu0 %v952
      %1094 = vmatpush.msra.mxu0 %v950
      %1095 = vmatpush.msra.mxu0 %v948
      %1096 = vmatpush.msra.mxu0 %v946
      %1097 = vmatpush.msra.mxu0 %v944
      %1098 = vmatpush.msra.mxu0 %v942
      %1099 = vmatpush.msra.mxu0 %v940
      %1100 = vmatpush.msra.mxu0 %v938
      %1101 = vmatpush.msra.mxu0 %v936
      %1102 = vmatpush.msra.mxu0 %v934
      %1103 = vmatpush.msra.mxu0 %v932
      %1104 = vmatmul.f32.gmra.mxu0 %v844
      %v1105 = vpop.f32.mrf.mxu0
      %v1106 = vadd.f32 %v1060, %v1105
      %1107 = vmatmul.f32.gmra.mxu0 %v845
      %v1108 = vpop.f32.mrf.mxu0
      %v1109 = vadd.f32 %v1063, %v1108
      %1110 = vdwg.mxu0
      %1111 = vmatpush.msra.mxu0 %v963
      %1112 = vmatpush.msra.mxu0 %v961
      %1113 = vmatpush.msra.mxu0 %v959
      %1114 = vmatpush.msra.mxu0 %v957
      %1115 = vmatpush.msra.mxu0 %v955
      %1116 = vmatpush.msra.mxu0 %v953
      %1117 = vmatpush.msra.mxu0 %v951
      %1118 = vmatpush.msra.mxu0 %v949
      %1119 = vmatpush.msra.mxu0 %v947
      %1120 = vmatpush.msra.mxu0 %v945
      %1121 = vmatpush.msra.mxu0 %v943
      %1122 = vmatpush.msra.mxu0 %v941
      %1123 = vmatpush.msra.mxu0 %v939
      %1124 = vmatpush.msra.mxu0 %v937
      %1125 = vmatpush.msra.mxu0 %v935
      %1126 = vmatpush.msra.mxu0 %v933
      %1127 = vmatmul.f32.gmra.mxu0 %v844
      %v1128 = vpop.f32.mrf.mxu0
      %v1129 = vadd.f32 %v1083, %v1128
      %1130 = vmatmul.f32.gmra.mxu0 %v845
      %v1131 = vpop.f32.mrf.mxu0
      %v1132 = vadd.f32 %v1086, %v1131
      %1133 = vdwg.mxu0
      %v1134 = vadd.f32 %v1106, %v881
      %v1135 = vadd.f32 %v1129, %v882
      %v1136 = vadd.f32 %v1109, %v881
      %v1137 = vadd.f32 %v1132, %v882
      %v1138 = vld [vmem:[%s8] sm:$0xff]
      %v1139 = vld [vmem:[%s8 + $0x8] sm:$0xff]
      %v1140 = vld [vmem:[%s8 + $0x10] sm:$0xff]
      %v1141 = vld [vmem:[%s8 + $0x18] sm:$0xff]
      %v1142 = vld [vmem:[%s8 + $0x20] sm:$0xff]
      %v1143 = vld [vmem:[%s8 + $0x28] sm:$0xff]
      %v1144 = vld [vmem:[%s8 + $0x30] sm:$0xff]
      %v1145 = vld [vmem:[%s8 + $0x38] sm:$0xff]
      %v1146 = vld [vmem:[%s8 + $0x40] sm:$0xff]
      %v1147 = vld [vmem:[%s8 + $0x48] sm:$0xff]
      %v1148 = vld [vmem:[%s8 + $0x50] sm:$0xff]
      %v1149 = vld [vmem:[%s8 + $0x58] sm:$0xff]
      %v1150 = vld [vmem:[%s8 + $0x60] sm:$0xff]
      %v1151 = vld [vmem:[%s8 + $0x68] sm:$0xff]
      %v1152 = vld [vmem:[%s8 + $0x70] sm:$0xff]
      %v1153 = vld [vmem:[%s8 + $0x78] sm:$0xff]
      %v1154 = vld [vmem:[%s8 + $0x80] sm:$0xff]
      %v1155 = vld [vmem:[%s8 + $0x88] sm:$0xff]
      %v1156 = vld [vmem:[%s8 + $0x90] sm:$0xff]
      %v1157 = vld [vmem:[%s8 + $0x98] sm:$0xff]
      %v1158 = vld [vmem:[%s8 + $0xa0] sm:$0xff]
      %v1159 = vld [vmem:[%s8 + $0xa8] sm:$0xff]
      %v1160 = vld [vmem:[%s8 + $0xb0] sm:$0xff]
      %v1161 = vld [vmem:[%s8 + $0xb8] sm:$0xff]
      %v1162 = vld [vmem:[%s8 + $0xc0] sm:$0xff]
      %v1163 = vld [vmem:[%s8 + $0xc8] sm:$0xff]
      %v1164 = vld [vmem:[%s8 + $0xd0] sm:$0xff]
      %v1165 = vld [vmem:[%s8 + $0xd8] sm:$0xff]
      %v1166 = vld [vmem:[%s8 + $0xe0] sm:$0xff]
      %v1167 = vld [vmem:[%s8 + $0xe8] sm:$0xff]
      %v1168 = vld [vmem:[%s8 + $0xf0] sm:$0xff]
      %v1169 = vld [vmem:[%s8 + $0xf8] sm:$0xff]
      %v1170 = vld [vmem:[%s8 + $0x100] sm:$0xff]
      %v1171 = vld [vmem:[%s8 + $0x108] sm:$0xff]
      %v1172 = vld [vmem:[%s8 + $0x110] sm:$0xff]
      %v1173 = vld [vmem:[%s8 + $0x118] sm:$0xff]
      %v1174 = vld [vmem:[%s8 + $0x120] sm:$0xff]
      %v1175 = vld [vmem:[%s8 + $0x128] sm:$0xff]
      %v1176 = vld [vmem:[%s8 + $0x130] sm:$0xff]
      %v1177 = vld [vmem:[%s8 + $0x138] sm:$0xff]
      %v1178 = vld [vmem:[%s8 + $0x140] sm:$0xff]
      %v1179 = vld [vmem:[%s8 + $0x148] sm:$0xff]
      %v1180 = vld [vmem:[%s8 + $0x150] sm:$0xff]
      %v1181 = vld [vmem:[%s8 + $0x158] sm:$0xff]
      %v1182 = vld [vmem:[%s8 + $0x160] sm:$0xff]
      %v1183 = vld [vmem:[%s8 + $0x168] sm:$0xff]
      %v1184 = vld [vmem:[%s8 + $0x170] sm:$0xff]
      %v1185 = vld [vmem:[%s8 + $0x178] sm:$0xff]
      %v1186 = vld [vmem:[%s8 + $0x180] sm:$0xff]
      %v1187 = vld [vmem:[%s8 + $0x188] sm:$0xff]
      %v1188 = vld [vmem:[%s8 + $0x190] sm:$0xff]
      %v1189 = vld [vmem:[%s8 + $0x198] sm:$0xff]
      %v1190 = vld [vmem:[%s8 + $0x1a0] sm:$0xff]
      %v1191 = vld [vmem:[%s8 + $0x1a8] sm:$0xff]
      %v1192 = vld [vmem:[%s8 + $0x1b0] sm:$0xff]
      %v1193 = vld [vmem:[%s8 + $0x1b8] sm:$0xff]
      %v1194 = vld [vmem:[%s8 + $0x1c0] sm:$0xff]
      %v1195 = vld [vmem:[%s8 + $0x1c8] sm:$0xff]
      %v1196 = vld [vmem:[%s8 + $0x1d0] sm:$0xff]
      %v1197 = vld [vmem:[%s8 + $0x1d8] sm:$0xff]
      %v1198 = vld [vmem:[%s8 + $0x1e0] sm:$0xff]
      %v1199 = vld [vmem:[%s8 + $0x1e8] sm:$0xff]
      %v1200 = vld [vmem:[%s8 + $0x1f0] sm:$0xff]
      %v1201 = vld [vmem:[%s8 + $0x1f8] sm:$0xff]
      %s1202 = scalar_lea.vmem %s8, 512
      %v1203 = vld [vmem:[%s1202] sm:$0xff]
      %v1204 = vld [vmem:[%s1202 + $0x8] sm:$0xff]
      %v1205 = vld [vmem:[%s1202 + $0x10] sm:$0xff]
      %v1206 = vld [vmem:[%s1202 + $0x18] sm:$0xff]
      %v1207 = vld [vmem:[%s1202 + $0x20] sm:$0xff]
      %v1208 = vld [vmem:[%s1202 + $0x28] sm:$0xff]
      %v1209 = vld [vmem:[%s1202 + $0x30] sm:$0xff]
      %v1210 = vld [vmem:[%s1202 + $0x38] sm:$0xff]
      %v1211 = vld [vmem:[%s1202 + $0x40] sm:$0xff]
      %v1212 = vld [vmem:[%s1202 + $0x48] sm:$0xff]
      %v1213 = vld [vmem:[%s1202 + $0x50] sm:$0xff]
      %v1214 = vld [vmem:[%s1202 + $0x58] sm:$0xff]
      %v1215 = vld [vmem:[%s1202 + $0x60] sm:$0xff]
      %v1216 = vld [vmem:[%s1202 + $0x68] sm:$0xff]
      %v1217 = vld [vmem:[%s1202 + $0x70] sm:$0xff]
      %v1218 = vld [vmem:[%s1202 + $0x78] sm:$0xff]
      %v1219 = vld [vmem:[%s1202 + $0x80] sm:$0xff]
      %v1220 = vld [vmem:[%s1202 + $0x88] sm:$0xff]
      %v1221 = vld [vmem:[%s1202 + $0x90] sm:$0xff]
      %v1222 = vld [vmem:[%s1202 + $0x98] sm:$0xff]
      %v1223 = vld [vmem:[%s1202 + $0xa0] sm:$0xff]
      %v1224 = vld [vmem:[%s1202 + $0xa8] sm:$0xff]
      %v1225 = vld [vmem:[%s1202 + $0xb0] sm:$0xff]
      %v1226 = vld [vmem:[%s1202 + $0xb8] sm:$0xff]
      %v1227 = vld [vmem:[%s1202 + $0xc0] sm:$0xff]
      %v1228 = vld [vmem:[%s1202 + $0xc8] sm:$0xff]
      %v1229 = vld [vmem:[%s1202 + $0xd0] sm:$0xff]
      %v1230 = vld [vmem:[%s1202 + $0xd8] sm:$0xff]
      %v1231 = vld [vmem:[%s1202 + $0xe0] sm:$0xff]
      %v1232 = vld [vmem:[%s1202 + $0xe8] sm:$0xff]
      %v1233 = vld [vmem:[%s1202 + $0xf0] sm:$0xff]
      %v1234 = vld [vmem:[%s1202 + $0xf8] sm:$0xff]
      %v1235 = vld [vmem:[%s1202 + $0x100] sm:$0xff]
      %v1236 = vld [vmem:[%s1202 + $0x108] sm:$0xff]
      %v1237 = vld [vmem:[%s1202 + $0x110] sm:$0xff]
      %v1238 = vld [vmem:[%s1202 + $0x118] sm:$0xff]
      %v1239 = vld [vmem:[%s1202 + $0x120] sm:$0xff]
      %v1240 = vld [vmem:[%s1202 + $0x128] sm:$0xff]
      %v1241 = vld [vmem:[%s1202 + $0x130] sm:$0xff]
      %v1242 = vld [vmem:[%s1202 + $0x138] sm:$0xff]
      %v1243 = vld [vmem:[%s1202 + $0x140] sm:$0xff]
      %v1244 = vld [vmem:[%s1202 + $0x148] sm:$0xff]
      %v1245 = vld [vmem:[%s1202 + $0x150] sm:$0xff]
      %v1246 = vld [vmem:[%s1202 + $0x158] sm:$0xff]
      %v1247 = vld [vmem:[%s1202 + $0x160] sm:$0xff]
      %v1248 = vld [vmem:[%s1202 + $0x168] sm:$0xff]
      %v1249 = vld [vmem:[%s1202 + $0x170] sm:$0xff]
      %v1250 = vld [vmem:[%s1202 + $0x178] sm:$0xff]
      %v1251 = vld [vmem:[%s1202 + $0x180] sm:$0xff]
      %v1252 = vld [vmem:[%s1202 + $0x188] sm:$0xff]
      %v1253 = vld [vmem:[%s1202 + $0x190] sm:$0xff]
      %v1254 = vld [vmem:[%s1202 + $0x198] sm:$0xff]
      %v1255 = vld [vmem:[%s1202 + $0x1a0] sm:$0xff]
      %v1256 = vld [vmem:[%s1202 + $0x1a8] sm:$0xff]
      %v1257 = vld [vmem:[%s1202 + $0x1b0] sm:$0xff]
      %v1258 = vld [vmem:[%s1202 + $0x1b8] sm:$0xff]
      %v1259 = vld [vmem:[%s1202 + $0x1c0] sm:$0xff]
      %v1260 = vld [vmem:[%s1202 + $0x1c8] sm:$0xff]
      %v1261 = vld [vmem:[%s1202 + $0x1d0] sm:$0xff]
      %v1262 = vld [vmem:[%s1202 + $0x1d8] sm:$0xff]
      %v1263 = vld [vmem:[%s1202 + $0x1e0] sm:$0xff]
      %v1264 = vld [vmem:[%s1202 + $0x1e8] sm:$0xff]
      %v1265 = vld [vmem:[%s1202 + $0x1f0] sm:$0xff]
      %v1266 = vld [vmem:[%s1202 + $0x1f8] sm:$0xff]
      %1267 = vmatpush.msra.mxu0 %v1233
      %1268 = vmatpush.msra.mxu0 %v1231
      %1269 = vmatpush.msra.mxu0 %v1229
      %1270 = vmatpush.msra.mxu0 %v1227
      %1271 = vmatpush.msra.mxu0 %v1225
      %1272 = vmatpush.msra.mxu0 %v1223
      %1273 = vmatpush.msra.mxu0 %v1221
      %1274 = vmatpush.msra.mxu0 %v1219
      %1275 = vmatpush.msra.mxu0 %v1217
      %1276 = vmatpush.msra.mxu0 %v1215
      %1277 = vmatpush.msra.mxu0 %v1213
      %1278 = vmatpush.msra.mxu0 %v1211
      %1279 = vmatpush.msra.mxu0 %v1209
      %1280 = vmatpush.msra.mxu0 %v1207
      %1281 = vmatpush.msra.mxu0 %v1205
      %1282 = vmatpush.msra.mxu0 %v1203
      %1283 = vmatmul.f32.gmra.mxu0 %v903
      %v1284 = vpop.f32.mrf.mxu0
      %v1285 = vadd.f32 0.0, %v1284
      %1286 = vmatmul.f32.gmra.mxu0 %v906
      %v1287 = vpop.f32.mrf.mxu0
      %v1288 = vadd.f32 0.0, %v1287
      %1289 = vdwg.mxu0
      %1290 = vmatpush.msra.mxu0 %v1265
      %1291 = vmatpush.msra.mxu0 %v1263
      %1292 = vmatpush.msra.mxu0 %v1261
      %1293 = vmatpush.msra.mxu0 %v1259
      %1294 = vmatpush.msra.mxu0 %v1257
      %1295 = vmatpush.msra.mxu0 %v1255
      %1296 = vmatpush.msra.mxu0 %v1253
      %1297 = vmatpush.msra.mxu0 %v1251
      %1298 = vmatpush.msra.mxu0 %v1249
      %1299 = vmatpush.msra.mxu0 %v1247
      %1300 = vmatpush.msra.mxu0 %v1245
      %1301 = vmatpush.msra.mxu0 %v1243
      %1302 = vmatpush.msra.mxu0 %v1241
      %1303 = vmatpush.msra.mxu0 %v1239
      %1304 = vmatpush.msra.mxu0 %v1237
      %1305 = vmatpush.msra.mxu0 %v1235
      %1306 = vmatmul.f32.gmra.mxu0 %v926
      %v1307 = vpop.f32.mrf.mxu0
      %v1308 = vadd.f32 %v1285, %v1307
      %1309 = vmatmul.f32.gmra.mxu0 %v929
      %v1310 = vpop.f32.mrf.mxu0
      %v1311 = vadd.f32 %v1288, %v1310
      %1312 = vdwg.mxu0
      %1313 = vmatpush.msra.mxu0 %v1234
      %1314 = vmatpush.msra.mxu0 %v1232
      %1315 = vmatpush.msra.mxu0 %v1230
      %1316 = vmatpush.msra.mxu0 %v1228
      %1317 = vmatpush.msra.mxu0 %v1226
      %1318 = vmatpush.msra.mxu0 %v1224
      %1319 = vmatpush.msra.mxu0 %v1222
      %1320 = vmatpush.msra.mxu0 %v1220
      %1321 = vmatpush.msra.mxu0 %v1218
      %1322 = vmatpush.msra.mxu0 %v1216
      %1323 = vmatpush.msra.mxu0 %v1214
      %1324 = vmatpush.msra.mxu0 %v1212
      %1325 = vmatpush.msra.mxu0 %v1210
      %1326 = vmatpush.msra.mxu0 %v1208
      %1327 = vmatpush.msra.mxu0 %v1206
      %1328 = vmatpush.msra.mxu0 %v1204
      %1329 = vmatmul.f32.gmra.mxu0 %v903
      %v1330 = vpop.f32.mrf.mxu0
      %v1331 = vadd.f32 0.0, %v1330
      %1332 = vmatmul.f32.gmra.mxu0 %v906
      %v1333 = vpop.f32.mrf.mxu0
      %v1334 = vadd.f32 0.0, %v1333
      %1335 = vdwg.mxu0
      %1336 = vmatpush.msra.mxu0 %v1266
      %1337 = vmatpush.msra.mxu0 %v1264
      %1338 = vmatpush.msra.mxu0 %v1262
      %1339 = vmatpush.msra.mxu0 %v1260
      %1340 = vmatpush.msra.mxu0 %v1258
      %1341 = vmatpush.msra.mxu0 %v1256
      %1342 = vmatpush.msra.mxu0 %v1254
      %1343 = vmatpush.msra.mxu0 %v1252
      %1344 = vmatpush.msra.mxu0 %v1250
      %1345 = vmatpush.msra.mxu0 %v1248
      %1346 = vmatpush.msra.mxu0 %v1246
      %1347 = vmatpush.msra.mxu0 %v1244
      %1348 = vmatpush.msra.mxu0 %v1242
      %1349 = vmatpush.msra.mxu0 %v1240
      %1350 = vmatpush.msra.mxu0 %v1238
      %1351 = vmatpush.msra.mxu0 %v1236
      %1352 = vmatmul.f32.gmra.mxu0 %v926
      %v1353 = vpop.f32.mrf.mxu0
      %v1354 = vadd.f32 %v1331, %v1353
      %1355 = vmatmul.f32.gmra.mxu0 %v929
      %v1356 = vpop.f32.mrf.mxu0
      %v1357 = vadd.f32 %v1334, %v1356
      %1358 = vdwg.mxu0
      %s1359 = scalar_lea.vmem %s8, 1024
      %v1360 = vld [vmem:[%s1359] sm:$0xff]
      %v1361 = vld [vmem:[%s1359 + $0x8] sm:$0xff]
      %v1362 = vld [vmem:[%s1359 + $0x10] sm:$0xff]
      %v1363 = vld [vmem:[%s1359 + $0x18] sm:$0xff]
      %v1364 = vld [vmem:[%s1359 + $0x20] sm:$0xff]
      %v1365 = vld [vmem:[%s1359 + $0x28] sm:$0xff]
      %v1366 = vld [vmem:[%s1359 + $0x30] sm:$0xff]
      %v1367 = vld [vmem:[%s1359 + $0x38] sm:$0xff]
      %v1368 = vld [vmem:[%s1359 + $0x40] sm:$0xff]
      %v1369 = vld [vmem:[%s1359 + $0x48] sm:$0xff]
      %v1370 = vld [vmem:[%s1359 + $0x50] sm:$0xff]
      %v1371 = vld [vmem:[%s1359 + $0x58] sm:$0xff]
      %v1372 = vld [vmem:[%s1359 + $0x60] sm:$0xff]
      %v1373 = vld [vmem:[%s1359 + $0x68] sm:$0xff]
      %v1374 = vld [vmem:[%s1359 + $0x70] sm:$0xff]
      %v1375 = vld [vmem:[%s1359 + $0x78] sm:$0xff]
      %v1376 = vld [vmem:[%s1359 + $0x80] sm:$0xff]
      %v1377 = vld [vmem:[%s1359 + $0x88] sm:$0xff]
      %v1378 = vld [vmem:[%s1359 + $0x90] sm:$0xff]
      %v1379 = vld [vmem:[%s1359 + $0x98] sm:$0xff]
      %v1380 = vld [vmem:[%s1359 + $0xa0] sm:$0xff]
      %v1381 = vld [vmem:[%s1359 + $0xa8] sm:$0xff]
      %v1382 = vld [vmem:[%s1359 + $0xb0] sm:$0xff]
      %v1383 = vld [vmem:[%s1359 + $0xb8] sm:$0xff]
      %v1384 = vld [vmem:[%s1359 + $0xc0] sm:$0xff]
      %v1385 = vld [vmem:[%s1359 + $0xc8] sm:$0xff]
      %v1386 = vld [vmem:[%s1359 + $0xd0] sm:$0xff]
      %v1387 = vld [vmem:[%s1359 + $0xd8] sm:$0xff]
      %v1388 = vld [vmem:[%s1359 + $0xe0] sm:$0xff]
      %v1389 = vld [vmem:[%s1359 + $0xe8] sm:$0xff]
      %v1390 = vld [vmem:[%s1359 + $0xf0] sm:$0xff]
      %v1391 = vld [vmem:[%s1359 + $0xf8] sm:$0xff]
      %v1392 = vld [vmem:[%s1359 + $0x100] sm:$0xff]
      %v1393 = vld [vmem:[%s1359 + $0x108] sm:$0xff]
      %v1394 = vld [vmem:[%s1359 + $0x110] sm:$0xff]
      %v1395 = vld [vmem:[%s1359 + $0x118] sm:$0xff]
      %v1396 = vld [vmem:[%s1359 + $0x120] sm:$0xff]
      %v1397 = vld [vmem:[%s1359 + $0x128] sm:$0xff]
      %v1398 = vld [vmem:[%s1359 + $0x130] sm:$0xff]
      %v1399 = vld [vmem:[%s1359 + $0x138] sm:$0xff]
      %v1400 = vld [vmem:[%s1359 + $0x140] sm:$0xff]
      %v1401 = vld [vmem:[%s1359 + $0x148] sm:$0xff]
      %v1402 = vld [vmem:[%s1359 + $0x150] sm:$0xff]
      %v1403 = vld [vmem:[%s1359 + $0x158] sm:$0xff]
      %v1404 = vld [vmem:[%s1359 + $0x160] sm:$0xff]
      %v1405 = vld [vmem:[%s1359 + $0x168] sm:$0xff]
      %v1406 = vld [vmem:[%s1359 + $0x170] sm:$0xff]
      %v1407 = vld [vmem:[%s1359 + $0x178] sm:$0xff]
      %v1408 = vld [vmem:[%s1359 + $0x180] sm:$0xff]
      %v1409 = vld [vmem:[%s1359 + $0x188] sm:$0xff]
      %v1410 = vld [vmem:[%s1359 + $0x190] sm:$0xff]
      %v1411 = vld [vmem:[%s1359 + $0x198] sm:$0xff]
      %v1412 = vld [vmem:[%s1359 + $0x1a0] sm:$0xff]
      %v1413 = vld [vmem:[%s1359 + $0x1a8] sm:$0xff]
      %v1414 = vld [vmem:[%s1359 + $0x1b0] sm:$0xff]
      %v1415 = vld [vmem:[%s1359 + $0x1b8] sm:$0xff]
      %v1416 = vld [vmem:[%s1359 + $0x1c0] sm:$0xff]
      %v1417 = vld [vmem:[%s1359 + $0x1c8] sm:$0xff]
      %v1418 = vld [vmem:[%s1359 + $0x1d0] sm:$0xff]
      %v1419 = vld [vmem:[%s1359 + $0x1d8] sm:$0xff]
      %v1420 = vld [vmem:[%s1359 + $0x1e0] sm:$0xff]
      %v1421 = vld [vmem:[%s1359 + $0x1e8] sm:$0xff]
      %v1422 = vld [vmem:[%s1359 + $0x1f0] sm:$0xff]
      %v1423 = vld [vmem:[%s1359 + $0x1f8] sm:$0xff]
      %1424 = vmatpush.msra.mxu0 %v1390
      %1425 = vmatpush.msra.mxu0 %v1388
      %1426 = vmatpush.msra.mxu0 %v1386
      %1427 = vmatpush.msra.mxu0 %v1384
      %1428 = vmatpush.msra.mxu0 %v1382
      %1429 = vmatpush.msra.mxu0 %v1380
      %1430 = vmatpush.msra.mxu0 %v1378
      %1431 = vmatpush.msra.mxu0 %v1376
      %1432 = vmatpush.msra.mxu0 %v1374
      %1433 = vmatpush.msra.mxu0 %v1372
      %1434 = vmatpush.msra.mxu0 %v1370
      %1435 = vmatpush.msra.mxu0 %v1368
      %1436 = vmatpush.msra.mxu0 %v1366
      %1437 = vmatpush.msra.mxu0 %v1364
      %1438 = vmatpush.msra.mxu0 %v1362
      %1439 = vmatpush.msra.mxu0 %v1360
      %1440 = vmatmul.f32.gmra.mxu0 %v903
      %v1441 = vpop.f32.mrf.mxu0
      %v1442 = vadd.f32 0.0, %v1441
      %1443 = vmatmul.f32.gmra.mxu0 %v906
      %v1444 = vpop.f32.mrf.mxu0
      %v1445 = vadd.f32 0.0, %v1444
      %1446 = vdwg.mxu0
      %1447 = vmatpush.msra.mxu0 %v1422
      %1448 = vmatpush.msra.mxu0 %v1420
      %1449 = vmatpush.msra.mxu0 %v1418
      %1450 = vmatpush.msra.mxu0 %v1416
      %1451 = vmatpush.msra.mxu0 %v1414
      %1452 = vmatpush.msra.mxu0 %v1412
      %1453 = vmatpush.msra.mxu0 %v1410
      %1454 = vmatpush.msra.mxu0 %v1408
      %1455 = vmatpush.msra.mxu0 %v1406
      %1456 = vmatpush.msra.mxu0 %v1404
      %1457 = vmatpush.msra.mxu0 %v1402
      %1458 = vmatpush.msra.mxu0 %v1400
      %1459 = vmatpush.msra.mxu0 %v1398
      %1460 = vmatpush.msra.mxu0 %v1396
      %1461 = vmatpush.msra.mxu0 %v1394
      %1462 = vmatpush.msra.mxu0 %v1392
      %1463 = vmatmul.f32.gmra.mxu0 %v926
      %v1464 = vpop.f32.mrf.mxu0
      %v1465 = vadd.f32 %v1442, %v1464
      %1466 = vmatmul.f32.gmra.mxu0 %v929
      %v1467 = vpop.f32.mrf.mxu0
      %v1468 = vadd.f32 %v1445, %v1467
      %1469 = vdwg.mxu0
      %1470 = vmatpush.msra.mxu0 %v1391
      %1471 = vmatpush.msra.mxu0 %v1389
      %1472 = vmatpush.msra.mxu0 %v1387
      %1473 = vmatpush.msra.mxu0 %v1385
      %1474 = vmatpush.msra.mxu0 %v1383
      %1475 = vmatpush.msra.mxu0 %v1381
      %1476 = vmatpush.msra.mxu0 %v1379
      %1477 = vmatpush.msra.mxu0 %v1377
      %1478 = vmatpush.msra.mxu0 %v1375
      %1479 = vmatpush.msra.mxu0 %v1373
      %1480 = vmatpush.msra.mxu0 %v1371
      %1481 = vmatpush.msra.mxu0 %v1369
      %1482 = vmatpush.msra.mxu0 %v1367
      %1483 = vmatpush.msra.mxu0 %v1365
      %1484 = vmatpush.msra.mxu0 %v1363
      %1485 = vmatpush.msra.mxu0 %v1361
      %1486 = vmatmul.f32.gmra.mxu0 %v903
      %v1487 = vpop.f32.mrf.mxu0
      %v1488 = vadd.f32 0.0, %v1487
      %1489 = vmatmul.f32.gmra.mxu0 %v906
      %v1490 = vpop.f32.mrf.mxu0
      %v1491 = vadd.f32 0.0, %v1490
      %1492 = vdwg.mxu0
      %1493 = vmatpush.msra.mxu0 %v1423
      %1494 = vmatpush.msra.mxu0 %v1421
      %1495 = vmatpush.msra.mxu0 %v1419
      %1496 = vmatpush.msra.mxu0 %v1417
      %1497 = vmatpush.msra.mxu0 %v1415
      %1498 = vmatpush.msra.mxu0 %v1413
      %1499 = vmatpush.msra.mxu0 %v1411
      %1500 = vmatpush.msra.mxu0 %v1409
      %1501 = vmatpush.msra.mxu0 %v1407
      %1502 = vmatpush.msra.mxu0 %v1405
      %1503 = vmatpush.msra.mxu0 %v1403
      %1504 = vmatpush.msra.mxu0 %v1401
      %1505 = vmatpush.msra.mxu0 %v1399
      %1506 = vmatpush.msra.mxu0 %v1397
      %1507 = vmatpush.msra.mxu0 %v1395
      %1508 = vmatpush.msra.mxu0 %v1393
      %1509 = vmatmul.f32.gmra.mxu0 %v926
      %v1510 = vpop.f32.mrf.mxu0
      %v1511 = vadd.f32 %v1488, %v1510
      %1512 = vmatmul.f32.gmra.mxu0 %v929
      %v1513 = vpop.f32.mrf.mxu0
      %v1514 = vadd.f32 %v1491, %v1513
      %1515 = vdwg.mxu0
      %1516 = vmatpush.msra.mxu0 %v1168
      %1517 = vmatpush.msra.mxu0 %v1166
      %1518 = vmatpush.msra.mxu0 %v1164
      %1519 = vmatpush.msra.mxu0 %v1162
      %1520 = vmatpush.msra.mxu0 %v1160
      %1521 = vmatpush.msra.mxu0 %v1158
      %1522 = vmatpush.msra.mxu0 %v1156
      %1523 = vmatpush.msra.mxu0 %v1154
      %1524 = vmatpush.msra.mxu0 %v1152
      %1525 = vmatpush.msra.mxu0 %v1150
      %1526 = vmatpush.msra.mxu0 %v1148
      %1527 = vmatpush.msra.mxu0 %v1146
      %1528 = vmatpush.msra.mxu0 %v1144
      %1529 = vmatpush.msra.mxu0 %v1142
      %1530 = vmatpush.msra.mxu0 %v1140
      %1531 = vmatpush.msra.mxu0 %v1138
      %1532 = vmatmul.f32.gmra.mxu0 %v1134
      %v1533 = vpop.f32.mrf.mxu0
      %v1534 = vadd.f32 0.0, %v1533
      %1535 = vmatmul.f32.gmra.mxu0 %v1136
      %v1536 = vpop.f32.mrf.mxu0
      %v1537 = vadd.f32 0.0, %v1536
      %1538 = vdwg.mxu0
      %1539 = vmatpush.msra.mxu0 %v1200
      %1540 = vmatpush.msra.mxu0 %v1198
      %1541 = vmatpush.msra.mxu0 %v1196
      %1542 = vmatpush.msra.mxu0 %v1194
      %1543 = vmatpush.msra.mxu0 %v1192
      %1544 = vmatpush.msra.mxu0 %v1190
      %1545 = vmatpush.msra.mxu0 %v1188
      %1546 = vmatpush.msra.mxu0 %v1186
      %1547 = vmatpush.msra.mxu0 %v1184
      %1548 = vmatpush.msra.mxu0 %v1182
      %1549 = vmatpush.msra.mxu0 %v1180
      %1550 = vmatpush.msra.mxu0 %v1178
      %1551 = vmatpush.msra.mxu0 %v1176
      %1552 = vmatpush.msra.mxu0 %v1174
      %1553 = vmatpush.msra.mxu0 %v1172
      %1554 = vmatpush.msra.mxu0 %v1170
      %1555 = vmatmul.f32.gmra.mxu0 %v1135
      %v1556 = vpop.f32.mrf.mxu0
      %v1557 = vadd.f32 %v1534, %v1556
      %1558 = vmatmul.f32.gmra.mxu0 %v1137
      %v1559 = vpop.f32.mrf.mxu0
      %v1560 = vadd.f32 %v1537, %v1559
      %1561 = vdwg.mxu0
      %1562 = vmatpush.msra.mxu0 %v1169
      %1563 = vmatpush.msra.mxu0 %v1167
      %1564 = vmatpush.msra.mxu0 %v1165
      %1565 = vmatpush.msra.mxu0 %v1163
      %1566 = vmatpush.msra.mxu0 %v1161
      %1567 = vmatpush.msra.mxu0 %v1159
      %1568 = vmatpush.msra.mxu0 %v1157
      %1569 = vmatpush.msra.mxu0 %v1155
      %1570 = vmatpush.msra.mxu0 %v1153
      %1571 = vmatpush.msra.mxu0 %v1151
      %1572 = vmatpush.msra.mxu0 %v1149
      %1573 = vmatpush.msra.mxu0 %v1147
      %1574 = vmatpush.msra.mxu0 %v1145
      %1575 = vmatpush.msra.mxu0 %v1143
      %1576 = vmatpush.msra.mxu0 %v1141
      %1577 = vmatpush.msra.mxu0 %v1139
      %1578 = vmatmul.f32.gmra.mxu0 %v1134
      %v1579 = vpop.f32.mrf.mxu0
      %v1580 = vadd.f32 0.0, %v1579
      %1581 = vmatmul.f32.gmra.mxu0 %v1136
      %v1582 = vpop.f32.mrf.mxu0
      %v1583 = vadd.f32 0.0, %v1582
      %1584 = vdwg.mxu0
      %1585 = vmatpush.msra.mxu0 %v1201
      %1586 = vmatpush.msra.mxu0 %v1199
      %1587 = vmatpush.msra.mxu0 %v1197
      %1588 = vmatpush.msra.mxu0 %v1195
      %1589 = vmatpush.msra.mxu0 %v1193
      %1590 = vmatpush.msra.mxu0 %v1191
      %1591 = vmatpush.msra.mxu0 %v1189
      %1592 = vmatpush.msra.mxu0 %v1187
      %1593 = vmatpush.msra.mxu0 %v1185
      %1594 = vmatpush.msra.mxu0 %v1183
      %1595 = vmatpush.msra.mxu0 %v1181
      %1596 = vmatpush.msra.mxu0 %v1179
      %1597 = vmatpush.msra.mxu0 %v1177
      %1598 = vmatpush.msra.mxu0 %v1175
      %1599 = vmatpush.msra.mxu0 %v1173
      %1600 = vmatpush.msra.mxu0 %v1171
      %1601 = vmatmul.f32.gmra.mxu0 %v1135
      %v1602 = vpop.f32.mrf.mxu0
      %v1603 = vadd.f32 %v1580, %v1602
      %1604 = vmatmul.f32.gmra.mxu0 %v1137
      %v1605 = vpop.f32.mrf.mxu0
      %v1606 = vadd.f32 %v1583, %v1605
      %1607 = vdwg.mxu0
      %1608 = vmatpush.msra.mxu0 %v1233
      %1609 = vmatpush.msra.mxu0 %v1231
      %1610 = vmatpush.msra.mxu0 %v1229
      %1611 = vmatpush.msra.mxu0 %v1227
      %1612 = vmatpush.msra.mxu0 %v1225
      %1613 = vmatpush.msra.mxu0 %v1223
      %1614 = vmatpush.msra.mxu0 %v1221
      %1615 = vmatpush.msra.mxu0 %v1219
      %1616 = vmatpush.msra.mxu0 %v1217
      %1617 = vmatpush.msra.mxu0 %v1215
      %1618 = vmatpush.msra.mxu0 %v1213
      %1619 = vmatpush.msra.mxu0 %v1211
      %1620 = vmatpush.msra.mxu0 %v1209
      %1621 = vmatpush.msra.mxu0 %v1207
      %1622 = vmatpush.msra.mxu0 %v1205
      %1623 = vmatpush.msra.mxu0 %v1203
      %1624 = vmatmul.f32.gmra.mxu0 %v1134
      %v1625 = vpop.f32.mrf.mxu0
      %v1626 = vadd.f32 0.0, %v1625
      %1627 = vmatmul.f32.gmra.mxu0 %v1136
      %v1628 = vpop.f32.mrf.mxu0
      %v1629 = vadd.f32 0.0, %v1628
      %1630 = vdwg.mxu0
      %1631 = vmatpush.msra.mxu0 %v1265
      %1632 = vmatpush.msra.mxu0 %v1263
      %1633 = vmatpush.msra.mxu0 %v1261
      %1634 = vmatpush.msra.mxu0 %v1259
      %1635 = vmatpush.msra.mxu0 %v1257
      %1636 = vmatpush.msra.mxu0 %v1255
      %1637 = vmatpush.msra.mxu0 %v1253
      %1638 = vmatpush.msra.mxu0 %v1251
      %1639 = vmatpush.msra.mxu0 %v1249
      %1640 = vmatpush.msra.mxu0 %v1247
      %1641 = vmatpush.msra.mxu0 %v1245
      %1642 = vmatpush.msra.mxu0 %v1243
      %1643 = vmatpush.msra.mxu0 %v1241
      %1644 = vmatpush.msra.mxu0 %v1239
      %1645 = vmatpush.msra.mxu0 %v1237
      %1646 = vmatpush.msra.mxu0 %v1235
      %1647 = vmatmul.f32.gmra.mxu0 %v1135
      %v1648 = vpop.f32.mrf.mxu0
      %v1649 = vadd.f32 %v1626, %v1648
      %1650 = vmatmul.f32.gmra.mxu0 %v1137
      %v1651 = vpop.f32.mrf.mxu0
      %v1652 = vadd.f32 %v1629, %v1651
      %1653 = vdwg.mxu0
      %1654 = vmatpush.msra.mxu0 %v1234
      %1655 = vmatpush.msra.mxu0 %v1232
      %1656 = vmatpush.msra.mxu0 %v1230
      %1657 = vmatpush.msra.mxu0 %v1228
      %1658 = vmatpush.msra.mxu0 %v1226
      %1659 = vmatpush.msra.mxu0 %v1224
      %1660 = vmatpush.msra.mxu0 %v1222
      %1661 = vmatpush.msra.mxu0 %v1220
      %1662 = vmatpush.msra.mxu0 %v1218
      %1663 = vmatpush.msra.mxu0 %v1216
      %1664 = vmatpush.msra.mxu0 %v1214
      %1665 = vmatpush.msra.mxu0 %v1212
      %1666 = vmatpush.msra.mxu0 %v1210
      %1667 = vmatpush.msra.mxu0 %v1208
      %1668 = vmatpush.msra.mxu0 %v1206
      %1669 = vmatpush.msra.mxu0 %v1204
      %1670 = vmatmul.f32.gmra.mxu0 %v1134
      %v1671 = vpop.f32.mrf.mxu0
      %v1672 = vadd.f32 0.0, %v1671
      %1673 = vmatmul.f32.gmra.mxu0 %v1136
      %v1674 = vpop.f32.mrf.mxu0
      %v1675 = vadd.f32 0.0, %v1674
      %1676 = vdwg.mxu0
      %1677 = vmatpush.msra.mxu0 %v1266
      %1678 = vmatpush.msra.mxu0 %v1264
      %1679 = vmatpush.msra.mxu0 %v1262
      %1680 = vmatpush.msra.mxu0 %v1260
      %1681 = vmatpush.msra.mxu0 %v1258
      %1682 = vmatpush.msra.mxu0 %v1256
      %1683 = vmatpush.msra.mxu0 %v1254
      %1684 = vmatpush.msra.mxu0 %v1252
      %1685 = vmatpush.msra.mxu0 %v1250
      %1686 = vmatpush.msra.mxu0 %v1248
      %1687 = vmatpush.msra.mxu0 %v1246
      %1688 = vmatpush.msra.mxu0 %v1244
      %1689 = vmatpush.msra.mxu0 %v1242
      %1690 = vmatpush.msra.mxu0 %v1240
      %1691 = vmatpush.msra.mxu0 %v1238
      %1692 = vmatpush.msra.mxu0 %v1236
      %1693 = vmatmul.f32.gmra.mxu0 %v1135
      %v1694 = vpop.f32.mrf.mxu0
      %v1695 = vadd.f32 %v1672, %v1694
      %1696 = vmatmul.f32.gmra.mxu0 %v1137
      %v1697 = vpop.f32.mrf.mxu0
      %v1698 = vadd.f32 %v1675, %v1697
      %1699 = vdwg.mxu0
      %1700 = vmatpush.msra.mxu0 %v1390
      %1701 = vmatpush.msra.mxu0 %v1388
      %1702 = vmatpush.msra.mxu0 %v1386
      %1703 = vmatpush.msra.mxu0 %v1384
      %1704 = vmatpush.msra.mxu0 %v1382
      %1705 = vmatpush.msra.mxu0 %v1380
      %1706 = vmatpush.msra.mxu0 %v1378
      %1707 = vmatpush.msra.mxu0 %v1376
      %1708 = vmatpush.msra.mxu0 %v1374
      %1709 = vmatpush.msra.mxu0 %v1372
      %1710 = vmatpush.msra.mxu0 %v1370
      %1711 = vmatpush.msra.mxu0 %v1368
      %1712 = vmatpush.msra.mxu0 %v1366
      %1713 = vmatpush.msra.mxu0 %v1364
      %1714 = vmatpush.msra.mxu0 %v1362
      %1715 = vmatpush.msra.mxu0 %v1360
      %1716 = vmatmul.f32.gmra.mxu0 %v1134
      %v1717 = vpop.f32.mrf.mxu0
      %v1718 = vadd.f32 0.0, %v1717
      %1719 = vmatmul.f32.gmra.mxu0 %v1136
      %v1720 = vpop.f32.mrf.mxu0
      %v1721 = vadd.f32 0.0, %v1720
      %1722 = vdwg.mxu0
      %1723 = vmatpush.msra.mxu0 %v1422
      %1724 = vmatpush.msra.mxu0 %v1420
      %1725 = vmatpush.msra.mxu0 %v1418
      %1726 = vmatpush.msra.mxu0 %v1416
      %1727 = vmatpush.msra.mxu0 %v1414
      %1728 = vmatpush.msra.mxu0 %v1412
      %1729 = vmatpush.msra.mxu0 %v1410
      %1730 = vmatpush.msra.mxu0 %v1408
      %1731 = vmatpush.msra.mxu0 %v1406
      %1732 = vmatpush.msra.mxu0 %v1404
      %1733 = vmatpush.msra.mxu0 %v1402
      %1734 = vmatpush.msra.mxu0 %v1400
      %1735 = vmatpush.msra.mxu0 %v1398
      %1736 = vmatpush.msra.mxu0 %v1396
      %1737 = vmatpush.msra.mxu0 %v1394
      %1738 = vmatpush.msra.mxu0 %v1392
      %1739 = vmatmul.f32.gmra.mxu0 %v1135
      %v1740 = vpop.f32.mrf.mxu0
      %v1741 = vadd.f32 %v1718, %v1740
      %1742 = vmatmul.f32.gmra.mxu0 %v1137
      %v1743 = vpop.f32.mrf.mxu0
      %v1744 = vadd.f32 %v1721, %v1743
      %1745 = vdwg.mxu0
      %1746 = vmatpush.msra.mxu0 %v1391
      %1747 = vmatpush.msra.mxu0 %v1389
      %1748 = vmatpush.msra.mxu0 %v1387
      %1749 = vmatpush.msra.mxu0 %v1385
      %1750 = vmatpush.msra.mxu0 %v1383
      %1751 = vmatpush.msra.mxu0 %v1381
      %1752 = vmatpush.msra.mxu0 %v1379
      %1753 = vmatpush.msra.mxu0 %v1377
      %1754 = vmatpush.msra.mxu0 %v1375
      %1755 = vmatpush.msra.mxu0 %v1373
      %1756 = vmatpush.msra.mxu0 %v1371
      %1757 = vmatpush.msra.mxu0 %v1369
      %1758 = vmatpush.msra.mxu0 %v1367
      %1759 = vmatpush.msra.mxu0 %v1365
      %1760 = vmatpush.msra.mxu0 %v1363
      %1761 = vmatpush.msra.mxu0 %v1361
      %1762 = vmatmul.f32.gmra.mxu0 %v1134
      %v1763 = vpop.f32.mrf.mxu0
      %v1764 = vadd.f32 0.0, %v1763
      %1765 = vmatmul.f32.gmra.mxu0 %v1136
      %v1766 = vpop.f32.mrf.mxu0
      %v1767 = vadd.f32 0.0, %v1766
      %1768 = vdwg.mxu0
      %1769 = vmatpush.msra.mxu0 %v1423
      %1770 = vmatpush.msra.mxu0 %v1421
      %1771 = vmatpush.msra.mxu0 %v1419
      %1772 = vmatpush.msra.mxu0 %v1417
      %1773 = vmatpush.msra.mxu0 %v1415
      %1774 = vmatpush.msra.mxu0 %v1413
      %1775 = vmatpush.msra.mxu0 %v1411
      %1776 = vmatpush.msra.mxu0 %v1409
      %1777 = vmatpush.msra.mxu0 %v1407
      %1778 = vmatpush.msra.mxu0 %v1405
      %1779 = vmatpush.msra.mxu0 %v1403
      %1780 = vmatpush.msra.mxu0 %v1401
      %1781 = vmatpush.msra.mxu0 %v1399
      %1782 = vmatpush.msra.mxu0 %v1397
      %1783 = vmatpush.msra.mxu0 %v1395
      %1784 = vmatpush.msra.mxu0 %v1393
      %1785 = vmatmul.f32.gmra.mxu0 %v1135
      %v1786 = vpop.f32.mrf.mxu0
      %v1787 = vadd.f32 %v1764, %v1786
      %1788 = vmatmul.f32.gmra.mxu0 %v1137
      %v1789 = vpop.f32.mrf.mxu0
      %v1790 = vadd.f32 %v1767, %v1789
      %1791 = vdwg.mxu0
      %1792 = vmatpush.msra.mxu0 0.0
      %1793 = vmatpush.msra.mxu0 0.0
      %1794 = vmatpush.msra.mxu0 0.0
      %1795 = vmatpush.msra.mxu0 0.0
      %1796 = vmatpush.msra.mxu0 0.0
      %1797 = vmatpush.msra.mxu0 0.0
      %1798 = vmatpush.msra.mxu0 0.0
      %1799 = vmatpush.msra.mxu0 0.0
      %1800 = vmatpush.msra.mxu0 0.0
      %1801 = vmatpush.msra.mxu0 0.0
      %1802 = vmatpush.msra.mxu0 0.0
      %1803 = vmatpush.msra.mxu0 0.0
      %1804 = vmatpush.msra.mxu0 0.0
      %1805 = vmatpush.msra.mxu0 0.0
      %1806 = vmatpush.msra.mxu0 %v1560
      %1807 = vmatpush.msra.mxu0 %v1557
      %1808 = vmatmul.f32.gmra.mxu0 %v596
      %v1809 = vpop.f32.mrf.mxu0
      %v1810 = vadd.f32 %v1308, %v1809
      %1811 = vmatmul.f32.gmra.mxu0 %v599
      %v1812 = vpop.f32.mrf.mxu0
      %v1813 = vadd.f32 %v1311, %v1812
      %1814 = vdwg.mxu0
      %1815 = vmatpush.msra.mxu0 0.0
      %1816 = vmatpush.msra.mxu0 0.0
      %1817 = vmatpush.msra.mxu0 0.0
      %1818 = vmatpush.msra.mxu0 0.0
      %1819 = vmatpush.msra.mxu0 0.0
      %1820 = vmatpush.msra.mxu0 0.0
      %1821 = vmatpush.msra.mxu0 0.0
      %1822 = vmatpush.msra.mxu0 0.0
      %1823 = vmatpush.msra.mxu0 0.0
      %1824 = vmatpush.msra.mxu0 0.0
      %1825 = vmatpush.msra.mxu0 0.0
      %1826 = vmatpush.msra.mxu0 0.0
      %1827 = vmatpush.msra.mxu0 0.0
      %1828 = vmatpush.msra.mxu0 0.0
      %1829 = vmatpush.msra.mxu0 %v1606
      %1830 = vmatpush.msra.mxu0 %v1603
      %1831 = vmatmul.f32.gmra.mxu0 %v596
      %v1832 = vpop.f32.mrf.mxu0
      %v1833 = vadd.f32 %v1354, %v1832
      %1834 = vmatmul.f32.gmra.mxu0 %v599
      %v1835 = vpop.f32.mrf.mxu0
      %v1836 = vadd.f32 %v1357, %v1835
      %1837 = vdwg.mxu0
      %v1838 = vadd.f32 %v1810, %v1741
      %v1839 = vadd.f32 %v1833, %v1787
      %v1840 = vadd.f32 %v1813, %v1744
      %v1841 = vadd.f32 %v1836, %v1790
      %v1842 = vld [vmem:[%s9] sm:$0x3]
      %v1844 = vperm.slane %v1842, 0
      %v1845 = vperm.slane %v1842, 1
      %v1848 = vadd.f32 %v1838, %v1844
      %v1849 = vadd.f32 %v1839, %v1845
      %v1850 = vadd.f32 %v1840, %v1844
      %v1851 = vadd.f32 %v1841, %v1845
      %1852 = vmatpush.msra.mxu0 %v1168
      %1853 = vmatpush.msra.mxu0 %v1166
      %1854 = vmatpush.msra.mxu0 %v1164
      %1855 = vmatpush.msra.mxu0 %v1162
      %1856 = vmatpush.msra.mxu0 %v1160
      %1857 = vmatpush.msra.mxu0 %v1158
      %1858 = vmatpush.msra.mxu0 %v1156
      %1859 = vmatpush.msra.mxu0 %v1154
      %1860 = vmatpush.msra.mxu0 %v1152
      %1861 = vmatpush.msra.mxu0 %v1150
      %1862 = vmatpush.msra.mxu0 %v1148
      %1863 = vmatpush.msra.mxu0 %v1146
      %1864 = vmatpush.msra.mxu0 %v1144
      %1865 = vmatpush.msra.mxu0 %v1142
      %1866 = vmatpush.msra.mxu0 %v1140
      %1867 = vmatpush.msra.mxu0 %v1138
      %1868 = vmatmul.f32.gmra.mxu0 %v903
      %v1869 = vpop.f32.mrf.mxu0
      %v1870 = vadd.f32 %v1649, %v1869
      %1871 = vmatmul.f32.gmra.mxu0 %v906
      %v1872 = vpop.f32.mrf.mxu0
      %v1873 = vadd.f32 %v1652, %v1872
      %1874 = vdwg.mxu0
      %1875 = vmatpush.msra.mxu0 %v1200
      %1876 = vmatpush.msra.mxu0 %v1198
      %1877 = vmatpush.msra.mxu0 %v1196
      %1878 = vmatpush.msra.mxu0 %v1194
      %1879 = vmatpush.msra.mxu0 %v1192
      %1880 = vmatpush.msra.mxu0 %v1190
      %1881 = vmatpush.msra.mxu0 %v1188
      %1882 = vmatpush.msra.mxu0 %v1186
      %1883 = vmatpush.msra.mxu0 %v1184
      %1884 = vmatpush.msra.mxu0 %v1182
      %1885 = vmatpush.msra.mxu0 %v1180
      %1886 = vmatpush.msra.mxu0 %v1178
      %1887 = vmatpush.msra.mxu0 %v1176
      %1888 = vmatpush.msra.mxu0 %v1174
      %1889 = vmatpush.msra.mxu0 %v1172
      %1890 = vmatpush.msra.mxu0 %v1170
      %1891 = vmatmul.f32.gmra.mxu0 %v926
      %v1892 = vpop.f32.mrf.mxu0
      %v1893 = vadd.f32 %v1870, %v1892
      %1894 = vmatmul.f32.gmra.mxu0 %v929
      %v1895 = vpop.f32.mrf.mxu0
      %v1896 = vadd.f32 %v1873, %v1895
      %1897 = vdwg.mxu0
      %1898 = vmatpush.msra.mxu0 %v1169
      %1899 = vmatpush.msra.mxu0 %v1167
      %1900 = vmatpush.msra.mxu0 %v1165
      %1901 = vmatpush.msra.mxu0 %v1163
      %1902 = vmatpush.msra.mxu0 %v1161
      %1903 = vmatpush.msra.mxu0 %v1159
      %1904 = vmatpush.msra.mxu0 %v1157
      %1905 = vmatpush.msra.mxu0 %v1155
      %1906 = vmatpush.msra.mxu0 %v1153
      %1907 = vmatpush.msra.mxu0 %v1151
      %1908 = vmatpush.msra.mxu0 %v1149
      %1909 = vmatpush.msra.mxu0 %v1147
      %1910 = vmatpush.msra.mxu0 %v1145
      %1911 = vmatpush.msra.mxu0 %v1143
      %1912 = vmatpush.msra.mxu0 %v1141
      %1913 = vmatpush.msra.mxu0 %v1139
      %1914 = vmatmul.f32.gmra.mxu0 %v903
      %v1915 = vpop.f32.mrf.mxu0
      %v1916 = vadd.f32 %v1695, %v1915
      %1917 = vmatmul.f32.gmra.mxu0 %v906
      %v1918 = vpop.f32.mrf.mxu0
      %v1919 = vadd.f32 %v1698, %v1918
      %1920 = vdwg.mxu0
      %1921 = vmatpush.msra.mxu0 %v1201
      %1922 = vmatpush.msra.mxu0 %v1199
      %1923 = vmatpush.msra.mxu0 %v1197
      %1924 = vmatpush.msra.mxu0 %v1195
      %1925 = vmatpush.msra.mxu0 %v1193
      %1926 = vmatpush.msra.mxu0 %v1191
      %1927 = vmatpush.msra.mxu0 %v1189
      %1928 = vmatpush.msra.mxu0 %v1187
      %1929 = vmatpush.msra.mxu0 %v1185
      %1930 = vmatpush.msra.mxu0 %v1183
      %1931 = vmatpush.msra.mxu0 %v1181
      %1932 = vmatpush.msra.mxu0 %v1179
      %1933 = vmatpush.msra.mxu0 %v1177
      %1934 = vmatpush.msra.mxu0 %v1175
      %1935 = vmatpush.msra.mxu0 %v1173
      %1936 = vmatpush.msra.mxu0 %v1171
      %1937 = vmatmul.f32.gmra.mxu0 %v926
      %v1938 = vpop.f32.mrf.mxu0
      %v1939 = vadd.f32 %v1916, %v1938
      %1940 = vmatmul.f32.gmra.mxu0 %v929
      %v1941 = vpop.f32.mrf.mxu0
      %v1942 = vadd.f32 %v1919, %v1941
      %1943 = vdwg.mxu0
      %1944 = vmatpush.msra.mxu0 0.0
      %1945 = vmatpush.msra.mxu0 0.0
      %1946 = vmatpush.msra.mxu0 0.0
      %1947 = vmatpush.msra.mxu0 0.0
      %1948 = vmatpush.msra.mxu0 0.0
      %1949 = vmatpush.msra.mxu0 0.0
      %1950 = vmatpush.msra.mxu0 0.0
      %1951 = vmatpush.msra.mxu0 0.0
      %1952 = vmatpush.msra.mxu0 0.0
      %1953 = vmatpush.msra.mxu0 0.0
      %1954 = vmatpush.msra.mxu0 0.0
      %1955 = vmatpush.msra.mxu0 0.0
      %1956 = vmatpush.msra.mxu0 0.0
      %1957 = vmatpush.msra.mxu0 0.0
      %1958 = vmatpush.msra.mxu0 %v1468
      %1959 = vmatpush.msra.mxu0 %v1465
      %1960 = vmatmul.f32.gmra.mxu0 %v625
      %v1961 = vpop.f32.mrf.mxu0
      %v1962 = vadd.f32 0.0, %v1961
      %1963 = vmatmul.f32.gmra.mxu0 %v628
      %v1964 = vpop.f32.mrf.mxu0
      %v1965 = vadd.f32 0.0, %v1964
      %1966 = vdwg.mxu0
      %1967 = vmatpush.msra.mxu0 0.0
      %1968 = vmatpush.msra.mxu0 0.0
      %1969 = vmatpush.msra.mxu0 0.0
      %1970 = vmatpush.msra.mxu0 0.0
      %1971 = vmatpush.msra.mxu0 0.0
      %1972 = vmatpush.msra.mxu0 0.0
      %1973 = vmatpush.msra.mxu0 0.0
      %1974 = vmatpush.msra.mxu0 0.0
      %1975 = vmatpush.msra.mxu0 0.0
      %1976 = vmatpush.msra.mxu0 0.0
      %1977 = vmatpush.msra.mxu0 0.0
      %1978 = vmatpush.msra.mxu0 0.0
      %1979 = vmatpush.msra.mxu0 0.0
      %1980 = vmatpush.msra.mxu0 0.0
      %1981 = vmatpush.msra.mxu0 %v1514
      %1982 = vmatpush.msra.mxu0 %v1511
      %1983 = vmatmul.f32.gmra.mxu0 %v625
      %v1984 = vpop.f32.mrf.mxu0
      %v1985 = vadd.f32 0.0, %v1984
      %1986 = vmatmul.f32.gmra.mxu0 %v628
      %v1987 = vpop.f32.mrf.mxu0
      %v1988 = vadd.f32 0.0, %v1987
      %1989 = vdwg.mxu0
      %v1990 = vadd.f32 %v1893, %v1962
      %v1991 = vadd.f32 %v1939, %v1985
      %v1992 = vadd.f32 %v1896, %v1965
      %v1993 = vadd.f32 %v1942, %v1988
      %v1994 = vadd.f32 %v1990, %v1844
      %v1995 = vadd.f32 %v1991, %v1845
      %v1996 = vadd.f32 %v1992, %v1844
      %v1997 = vadd.f32 %v1993, %v1845
      %v1998 = vld [vmem:[%s10] sm:$0xff]
      %v1999 = vld [vmem:[%s10 + $0x8] sm:$0xff]
      %v2000 = vld [vmem:[%s10 + $0x10] sm:$0xff]
      %v2001 = vld [vmem:[%s10 + $0x18] sm:$0xff]
      %v2002 = vld [vmem:[%s10 + $0x20] sm:$0xff]
      %v2003 = vld [vmem:[%s10 + $0x28] sm:$0xff]
      %v2004 = vld [vmem:[%s10 + $0x30] sm:$0xff]
      %v2005 = vld [vmem:[%s10 + $0x38] sm:$0xff]
      %v2006 = vld [vmem:[%s10 + $0x40] sm:$0xff]
      %v2007 = vld [vmem:[%s10 + $0x48] sm:$0xff]
      %v2008 = vld [vmem:[%s10 + $0x50] sm:$0xff]
      %v2009 = vld [vmem:[%s10 + $0x58] sm:$0xff]
      %v2010 = vld [vmem:[%s10 + $0x60] sm:$0xff]
      %v2011 = vld [vmem:[%s10 + $0x68] sm:$0xff]
      %v2012 = vld [vmem:[%s10 + $0x70] sm:$0xff]
      %v2013 = vld [vmem:[%s10 + $0x78] sm:$0xff]
      %2014 = vmatpush.msra.mxu0 %v2013
      %2015 = vmatpush.msra.mxu0 %v2012
      %2016 = vmatpush.msra.mxu0 %v2011
      %2017 = vmatpush.msra.mxu0 %v2010
      %2018 = vmatpush.msra.mxu0 %v2009
      %2019 = vmatpush.msra.mxu0 %v2008
      %2020 = vmatpush.msra.mxu0 %v2007
      %2021 = vmatpush.msra.mxu0 %v2006
      %2022 = vmatpush.msra.mxu0 %v2005
      %2023 = vmatpush.msra.mxu0 %v2004
      %2024 = vmatpush.msra.mxu0 %v2003
      %2025 = vmatpush.msra.mxu0 %v2002
      %2026 = vmatpush.msra.mxu0 %v2001
      %2027 = vmatpush.msra.mxu0 %v2000
      %2028 = vmatpush.msra.mxu0 %v1999
      %2029 = vmatpush.msra.mxu0 %v1998
      %2030 = vmatmul.f32.gmra.mxu0 %v468
      %v2031 = vpop.f32.mrf.mxu0
      %v2032 = vadd.f32 0.0, %v2031
      %2033 = vmatmul.f32.gmra.mxu0 %v469
      %v2034 = vpop.f32.mrf.mxu0
      %v2035 = vadd.f32 0.0, %v2034
      %2036 = vdwg.mxu0
      %s2037 = scalar_lea.vmem %s10, 128
      %v2038 = vld [vmem:[%s2037] sm:$0xff]
      %v2039 = vld [vmem:[%s2037 + $0x8] sm:$0xff]
      %v2040 = vld [vmem:[%s2037 + $0x10] sm:$0xff]
      %v2041 = vld [vmem:[%s2037 + $0x18] sm:$0xff]
      %v2042 = vld [vmem:[%s2037 + $0x20] sm:$0xff]
      %v2043 = vld [vmem:[%s2037 + $0x28] sm:$0xff]
      %v2044 = vld [vmem:[%s2037 + $0x30] sm:$0xff]
      %v2045 = vld [vmem:[%s2037 + $0x38] sm:$0xff]
      %v2046 = vld [vmem:[%s2037 + $0x40] sm:$0xff]
      %v2047 = vld [vmem:[%s2037 + $0x48] sm:$0xff]
      %v2048 = vld [vmem:[%s2037 + $0x50] sm:$0xff]
      %v2049 = vld [vmem:[%s2037 + $0x58] sm:$0xff]
      %v2050 = vld [vmem:[%s2037 + $0x60] sm:$0xff]
      %v2051 = vld [vmem:[%s2037 + $0x68] sm:$0xff]
      %v2052 = vld [vmem:[%s2037 + $0x70] sm:$0xff]
      %v2053 = vld [vmem:[%s2037 + $0x78] sm:$0xff]
      %2054 = vmatpush.msra.mxu0 %v2053
      %2055 = vmatpush.msra.mxu0 %v2052
      %2056 = vmatpush.msra.mxu0 %v2051
      %2057 = vmatpush.msra.mxu0 %v2050
      %2058 = vmatpush.msra.mxu0 %v2049
      %2059 = vmatpush.msra.mxu0 %v2048
      %2060 = vmatpush.msra.mxu0 %v2047
      %2061 = vmatpush.msra.mxu0 %v2046
      %2062 = vmatpush.msra.mxu0 %v2045
      %2063 = vmatpush.msra.mxu0 %v2044
      %2064 = vmatpush.msra.mxu0 %v2043
      %2065 = vmatpush.msra.mxu0 %v2042
      %2066 = vmatpush.msra.mxu0 %v2041
      %2067 = vmatpush.msra.mxu0 %v2040
      %2068 = vmatpush.msra.mxu0 %v2039
      %2069 = vmatpush.msra.mxu0 %v2038
      %2070 = vmatmul.f32.gmra.mxu0 %v468
      %v2071 = vpop.f32.mrf.mxu0
      %v2072 = vadd.f32 0.0, %v2071
      %2073 = vmatmul.f32.gmra.mxu0 %v469
      %v2074 = vpop.f32.mrf.mxu0
      %v2075 = vadd.f32 0.0, %v2074
      %2076 = vdwg.mxu0
      %s2077 = scalar_lea.vmem %s10, 256
      %v2078 = vld [vmem:[%s2077] sm:$0xff]
      %v2079 = vld [vmem:[%s2077 + $0x8] sm:$0xff]
      %v2080 = vld [vmem:[%s2077 + $0x10] sm:$0xff]
      %v2081 = vld [vmem:[%s2077 + $0x18] sm:$0xff]
      %v2082 = vld [vmem:[%s2077 + $0x20] sm:$0xff]
      %v2083 = vld [vmem:[%s2077 + $0x28] sm:$0xff]
      %v2084 = vld [vmem:[%s2077 + $0x30] sm:$0xff]
      %v2085 = vld [vmem:[%s2077 + $0x38] sm:$0xff]
      %v2086 = vld [vmem:[%s2077 + $0x40] sm:$0xff]
      %v2087 = vld [vmem:[%s2077 + $0x48] sm:$0xff]
      %v2088 = vld [vmem:[%s2077 + $0x50] sm:$0xff]
      %v2089 = vld [vmem:[%s2077 + $0x58] sm:$0xff]
      %v2090 = vld [vmem:[%s2077 + $0x60] sm:$0xff]
      %v2091 = vld [vmem:[%s2077 + $0x68] sm:$0xff]
      %v2092 = vld [vmem:[%s2077 + $0x70] sm:$0xff]
      %v2093 = vld [vmem:[%s2077 + $0x78] sm:$0xff]
      %2094 = vmatpush.msra.mxu0 %v2093
      %2095 = vmatpush.msra.mxu0 %v2092
      %2096 = vmatpush.msra.mxu0 %v2091
      %2097 = vmatpush.msra.mxu0 %v2090
      %2098 = vmatpush.msra.mxu0 %v2089
      %2099 = vmatpush.msra.mxu0 %v2088
      %2100 = vmatpush.msra.mxu0 %v2087
      %2101 = vmatpush.msra.mxu0 %v2086
      %2102 = vmatpush.msra.mxu0 %v2085
      %2103 = vmatpush.msra.mxu0 %v2084
      %2104 = vmatpush.msra.mxu0 %v2083
      %2105 = vmatpush.msra.mxu0 %v2082
      %2106 = vmatpush.msra.mxu0 %v2081
      %2107 = vmatpush.msra.mxu0 %v2080
      %2108 = vmatpush.msra.mxu0 %v2079
      %2109 = vmatpush.msra.mxu0 %v2078
      %2110 = vmatmul.f32.gmra.mxu0 %v468
      %v2111 = vpop.f32.mrf.mxu0
      %v2112 = vadd.f32 0.0, %v2111
      %2113 = vmatmul.f32.gmra.mxu0 %v469
      %v2114 = vpop.f32.mrf.mxu0
      %v2115 = vadd.f32 0.0, %v2114
      %2116 = vdwg.mxu0
      %2117 = vmatpush.msra.mxu0 0.0
      %2118 = vmatpush.msra.mxu0 0.0
      %2119 = vmatpush.msra.mxu0 0.0
      %2120 = vmatpush.msra.mxu0 0.0
      %2121 = vmatpush.msra.mxu0 0.0
      %2122 = vmatpush.msra.mxu0 0.0
      %2123 = vmatpush.msra.mxu0 0.0
      %2124 = vmatpush.msra.mxu0 0.0
      %2125 = vmatpush.msra.mxu0 0.0
      %2126 = vmatpush.msra.mxu0 0.0
      %2127 = vmatpush.msra.mxu0 0.0
      %2128 = vmatpush.msra.mxu0 0.0
      %2129 = vmatpush.msra.mxu0 0.0
      %2130 = vmatpush.msra.mxu0 0.0
      %2131 = vmatpush.msra.mxu0 %v2035
      %2132 = vmatpush.msra.mxu0 %v2032
      %2133 = vmatmul.f32.gmra.mxu0 %v596
      %v2134 = vpop.f32.mrf.mxu0
      %v2135 = vadd.f32 %v2072, %v2134
      %2136 = vmatmul.f32.gmra.mxu0 %v599
      %v2137 = vpop.f32.mrf.mxu0
      %v2138 = vadd.f32 %v2075, %v2137
      %2139 = vdwg.mxu0
      %2140 = vmatpush.msra.mxu0 0.0
      %2141 = vmatpush.msra.mxu0 0.0
      %2142 = vmatpush.msra.mxu0 0.0
      %2143 = vmatpush.msra.mxu0 0.0
      %2144 = vmatpush.msra.mxu0 0.0
      %2145 = vmatpush.msra.mxu0 0.0
      %2146 = vmatpush.msra.mxu0 0.0
      %2147 = vmatpush.msra.mxu0 0.0
      %2148 = vmatpush.msra.mxu0 0.0
      %2149 = vmatpush.msra.mxu0 0.0
      %2150 = vmatpush.msra.mxu0 0.0
      %2151 = vmatpush.msra.mxu0 0.0
      %2152 = vmatpush.msra.mxu0 0.0
      %2153 = vmatpush.msra.mxu0 0.0
      %2154 = vmatpush.msra.mxu0 %v2115
      %2155 = vmatpush.msra.mxu0 %v2112
      %2156 = vmatmul.f32.gmra.mxu0 %v625
      %v2157 = vpop.f32.mrf.mxu0
      %v2158 = vadd.f32 0.0, %v2157
      %2159 = vmatmul.f32.gmra.mxu0 %v628
      %v2160 = vpop.f32.mrf.mxu0
      %v2161 = vadd.f32 0.0, %v2160
      %2162 = vdwg.mxu0
      %v2163 = vadd.f32 %v2135, %v2158
      %v2164 = vadd.f32 %v2138, %v2161
      %v2165 = vld [vmem:[%s11] sm:$0x1]
      %v2167 = vperm.slane %v2165, 0
      %v2169 = vadd.f32 %v2163, %v2167
      %v2170 = vadd.f32 %v2164, %v2167
      %s2171 = scalar_lea.vmem %s12, 256
      %v2172 = vld [vmem:[%s2171] sm:$0xff]
      %v2173 = vld [vmem:[%s2171 + $0x8] sm:$0xff]
      %v2174 = vld [vmem:[%s2171 + $0x10] sm:$0xff]
      %v2175 = vld [vmem:[%s2171 + $0x18] sm:$0xff]
      %v2176 = vld [vmem:[%s2171 + $0x20] sm:$0xff]
      %v2177 = vld [vmem:[%s2171 + $0x28] sm:$0xff]
      %v2178 = vld [vmem:[%s2171 + $0x30] sm:$0xff]
      %v2179 = vld [vmem:[%s2171 + $0x38] sm:$0xff]
      %v2180 = vld [vmem:[%s2171 + $0x40] sm:$0xff]
      %v2181 = vld [vmem:[%s2171 + $0x48] sm:$0xff]
      %v2182 = vld [vmem:[%s2171 + $0x50] sm:$0xff]
      %v2183 = vld [vmem:[%s2171 + $0x58] sm:$0xff]
      %v2184 = vld [vmem:[%s2171 + $0x60] sm:$0xff]
      %v2185 = vld [vmem:[%s2171 + $0x68] sm:$0xff]
      %v2186 = vld [vmem:[%s2171 + $0x70] sm:$0xff]
      %v2187 = vld [vmem:[%s2171 + $0x78] sm:$0xff]
      %v2188 = vld [vmem:[%s2171 + $0x80] sm:$0xff]
      %v2189 = vld [vmem:[%s2171 + $0x88] sm:$0xff]
      %v2190 = vld [vmem:[%s2171 + $0x90] sm:$0xff]
      %v2191 = vld [vmem:[%s2171 + $0x98] sm:$0xff]
      %v2192 = vld [vmem:[%s2171 + $0xa0] sm:$0xff]
      %v2193 = vld [vmem:[%s2171 + $0xa8] sm:$0xff]
      %v2194 = vld [vmem:[%s2171 + $0xb0] sm:$0xff]
      %v2195 = vld [vmem:[%s2171 + $0xb8] sm:$0xff]
      %v2196 = vld [vmem:[%s2171 + $0xc0] sm:$0xff]
      %v2197 = vld [vmem:[%s2171 + $0xc8] sm:$0xff]
      %v2198 = vld [vmem:[%s2171 + $0xd0] sm:$0xff]
      %v2199 = vld [vmem:[%s2171 + $0xd8] sm:$0xff]
      %v2200 = vld [vmem:[%s2171 + $0xe0] sm:$0xff]
      %v2201 = vld [vmem:[%s2171 + $0xe8] sm:$0xff]
      %v2202 = vld [vmem:[%s2171 + $0xf0] sm:$0xff]
      %v2203 = vld [vmem:[%s2171 + $0xf8] sm:$0xff]
      %v2204 = vld [vmem:[%s13] sm:$0x3]
      %v2206 = vperm.slane %v2204, 0
      %v2207 = vperm.slane %v2204, 1
      %2210 = vmatpush.msra.mxu0 %v2202
      %2211 = vmatpush.msra.mxu0 %v2200
      %2212 = vmatpush.msra.mxu0 %v2198
      %2213 = vmatpush.msra.mxu0 %v2196
      %2214 = vmatpush.msra.mxu0 %v2194
      %2215 = vmatpush.msra.mxu0 %v2192
      %2216 = vmatpush.msra.mxu0 %v2190
      %2217 = vmatpush.msra.mxu0 %v2188
      %2218 = vmatpush.msra.mxu0 %v2186
      %2219 = vmatpush.msra.mxu0 %v2184
      %2220 = vmatpush.msra.mxu0 %v2182
      %2221 = vmatpush.msra.mxu0 %v2180
      %2222 = vmatpush.msra.mxu0 %v2178
      %2223 = vmatpush.msra.mxu0 %v2176
      %2224 = vmatpush.msra.mxu0 %v2174
      %2225 = vmatpush.msra.mxu0 %v2172
      %2226 = vmatmul.f32.gmra.mxu0 %v2169
      %v2227 = vpop.f32.mrf.mxu0
      %v2228 = vadd.f32 %v2206, %v2227
      %2229 = vmatmul.f32.gmra.mxu0 %v2170
      %v2230 = vpop.f32.mrf.mxu0
      %v2231 = vadd.f32 %v2206, %v2230
      %2232 = vdwg.mxu0
      %2233 = vmatpush.msra.mxu0 %v2203
      %2234 = vmatpush.msra.mxu0 %v2201
      %2235 = vmatpush.msra.mxu0 %v2199
      %2236 = vmatpush.msra.mxu0 %v2197
      %2237 = vmatpush.msra.mxu0 %v2195
      %2238 = vmatpush.msra.mxu0 %v2193
      %2239 = vmatpush.msra.mxu0 %v2191
      %2240 = vmatpush.msra.mxu0 %v2189
      %2241 = vmatpush.msra.mxu0 %v2187
      %2242 = vmatpush.msra.mxu0 %v2185
      %2243 = vmatpush.msra.mxu0 %v2183
      %2244 = vmatpush.msra.mxu0 %v2181
      %2245 = vmatpush.msra.mxu0 %v2179
      %2246 = vmatpush.msra.mxu0 %v2177
      %2247 = vmatpush.msra.mxu0 %v2175
      %2248 = vmatpush.msra.mxu0 %v2173
      %2249 = vmatmul.f32.gmra.mxu0 %v2169
      %v2250 = vpop.f32.mrf.mxu0
      %v2251 = vadd.f32 %v2207, %v2250
      %2252 = vmatmul.f32.gmra.mxu0 %v2170
      %v2253 = vpop.f32.mrf.mxu0
      %v2254 = vadd.f32 %v2207, %v2253
      %2255 = vdwg.mxu0
      %s2256 = scalar_lea.vmem %s12, 512
      %v2257 = vld [vmem:[%s2256] sm:$0xff]
      %v2258 = vld [vmem:[%s2256 + $0x8] sm:$0xff]
      %v2259 = vld [vmem:[%s2256 + $0x10] sm:$0xff]
      %v2260 = vld [vmem:[%s2256 + $0x18] sm:$0xff]
      %v2261 = vld [vmem:[%s2256 + $0x20] sm:$0xff]
      %v2262 = vld [vmem:[%s2256 + $0x28] sm:$0xff]
      %v2263 = vld [vmem:[%s2256 + $0x30] sm:$0xff]
      %v2264 = vld [vmem:[%s2256 + $0x38] sm:$0xff]
      %v2265 = vld [vmem:[%s2256 + $0x40] sm:$0xff]
      %v2266 = vld [vmem:[%s2256 + $0x48] sm:$0xff]
      %v2267 = vld [vmem:[%s2256 + $0x50] sm:$0xff]
      %v2268 = vld [vmem:[%s2256 + $0x58] sm:$0xff]
      %v2269 = vld [vmem:[%s2256 + $0x60] sm:$0xff]
      %v2270 = vld [vmem:[%s2256 + $0x68] sm:$0xff]
      %v2271 = vld [vmem:[%s2256 + $0x70] sm:$0xff]
      %v2272 = vld [vmem:[%s2256 + $0x78] sm:$0xff]
      %v2273 = vld [vmem:[%s2256 + $0x80] sm:$0xff]
      %v2274 = vld [vmem:[%s2256 + $0x88] sm:$0xff]
      %v2275 = vld [vmem:[%s2256 + $0x90] sm:$0xff]
      %v2276 = vld [vmem:[%s2256 + $0x98] sm:$0xff]
      %v2277 = vld [vmem:[%s2256 + $0xa0] sm:$0xff]
      %v2278 = vld [vmem:[%s2256 + $0xa8] sm:$0xff]
      %v2279 = vld [vmem:[%s2256 + $0xb0] sm:$0xff]
      %v2280 = vld [vmem:[%s2256 + $0xb8] sm:$0xff]
      %v2281 = vld [vmem:[%s2256 + $0xc0] sm:$0xff]
      %v2282 = vld [vmem:[%s2256 + $0xc8] sm:$0xff]
      %v2283 = vld [vmem:[%s2256 + $0xd0] sm:$0xff]
      %v2284 = vld [vmem:[%s2256 + $0xd8] sm:$0xff]
      %v2285 = vld [vmem:[%s2256 + $0xe0] sm:$0xff]
      %v2286 = vld [vmem:[%s2256 + $0xe8] sm:$0xff]
      %v2287 = vld [vmem:[%s2256 + $0xf0] sm:$0xff]
      %v2288 = vld [vmem:[%s2256 + $0xf8] sm:$0xff]
      %v2289 = vld [vmem:[%s12] sm:$0xff]
      %v2290 = vld [vmem:[%s12 + $0x8] sm:$0xff]
      %v2291 = vld [vmem:[%s12 + $0x10] sm:$0xff]
      %v2292 = vld [vmem:[%s12 + $0x18] sm:$0xff]
      %v2293 = vld [vmem:[%s12 + $0x20] sm:$0xff]
      %v2294 = vld [vmem:[%s12 + $0x28] sm:$0xff]
      %v2295 = vld [vmem:[%s12 + $0x30] sm:$0xff]
      %v2296 = vld [vmem:[%s12 + $0x38] sm:$0xff]
      %v2297 = vld [vmem:[%s12 + $0x40] sm:$0xff]
      %v2298 = vld [vmem:[%s12 + $0x48] sm:$0xff]
      %v2299 = vld [vmem:[%s12 + $0x50] sm:$0xff]
      %v2300 = vld [vmem:[%s12 + $0x58] sm:$0xff]
      %v2301 = vld [vmem:[%s12 + $0x60] sm:$0xff]
      %v2302 = vld [vmem:[%s12 + $0x68] sm:$0xff]
      %v2303 = vld [vmem:[%s12 + $0x70] sm:$0xff]
      %v2304 = vld [vmem:[%s12 + $0x78] sm:$0xff]
      %v2305 = vld [vmem:[%s12 + $0x80] sm:$0xff]
      %v2306 = vld [vmem:[%s12 + $0x88] sm:$0xff]
      %v2307 = vld [vmem:[%s12 + $0x90] sm:$0xff]
      %v2308 = vld [vmem:[%s12 + $0x98] sm:$0xff]
      %v2309 = vld [vmem:[%s12 + $0xa0] sm:$0xff]
      %v2310 = vld [vmem:[%s12 + $0xa8] sm:$0xff]
      %v2311 = vld [vmem:[%s12 + $0xb0] sm:$0xff]
      %v2312 = vld [vmem:[%s12 + $0xb8] sm:$0xff]
      %v2313 = vld [vmem:[%s12 + $0xc0] sm:$0xff]
      %v2314 = vld [vmem:[%s12 + $0xc8] sm:$0xff]
      %v2315 = vld [vmem:[%s12 + $0xd0] sm:$0xff]
      %v2316 = vld [vmem:[%s12 + $0xd8] sm:$0xff]
      %v2317 = vld [vmem:[%s12 + $0xe0] sm:$0xff]
      %v2318 = vld [vmem:[%s12 + $0xe8] sm:$0xff]
      %v2319 = vld [vmem:[%s12 + $0xf0] sm:$0xff]
      %v2320 = vld [vmem:[%s12 + $0xf8] sm:$0xff]
      %2321 = vmatpush.msra.mxu0 %v2319
      %2322 = vmatpush.msra.mxu0 %v2317
      %2323 = vmatpush.msra.mxu0 %v2315
      %2324 = vmatpush.msra.mxu0 %v2313
      %2325 = vmatpush.msra.mxu0 %v2311
      %2326 = vmatpush.msra.mxu0 %v2309
      %2327 = vmatpush.msra.mxu0 %v2307
      %2328 = vmatpush.msra.mxu0 %v2305
      %2329 = vmatpush.msra.mxu0 %v2303
      %2330 = vmatpush.msra.mxu0 %v2301
      %2331 = vmatpush.msra.mxu0 %v2299
      %2332 = vmatpush.msra.mxu0 %v2297
      %2333 = vmatpush.msra.mxu0 %v2295
      %2334 = vmatpush.msra.mxu0 %v2293
      %2335 = vmatpush.msra.mxu0 %v2291
      %2336 = vmatpush.msra.mxu0 %v2289
      %2337 = vmatmul.f32.gmra.mxu0 %v2169
      %v2338 = vpop.f32.mrf.mxu0
      %v2339 = vadd.f32 0.0, %v2338
      %2340 = vmatmul.f32.gmra.mxu0 %v2170
      %v2341 = vpop.f32.mrf.mxu0
      %v2342 = vadd.f32 0.0, %v2341
      %2343 = vdwg.mxu0
      %2344 = vmatpush.msra.mxu0 %v2320
      %2345 = vmatpush.msra.mxu0 %v2318
      %2346 = vmatpush.msra.mxu0 %v2316
      %2347 = vmatpush.msra.mxu0 %v2314
      %2348 = vmatpush.msra.mxu0 %v2312
      %2349 = vmatpush.msra.mxu0 %v2310
      %2350 = vmatpush.msra.mxu0 %v2308
      %2351 = vmatpush.msra.mxu0 %v2306
      %2352 = vmatpush.msra.mxu0 %v2304
      %2353 = vmatpush.msra.mxu0 %v2302
      %2354 = vmatpush.msra.mxu0 %v2300
      %2355 = vmatpush.msra.mxu0 %v2298
      %2356 = vmatpush.msra.mxu0 %v2296
      %2357 = vmatpush.msra.mxu0 %v2294
      %2358 = vmatpush.msra.mxu0 %v2292
      %2359 = vmatpush.msra.mxu0 %v2290
      %2360 = vmatmul.f32.gmra.mxu0 %v2169
      %v2361 = vpop.f32.mrf.mxu0
      %v2362 = vadd.f32 0.0, %v2361
      %2363 = vmatmul.f32.gmra.mxu0 %v2170
      %v2364 = vpop.f32.mrf.mxu0
      %v2365 = vadd.f32 0.0, %v2364
      %2366 = vdwg.mxu0
      %2367 = vmatpush.msra.mxu0 0.0
      %2368 = vmatpush.msra.mxu0 0.0
      %2369 = vmatpush.msra.mxu0 0.0
      %2370 = vmatpush.msra.mxu0 0.0
      %2371 = vmatpush.msra.mxu0 0.0
      %2372 = vmatpush.msra.mxu0 0.0
      %2373 = vmatpush.msra.mxu0 0.0
      %2374 = vmatpush.msra.mxu0 0.0
      %2375 = vmatpush.msra.mxu0 0.0
      %2376 = vmatpush.msra.mxu0 0.0
      %2377 = vmatpush.msra.mxu0 0.0
      %2378 = vmatpush.msra.mxu0 0.0
      %2379 = vmatpush.msra.mxu0 0.0
      %2380 = vmatpush.msra.mxu0 0.0
      %2381 = vmatpush.msra.mxu0 %v2342
      %2382 = vmatpush.msra.mxu0 %v2339
      %2383 = vmatmul.f32.gmra.mxu0 %v625
      %v2384 = vpop.f32.mrf.mxu0
      %v2385 = vadd.f32 0.0, %v2384
      %2386 = vmatmul.f32.gmra.mxu0 %v628
      %v2387 = vpop.f32.mrf.mxu0
      %v2388 = vadd.f32 0.0, %v2387
      %2389 = vdwg.mxu0
      %2390 = vmatpush.msra.mxu0 0.0
      %2391 = vmatpush.msra.mxu0 0.0
      %2392 = vmatpush.msra.mxu0 0.0
      %2393 = vmatpush.msra.mxu0 0.0
      %2394 = vmatpush.msra.mxu0 0.0
      %2395 = vmatpush.msra.mxu0 0.0
      %2396 = vmatpush.msra.mxu0 0.0
      %2397 = vmatpush.msra.mxu0 0.0
      %2398 = vmatpush.msra.mxu0 0.0
      %2399 = vmatpush.msra.mxu0 0.0
      %2400 = vmatpush.msra.mxu0 0.0
      %2401 = vmatpush.msra.mxu0 0.0
      %2402 = vmatpush.msra.mxu0 0.0
      %2403 = vmatpush.msra.mxu0 0.0
      %2404 = vmatpush.msra.mxu0 %v2365
      %2405 = vmatpush.msra.mxu0 %v2362
      %2406 = vmatmul.f32.gmra.mxu0 %v625
      %v2407 = vpop.f32.mrf.mxu0
      %v2408 = vadd.f32 0.0, %v2407
      %2409 = vmatmul.f32.gmra.mxu0 %v628
      %v2410 = vpop.f32.mrf.mxu0
      %v2411 = vadd.f32 0.0, %v2410
      %2412 = vdwg.mxu0
      %2413 = vmatpush.msra.mxu0 %v2287
      %2414 = vmatpush.msra.mxu0 %v2285
      %2415 = vmatpush.msra.mxu0 %v2283
      %2416 = vmatpush.msra.mxu0 %v2281
      %2417 = vmatpush.msra.mxu0 %v2279
      %2418 = vmatpush.msra.mxu0 %v2277
      %2419 = vmatpush.msra.mxu0 %v2275
      %2420 = vmatpush.msra.mxu0 %v2273
      %2421 = vmatpush.msra.mxu0 %v2271
      %2422 = vmatpush.msra.mxu0 %v2269
      %2423 = vmatpush.msra.mxu0 %v2267
      %2424 = vmatpush.msra.mxu0 %v2265
      %2425 = vmatpush.msra.mxu0 %v2263
      %2426 = vmatpush.msra.mxu0 %v2261
      %2427 = vmatpush.msra.mxu0 %v2259
      %2428 = vmatpush.msra.mxu0 %v2257
      %2429 = vmatmul.f32.gmra.mxu0 %v2169
      %v2430 = vpop.f32.mrf.mxu0
      %v2431 = vadd.f32 %v2385, %v2430
      %2432 = vmatmul.f32.gmra.mxu0 %v2170
      %v2433 = vpop.f32.mrf.mxu0
      %v2434 = vadd.f32 %v2388, %v2433
      %2435 = vdwg.mxu0
      %2436 = vmatpush.msra.mxu0 %v2288
      %2437 = vmatpush.msra.mxu0 %v2286
      %2438 = vmatpush.msra.mxu0 %v2284
      %2439 = vmatpush.msra.mxu0 %v2282
      %2440 = vmatpush.msra.mxu0 %v2280
      %2441 = vmatpush.msra.mxu0 %v2278
      %2442 = vmatpush.msra.mxu0 %v2276
      %2443 = vmatpush.msra.mxu0 %v2274
      %2444 = vmatpush.msra.mxu0 %v2272
      %2445 = vmatpush.msra.mxu0 %v2270
      %2446 = vmatpush.msra.mxu0 %v2268
      %2447 = vmatpush.msra.mxu0 %v2266
      %2448 = vmatpush.msra.mxu0 %v2264
      %2449 = vmatpush.msra.mxu0 %v2262
      %2450 = vmatpush.msra.mxu0 %v2260
      %2451 = vmatpush.msra.mxu0 %v2258
      %2452 = vmatmul.f32.gmra.mxu0 %v2169
      %v2453 = vpop.f32.mrf.mxu0
      %v2454 = vadd.f32 %v2408, %v2453
      %2455 = vmatmul.f32.gmra.mxu0 %v2170
      %v2456 = vpop.f32.mrf.mxu0
      %v2457 = vadd.f32 %v2411, %v2456
      %2458 = vdwg.mxu0
      %v2459 = vadd.f32 %v2431, %v2206
      %v2460 = vadd.f32 %v2454, %v2207
      %v2461 = vadd.f32 %v2434, %v2206
      %v2462 = vadd.f32 %v2457, %v2207
      %vm2463 = vcmp.gt.f32.partialorder %v2228, 0.0
      %vm2464 = vcmp.gt.f32.partialorder %v2251, 0.0
      %vm2465 = vcmp.gt.f32.partialorder %v2231, 0.0
      %vm2466 = vcmp.gt.f32.partialorder %v2254, 0.0
      %v2467 = vmul.f32 %v2228, 0.25
      %v2468 = vmul.f32 %v2251, 0.25
      %v2469 = vmul.f32 %v2231, 0.25
      %v2470 = vmul.f32 %v2254, 0.25
      %v2471 = vsel %vm2463, %v2228, %v2467
      %v2472 = vsel %vm2464, %v2251, %v2468
      %v2473 = vsel %vm2465, %v2231, %v2469
      %v2474 = vsel %vm2466, %v2254, %v2470
      %vm2475 = vcmp.gt.f32.partialorder %v2459, 0.0
      %vm2476 = vcmp.gt.f32.partialorder %v2460, 0.0
      %vm2477 = vcmp.gt.f32.partialorder %v2461, 0.0
      %vm2478 = vcmp.gt.f32.partialorder %v2462, 0.0
      %v2479 = vmul.f32 %v2459, 0.25
      %v2480 = vmul.f32 %v2460, 0.25
      %v2481 = vmul.f32 %v2461, 0.25
      %v2482 = vmul.f32 %v2462, 0.25
      %v2483 = vsel %vm2475, %v2459, %v2479
      %v2484 = vsel %vm2476, %v2460, %v2480
      %v2485 = vsel %vm2477, %v2461, %v2481
      %v2486 = vsel %vm2478, %v2462, %v2482
      %v2487 = vadd.f32 %v1848, %v2471
      %v2488 = vadd.f32 %v1849, %v2472
      %v2489 = vadd.f32 %v1850, %v2473
      %v2490 = vadd.f32 %v1851, %v2474
      %2491 = vst [vmem:[%s467] sm:$0xff] %v2487
      %2492 = vst [vmem:[%s467 + $0x8] sm:$0xff] %v2488
      %2493 = vst [vmem:[%s467 + $0x10] sm:$0xff] %v2489
      %2494 = vst [vmem:[%s467 + $0x18] sm:$0xff] %v2490
      %v2495 = vadd.f32 %v1994, %v2483
      %v2496 = vadd.f32 %v1995, %v2484
      %v2497 = vadd.f32 %v1996, %v2485
      %v2498 = vadd.f32 %v1997, %v2486
      %s2499 = scalar_lea.vmem %s467, 32
      %2500 = vst [vmem:[%s2499] sm:$0xff] %v2495
      %2501 = vst [vmem:[%s2499 + $0x8] sm:$0xff] %v2496
      %2502 = vst [vmem:[%s2499 + $0x10] sm:$0xff] %v2497
      %2503 = vst [vmem:[%s2499 + $0x18] sm:$0xff] %v2498
      %p2504 = scmp.lt.s32.totalorder %s25, 1
      %s2505 = scalar_select %p2504, %s25, 1
      %s2506 = smul.addr %s2505, 8
      %s2507 = smul.addr %s2506, 8
      %s2508 = scalar_lea.vmem %s14, %s2507
      // Predicated region
      $region77: #{resup_forward.1} parent=75 // pred_check
        %p2509 = pneg %p342
      $region78: #{resup_forward.1} parent=75 // pred_check_branch
        %2511 = sbr.rel (%p2509) target = $region80
      $region79: #{resup_forward.1} parent=75 // pred_region
        _
      $region80: #{resup_forward.1} parent=75 // pred_fallthru
        _
    $region76: #{resup_forward.1} parent=5 // pred_fallthru
      _
    %p2512 = scmp.le.s32.totalorder 2, %s20
    // Predicated region
    $region81: #{resup_forward.1} parent=5 // pred_check
      %p2513 = pneg %p2512
    $region82: #{resup_forward.1} parent=5 // pred_check_branch
      %2515 = sbr.rel (%p2513) target = $region84
    $region83: #{resup_forward.1} parent=5 // pred_region
      %s2516 = ssub.s32 %s20, 2
      // Predicated region
      $region85: #{resup_forward.1} parent=83 // pred_check
        %p2517 = pneg %p348
      $region86: #{resup_forward.1} parent=83 // pred_check_branch
        %2519 = sbr.rel (%p2517) target = $region88
      $region87: #{resup_forward.1} parent=83 // pred_region
        %p2520 = scmp.lt.s32.totalorder %s26, 1
        %s2521 = scalar_select %p2520, %s26, 1
        %s2522 = smul.addr %s2521, 8
        %s2523 = smul.addr %s2522, 8
        %s2524 = scalar_lea.vmem %s14, %s2523
      $region88: #{resup_forward.1} parent=83 // pred_fallthru
        _
    $region84: #{resup_forward.1} parent=5 // pred_fallthru
      _
  $region6: #{resup_forward.1} parent=0 // loop_footer
    %s24 = sadd.s32 1, %s20
  $region7: #{resup_forward.1} parent=0 // loop_footer_branch
    %19 = sbr.rel target = $region3
  $region8: #{resup_forward.1} parent=0 // loop_exit
    _

</llo_original>
